<compile_context>
chip_gen: v7x
topology: tpu7x:2x2x1
jax: 0.10.0
libtpu: 0.0.40
codegen_flags: <defaults>
</compile_context>

<pallas_src>
import functools

import jax
import jax.numpy as jnp
from jax.experimental import pallas as pl
from jax.experimental.pallas import tpu as pltpu

BN_EPS = 1e-3  # nn.BatchNorm2d(chann, eps=0.001)


# ----------------------------- in-kernel helpers ----------------------------
def _shift_flat(a, s):
    """out[:, p] = a[:, p + s], zero where p + s falls outside [0, H*W).

    `a` is a (C, H*W) value with H*W on the lane axis; `s` is a static shift.
    The zero strip IS the convolution's zero padding for whole-row shifts.
    """
    hw = a.shape[-1]
    if s == 0:
        return a
    if abs(s) >= hw:
        return jnp.zeros_like(a)
    z = jnp.zeros((a.shape[0], abs(s)), a.dtype)
    if s > 0:
        return jnp.concatenate([a[:, s:], z], axis=-1)
    return jnp.concatenate([z, a[:, :hw + s]], axis=-1)


def _conv3x1(a, w_ref, b_ref, *, dil, W, relu):
    """(3,1) conv (3 taps along H) on a (C, H*W) activation via 3 MXU matmuls.

    A row shift by +/-dil is a flat lane shift by +/-dil*W; out-of-range rows
    fall off the end of the flat axis, so no extra mask is needed.
    """
    acc = jnp.dot(w_ref[1], a, preferred_element_type=jnp.float32)
    acc = acc + jnp.dot(w_ref[0], _shift_flat(a, -dil * W),
                        preferred_element_type=jnp.float32)
    acc = acc + jnp.dot(w_ref[2], _shift_flat(a, dil * W),
                        preferred_element_type=jnp.float32)
    acc = acc + b_ref[...]                                   # (C,1) broadcast FMA
    return jnp.maximum(acc, 0.0) if relu else acc


def _conv1x3(a, w_ref, b_ref, col, *, dil, W, relu):
    """(1,3) conv (3 taps along W) on a (C, H*W) activation via 3 MXU matmuls.

    A column shift by +/-dil is a flat lane shift by +/-dil; positions whose
    source column falls outside [0, W) would read the neighbouring row, so they
    are zeroed with a per-column mask (col = precomputed (1, H*W) column ids).
    """
    acc = jnp.dot(w_ref[1], a, preferred_element_type=jnp.float32)
    left = jnp.where(col >= dil, _shift_flat(a, -dil), 0.0)
    acc = acc + jnp.dot(w_ref[0], left, preferred_element_type=jnp.float32)
    right = jnp.where(col < (W - dil), _shift_flat(a, dil), 0.0)
    acc = acc + jnp.dot(w_ref[2], right, preferred_element_type=jnp.float32)
    acc = acc + b_ref[...]
    return jnp.maximum(acc, 0.0) if relu else acc


# --------------------------------- stage 1 -----------------------------------
def _stage1_kernel(x_ref, col_ref, w1_ref, b1_ref, w2_ref, b2_ref,
                   t2_ref, stats_ref, *, W):
    """conv3x1_1 + bias + ReLU -> conv1x3_1 + bias; emit per-image BN1 sums."""
    x = x_ref[0]                       # (C, H*W), H*W on lanes
    col = col_ref[...]                 # (1, H*W) int32 column ids
    t1 = _conv3x1(x, w1_ref, b1_ref, dil=1, W=W, relu=True)
    t2 = _conv1x3(t1, w2_ref, b2_ref, col, dil=1, W=W, relu=False)
    t2_ref[0] = t2
    # BN1 partial sums from the in-register result (no VMEM re-read).
    stats_ref[0, :, 0:1] = jnp.sum(t2, axis=-1, keepdims=True)
    stats_ref[0, :, 1:2] = jnp.sum(t2 * t2, axis=-1, keepdims=True)


# --------------------------------- stage 2 -----------------------------------
def _stage2_kernel(t2_ref, col_ref, sc1_ref, sh1_ref, w3_ref, b3_ref, w4_ref, b4_ref,
                   t4_ref, stats_ref, *, W, dil):
    """BN1-apply+ReLU -> dilated conv3x1_2 + ReLU -> dilated conv1x3_2; BN2 sums."""
    col = col_ref[...]
    y1 = jnp.maximum(t2_ref[0] * sc1_ref[...] + sh1_ref[...], 0.0)
    t3 = _conv3x1(y1, w3_ref, b3_ref, dil=dil, W=W, relu=True)
    t4 = _conv1x3(t3, w4_ref, b4_ref, col, dil=dil, W=W, relu=False)
    t4_ref[0] = t4
    stats_ref[0, :, 0:1] = jnp.sum(t4, axis=-1, keepdims=True)
    stats_ref[0, :, 1:2] = jnp.sum(t4 * t4, axis=-1, keepdims=True)


# --------------------------------- stage 3 -----------------------------------
def _stage3_kernel(t4_ref, x_ref, sc2_ref, sh2_ref, out_ref):
    """BN2-apply + residual add + ReLU (one fused broadcast FMA, lane-dense)."""
    # TODO(synk): Dropout2d with p > 0 (training) is not implemented; the module skips
    # dropout entirely when dropprob == 0, which is what this forward pass implements.
    out_ref[0] = jnp.maximum(t4_ref[0] * sc2_ref[...] + sh2_ref[...] + x_ref[0], 0.0)


# --------------------------------- wrapper -----------------------------------
def _bn_scale_shift(stats, gamma, beta, count):
    """Fold per-image (sum, sumsq) into a per-channel scale/shift (training-mode BN)."""
    s = jnp.sum(stats[:, :, 0], axis=0)
    q = jnp.sum(stats[:, :, 1], axis=0)
    mean = s / count
    var = jnp.maximum(q / count - mean * mean, 0.0)          # biased var, f32 accumulation
    scale = gamma * jax.lax.rsqrt(var + BN_EPS)
    shift = beta - mean * scale
    return (scale.reshape(-1, 1).astype(jnp.float32),
            shift.reshape(-1, 1).astype(jnp.float32))


@functools.partial(jax.jit, static_argnames=("dilated",))
def non_bottleneck_1d_forward(x, params, dilated):
    N, C, H, W = x.shape
    HW = H * W
    f32 = jnp.float32
    d = int(dilated)

    # Flat (C, H*W) layout: H*W on the lane axis (lane-dense); free reshape in XLA.
    xf = x.astype(f32).reshape(N, C, HW)
    col_ids = (jnp.arange(HW, dtype=jnp.int32) % W).reshape(1, HW)

    def taps_h(w):   # (C, C, 3, 1) -> (3, C, C): tap-major (C_out, C_in) matrices
        return jnp.transpose(w[:, :, :, 0], (2, 0, 1)).astype(f32)

    def taps_w(w):   # (C, C, 1, 3) -> (3, C, C)
        return jnp.transpose(w[:, :, 0, :], (2, 0, 1)).astype(f32)

    w1 = taps_h(params["w3x1_1"]); w2 = taps_w(params["w1x3_1"])
    w3 = taps_h(params["w3x1_2"]); w4 = taps_w(params["w1x3_2"])
    b1 = params["b3x1_1"].astype(f32).reshape(C, 1)
    b2 = params["b1x3_1"].astype(f32).reshape(C, 1)
    b3 = params["b3x1_2"].astype(f32).reshape(C, 1)
    b4 = params["b1x3_2"].astype(f32).reshape(C, 1)

    img_spec = pl.BlockSpec((1, C, HW), lambda n: (n, 0, 0))
    stats_spec = pl.BlockSpec((1, C, 2), lambda n: (n, 0, 0))
    col_spec = pl.BlockSpec((1, HW), lambda n: (0, 0))
    w_spec = pl.BlockSpec((3, C, C), lambda n: (0, 0, 0))
    vec_spec = pl.BlockSpec((C, 1), lambda n: (0, 0))
    cparams = pltpu.CompilerParams(
        dimension_semantics=("parallel",),
        vmem_limit_bytes=64 * 1024 * 1024)

    # ---- stage 1: conv3x1_1 -> ReLU -> conv1x3_1 (+ BN1 partial sums) ----
    t2, stats1 = pl.pallas_call(
        functools.partial(_stage1_kernel, W=W),
        out_shape=(jax.ShapeDtypeStruct((N, C, HW), f32),
                   jax.ShapeDtypeStruct((N, C, 2), f32)),
        grid=(N,),
        in_specs=[img_spec, col_spec, w_spec, vec_spec, w_spec, vec_spec],
        out_specs=(img_spec, stats_spec),
        compiler_params=cparams,
    )(xf, col_ids, w1, b1, w2, b2)

    count = jnp.float32(N * H * W)
    scale1, shift1 = _bn_scale_shift(
        stats1, params["bn1_gamma"].astype(f32), params["bn1_beta"].astype(f32), count)

    # ---- stage 2: BN1+ReLU -> conv3x1_2 -> ReLU -> conv1x3_2 (+ BN2 sums) ----
    t4, stats2 = pl.pallas_call(
        functools.partial(_stage2_kernel, W=W, dil=d),
        out_shape=(jax.ShapeDtypeStruct((N, C, HW), f32),
                   jax.ShapeDtypeStruct((N, C, 2), f32)),
        grid=(N,),
        in_specs=[img_spec, col_spec, vec_spec, vec_spec,
                  w_spec, vec_spec, w_spec, vec_spec],
        out_specs=(img_spec, stats_spec),
        compiler_params=cparams,
    )(t2, col_ids, scale1, shift1, w3, b3, w4, b4)

    scale2, shift2 = _bn_scale_shift(
        stats2, params["bn2_gamma"].astype(f32), params["bn2_beta"].astype(f32), count)

    # ---- stage 3: BN2-apply + residual add + ReLU (output aliases t4's buffer) ----
    outf = pl.pallas_call(
        _stage3_kernel,
        out_shape=jax.ShapeDtypeStruct((N, C, HW), f32),
        grid=(N,),
        in_specs=[img_spec, img_spec, vec_spec, vec_spec],
        out_specs=img_spec,
        input_output_aliases={0: 0},
        compiler_params=cparams,
    )(t4, xf, scale2, shift2)

    # TODO(synk): running_mean/running_var (BN inference statistics) are not updated;
    # this implements the training-mode forward pass only.
    return outf.reshape(N, C, H, W)


# --------------------------- reference (plain JAX) ---------------------------
def _conv(x, w, b, dilation, padding):
    y = jax.lax.conv_general_dilated(
        x, w, window_strides=(1, 1),
        padding=((padding[0], padding[0]), (padding[1], padding[1])),
        rhs_dilation=dilation,
        dimension_numbers=("NCHW", "OIHW", "NCHW"))
    return y + b.reshape(1, -1, 1, 1)


def _bn(y, gamma, beta):
    mean = y.mean(axis=(0, 2, 3), keepdims=True)
    var = ((y - mean) ** 2).mean(axis=(0, 2, 3), keepdims=True)
    yhat = (y - mean) * jax.lax.rsqrt(var + BN_EPS)
    return yhat * gamma.reshape(1, -1, 1, 1) + beta.reshape(1, -1, 1, 1)


def reference(x, p, dilated):
    t = jax.nn.relu(_conv(x, p["w3x1_1"], p["b3x1_1"], (1, 1), (1, 0)))
    t = _conv(t, p["w1x3_1"], p["b1x3_1"], (1, 1), (0, 1))
    t = jax.nn.relu(_bn(t, p["bn1_gamma"], p["bn1_beta"]))
    t = jax.nn.relu(_conv(t, p["w3x1_2"], p["b3x1_2"], (dilated, 1), (dilated, 0)))
    t = _conv(t, p["w1x3_2"], p["b1x3_2"], (1, dilated), (0, dilated))
    t = _bn(t, p["bn2_gamma"], p["bn2_beta"])
    return jax.nn.relu(t + x)


if __name__ == "__main__":
    key = jax.random.PRNGKey(0)
    keys = jax.random.split(key, 16)

    N, C, H, W = 2, 8, 16, 16
    dilated = 2
    # dropprob = 0.0: the module skips Dropout2d entirely when p == 0.

    def conv_w(k, shape):
        fan_in = shape[1] * shape[2] * shape[3]
        return jax.random.normal(k, shape, jnp.float32) / jnp.sqrt(jnp.float32(fan_in))

    params = {
        "w3x1_1": conv_w(keys[0], (C, C, 3, 1)),
        "b3x1_1": 0.1 * jax.random.normal(keys[1], (C,), jnp.float32),
        "w1x3_1": conv_w(keys[2], (C, C, 1, 3)),
        "b1x3_1": 0.1 * jax.random.normal(keys[3], (C,), jnp.float32),
        "w3x1_2": conv_w(keys[4], (C, C, 3, 1)),
        "b3x1_2": 0.1 * jax.random.normal(keys[5], (C,), jnp.float32),
        "w1x3_2": conv_w(keys[6], (C, C, 1, 3)),
        "b1x3_2": 0.1 * jax.random.normal(keys[7], (C,), jnp.float32),
        "bn1_gamma": 1.0 + 0.1 * jax.random.normal(keys[8], (C,), jnp.float32),
        "bn1_beta": 0.1 * jax.random.normal(keys[9], (C,), jnp.float32),
        "bn2_gamma": 1.0 + 0.1 * jax.random.normal(keys[10], (C,), jnp.float32),
        "bn2_beta": 0.1 * jax.random.normal(keys[11], (C,), jnp.float32),
    }
    x = jax.random.normal(keys[12], (N, C, H, W), jnp.float32)

    out = non_bottleneck_1d_forward(x, params, dilated=dilated)
    out = jax.block_until_ready(out)

    ref = reference(x, params, dilated)
    assert out.shape == (N, C, H, W)
    max_err = float(jnp.max(jnp.abs(out - ref)))
    assert jnp.allclose(out, ref, atol=5e-3, rtol=5e-3), \
        f"mismatch vs reference (max abs err {max_err})"

    print("KERNEL_OK")
</pallas_src>

<mosaic_0001>
module attributes {stable_mosaic.version = 11 : i64} {
  func.func @_stage1_kernel(%arg0: i32, %arg1: memref<1x8x256xf32, #tpu.memory_space<vmem>>, %arg2: memref<1x256xi32, #tpu.memory_space<vmem>>, %arg3: memref<3x8x8xf32, #tpu.memory_space<vmem>>, %arg4: memref<8x1xf32, #tpu.memory_space<vmem>>, %arg5: memref<3x8x8xf32, #tpu.memory_space<vmem>>, %arg6: memref<8x1xf32, #tpu.memory_space<vmem>>, %arg7: memref<1x8x256xf32, #tpu.memory_space<vmem>>, %arg8: memref<1x8x2xf32, #tpu.memory_space<vmem>>) attributes {dimension_semantics = [#tpu.dimension_semantics<parallel>], iteration_bounds = array<i64: 2>, scalar_prefetch = 0 : i64, scratch_operands = 0 : i64, tpu.core_type = #tpu.core_type<tc>, window_params = [{transform_indices = @transform_0, window_bounds = array<i64: 1, 8, 256>}, {pipeline_mode = #tpu.pipeline_mode<synchronous>, transform_indices = @transform_1, window_bounds = array<i64: 1, 256>}, {pipeline_mode = #tpu.pipeline_mode<synchronous>, transform_indices = @transform_2, window_bounds = array<i64: 3, 8, 8>}, {pipeline_mode = #tpu.pipeline_mode<synchronous>, transform_indices = @transform_3, window_bounds = array<i64: 8, 1>}, {pipeline_mode = #tpu.pipeline_mode<synchronous>, transform_indices = @transform_4, window_bounds = array<i64: 3, 8, 8>}, {pipeline_mode = #tpu.pipeline_mode<synchronous>, transform_indices = @transform_5, window_bounds = array<i64: 8, 1>}, {transform_indices = @transform_6, window_bounds = array<i64: 1, 8, 256>}, {transform_indices = @transform_7, window_bounds = array<i64: 1, 8, 2>}]} {
    %c0 = arith.constant 0 : index
    %c0_0 = arith.constant 0 : index
    %c0_1 = arith.constant 0 : index
    %0 = vector.load %arg1[%c0, %c0_0, %c0_1] : memref<1x8x256xf32, #tpu.memory_space<vmem>>, vector<1x8x256xf32>
    %1 = vector.shape_cast %0 : vector<1x8x256xf32> to vector<8x256xf32>
    %c0_2 = arith.constant 0 : index
    %c0_3 = arith.constant 0 : index
    %2 = vector.load %arg2[%c0_2, %c0_3] : memref<1x256xi32, #tpu.memory_space<vmem>>, vector<1x256xi32>
    %c1 = arith.constant 1 : index
    %c0_4 = arith.constant 0 : index
    %c0_5 = arith.constant 0 : index
    %3 = vector.load %arg3[%c1, %c0_4, %c0_5] : memref<3x8x8xf32, #tpu.memory_space<vmem>>, vector<1x8x8xf32>
    %4 = vector.shape_cast %3 : vector<1x8x8xf32> to vector<8x8xf32>
    %cst = arith.constant dense<0.000000e+00> : vector<8x256xf32>
    %5 = tpu.matmul %4, %1, %cst {dimension_numbers = #tpu.dot_dimension_numbers<[1], [0], [0], [1], [0, 0, 1, 1], [], []>} : vector<8x8xf32>, vector<8x256xf32>, vector<8x256xf32> -> vector<8x256xf32>
    %c0_6 = arith.constant 0 : index
    %c0_7 = arith.constant 0 : index
    %c0_8 = arith.constant 0 : index
    %6 = vector.load %arg3[%c0_6, %c0_7, %c0_8] : memref<3x8x8xf32, #tpu.memory_space<vmem>>, vector<1x8x8xf32>
    %7 = vector.shape_cast %6 : vector<1x8x8xf32> to vector<8x8xf32>
    %cst_9 = arith.constant 0.000000e+00 : f32
    %8 = vector.broadcast %cst_9 : f32 to vector<8x16xf32>
    %9 = vector.extract_strided_slice %1 {offsets = [0, 0], sizes = [8, 240], strides = [1, 1]} : vector<8x256xf32> to vector<8x240xf32>
    %10 = tpu.concatenate %8, %9 in 1 : vector<8x16xf32>, vector<8x240xf32> -> vector<8x256xf32>
    %cst_10 = arith.constant dense<0.000000e+00> : vector<8x256xf32>
    %11 = tpu.matmul %7, %10, %cst_10 {dimension_numbers = #tpu.dot_dimension_numbers<[1], [0], [0], [1], [0, 0, 1, 1], [], []>} : vector<8x8xf32>, vector<8x256xf32>, vector<8x256xf32> -> vector<8x256xf32>
    %12 = arith.addf %5, %11 : vector<8x256xf32>
    %c2 = arith.constant 2 : index
    %c0_11 = arith.constant 0 : index
    %c0_12 = arith.constant 0 : index
    %13 = vector.load %arg3[%c2, %c0_11, %c0_12] : memref<3x8x8xf32, #tpu.memory_space<vmem>>, vector<1x8x8xf32>
    %14 = vector.shape_cast %13 : vector<1x8x8xf32> to vector<8x8xf32>
    %cst_13 = arith.constant 0.000000e+00 : f32
    %15 = vector.broadcast %cst_13 : f32 to vector<8x16xf32>
    %16 = vector.extract_strided_slice %1 {offsets = [0, 16], sizes = [8, 240], strides = [1, 1]} : vector<8x256xf32> to vector<8x240xf32>
    %17 = tpu.concatenate %16, %15 in 1 : vector<8x240xf32>, vector<8x16xf32> -> vector<8x256xf32>
    %cst_14 = arith.constant dense<0.000000e+00> : vector<8x256xf32>
    %18 = tpu.matmul %14, %17, %cst_14 {dimension_numbers = #tpu.dot_dimension_numbers<[1], [0], [0], [1], [0, 0, 1, 1], [], []>} : vector<8x8xf32>, vector<8x256xf32>, vector<8x256xf32> -> vector<8x256xf32>
    %19 = arith.addf %12, %18 : vector<8x256xf32>
    %c0_15 = arith.constant 0 : index
    %c0_16 = arith.constant 0 : index
    %20 = vector.load %arg4[%c0_15, %c0_16] : memref<8x1xf32, #tpu.memory_space<vmem>>, vector<8x1xf32>
    %21 = vector.broadcast %20 : vector<8x1xf32> to vector<8x256xf32>
    %22 = arith.addf %19, %21 : vector<8x256xf32>
    %cst_17 = arith.constant 0.000000e+00 : f32
    %23 = vector.broadcast %cst_17 : f32 to vector<8x256xf32>
    %24 = arith.maximumf %22, %23 : vector<8x256xf32>
    %c1_18 = arith.constant 1 : index
    %c0_19 = arith.constant 0 : index
    %c0_20 = arith.constant 0 : index
    %25 = vector.load %arg5[%c1_18, %c0_19, %c0_20] : memref<3x8x8xf32, #tpu.memory_space<vmem>>, vector<1x8x8xf32>
    %26 = vector.shape_cast %25 : vector<1x8x8xf32> to vector<8x8xf32>
    %cst_21 = arith.constant dense<0.000000e+00> : vector<8x256xf32>
    %27 = tpu.matmul %26, %24, %cst_21 {dimension_numbers = #tpu.dot_dimension_numbers<[1], [0], [0], [1], [0, 0, 1, 1], [], []>} : vector<8x8xf32>, vector<8x256xf32>, vector<8x256xf32> -> vector<8x256xf32>
    %c1_i32 = arith.constant 1 : i32
    %28 = vector.broadcast %c1_i32 : i32 to vector<1x256xi32>
    %29 = arith.cmpi sge, %2, %28 : vector<1x256xi32>
    %cst_22 = arith.constant 0.000000e+00 : f32
    %30 = vector.broadcast %cst_22 : f32 to vector<8x1xf32>
    %31 = vector.extract_strided_slice %24 {offsets = [0, 0], sizes = [8, 255], strides = [1, 1]} : vector<8x256xf32> to vector<8x255xf32>
    %32 = tpu.concatenate %30, %31 in 1 : vector<8x1xf32>, vector<8x255xf32> -> vector<8x256xf32>
    %cst_23 = arith.constant 0.000000e+00 : f32
    %33 = vector.shape_cast %29 : vector<1x256xi1> to vector<1x256xi1>
    %34 = vector.broadcast %33 : vector<1x256xi1> to vector<8x256xi1>
    %35 = vector.broadcast %cst_23 : f32 to vector<8x256xf32>
    %36 = arith.select %34, %32, %35 : vector<8x256xi1>, vector<8x256xf32>
    %c0_24 = arith.constant 0 : index
    %c0_25 = arith.constant 0 : index
    %c0_26 = arith.constant 0 : index
    %37 = vector.load %arg5[%c0_24, %c0_25, %c0_26] : memref<3x8x8xf32, #tpu.memory_space<vmem>>, vector<1x8x8xf32>
    %38 = vector.shape_cast %37 : vector<1x8x8xf32> to vector<8x8xf32>
    %cst_27 = arith.constant dense<0.000000e+00> : vector<8x256xf32>
    %39 = tpu.matmul %38, %36, %cst_27 {dimension_numbers = #tpu.dot_dimension_numbers<[1], [0], [0], [1], [0, 0, 1, 1], [], []>} : vector<8x8xf32>, vector<8x256xf32>, vector<8x256xf32> -> vector<8x256xf32>
    %40 = arith.addf %27, %39 : vector<8x256xf32>
    %c15_i32 = arith.constant 15 : i32
    %41 = vector.broadcast %c15_i32 : i32 to vector<1x256xi32>
    %42 = arith.cmpi slt, %2, %41 : vector<1x256xi32>
    %cst_28 = arith.constant 0.000000e+00 : f32
    %43 = vector.broadcast %cst_28 : f32 to vector<8x1xf32>
    %44 = vector.extract_strided_slice %24 {offsets = [0, 1], sizes = [8, 255], strides = [1, 1]} : vector<8x256xf32> to vector<8x255xf32>
    %45 = tpu.concatenate %44, %43 in 1 : vector<8x255xf32>, vector<8x1xf32> -> vector<8x256xf32>
    %cst_29 = arith.constant 0.000000e+00 : f32
    %46 = vector.shape_cast %42 : vector<1x256xi1> to vector<1x256xi1>
    %47 = vector.broadcast %46 : vector<1x256xi1> to vector<8x256xi1>
    %48 = vector.broadcast %cst_29 : f32 to vector<8x256xf32>
    %49 = arith.select %47, %45, %48 : vector<8x256xi1>, vector<8x256xf32>
    %c2_30 = arith.constant 2 : index
    %c0_31 = arith.constant 0 : index
    %c0_32 = arith.constant 0 : index
    %50 = vector.load %arg5[%c2_30, %c0_31, %c0_32] : memref<3x8x8xf32, #tpu.memory_space<vmem>>, vector<1x8x8xf32>
    %51 = vector.shape_cast %50 : vector<1x8x8xf32> to vector<8x8xf32>
    %cst_33 = arith.constant dense<0.000000e+00> : vector<8x256xf32>
    %52 = tpu.matmul %51, %49, %cst_33 {dimension_numbers = #tpu.dot_dimension_numbers<[1], [0], [0], [1], [0, 0, 1, 1], [], []>} : vector<8x8xf32>, vector<8x256xf32>, vector<8x256xf32> -> vector<8x256xf32>
    %53 = arith.addf %40, %52 : vector<8x256xf32>
    %c0_34 = arith.constant 0 : index
    %c0_35 = arith.constant 0 : index
    %54 = vector.load %arg6[%c0_34, %c0_35] : memref<8x1xf32, #tpu.memory_space<vmem>>, vector<8x1xf32>
    %55 = vector.broadcast %54 : vector<8x1xf32> to vector<8x256xf32>
    %56 = arith.addf %53, %55 : vector<8x256xf32>
    %c0_36 = arith.constant 0 : index
    %c0_37 = arith.constant 0 : index
    %c0_38 = arith.constant 0 : index
    %57 = vector.load %arg7[%c0_36, %c0_37, %c0_38] : memref<1x8x256xf32, #tpu.memory_space<vmem>>, vector<1x8x256xf32>
    %58 = vector.shape_cast %57 : vector<1x8x256xf32> to vector<8x256xf32>
    %59 = vector.shape_cast %56 : vector<8x256xf32> to vector<1x8x256xf32>
    tpu.vector_store %arg7[%c0_36, %c0_37, %c0_38], %59 {strides = array<i32>} : memref<1x8x256xf32, #tpu.memory_space<vmem>>, vector<1x8x256xf32>,
    %cst_39 = arith.constant dense<0.000000e+00> : vector<8xf32>
    %60 = vector.multi_reduction <add>, %56, %cst_39 [1] : vector<8x256xf32> to vector<8xf32>
    %61 = vector.shape_cast %60 : vector<8xf32> to vector<8x1xf32>
    %c0_40 = arith.constant 0 : index
    %c0_41 = arith.constant 0 : index
    %c0_42 = arith.constant 0 : index
    %62 = vector.load %arg8[%c0_40, %c0_41, %c0_42] : memref<1x8x2xf32, #tpu.memory_space<vmem>>, vector<1x8x1xf32>
    %63 = vector.shape_cast %62 : vector<1x8x1xf32> to vector<8x1xf32>
    %64 = vector.shape_cast %61 : vector<8x1xf32> to vector<1x8x1xf32>
    tpu.vector_store %arg8[%c0_40, %c0_41, %c0_42], %64 {strides = array<i32>} : memref<1x8x2xf32, #tpu.memory_space<vmem>>, vector<1x8x1xf32>,
    %65 = arith.mulf %56, %56 : vector<8x256xf32>
    %cst_43 = arith.constant dense<0.000000e+00> : vector<8xf32>
    %66 = vector.multi_reduction <add>, %65, %cst_43 [1] : vector<8x256xf32> to vector<8xf32>
    %67 = vector.shape_cast %66 : vector<8xf32> to vector<8x1xf32>
    %c0_44 = arith.constant 0 : index
    %c0_45 = arith.constant 0 : index
    %c1_46 = arith.constant 1 : index
    %68 = vector.load %arg8[%c0_44, %c0_45, %c1_46] : memref<1x8x2xf32, #tpu.memory_space<vmem>>, vector<1x8x1xf32>
    %69 = vector.shape_cast %68 : vector<1x8x1xf32> to vector<8x1xf32>
    %70 = vector.shape_cast %67 : vector<8x1xf32> to vector<1x8x1xf32>
    tpu.vector_store %arg8[%c0_44, %c0_45, %c1_46], %70 {strides = array<i32>} : memref<1x8x2xf32, #tpu.memory_space<vmem>>, vector<1x8x1xf32>,
    return
  }
  func.func @transform_0(%arg0: i32) -> (i32, i32, i32) {
    %c0_i32 = arith.constant 0 : i32
    %c0_i32_0 = arith.constant 0 : i32
    %c0_i32_1 = arith.constant 0 : i32
    return %arg0, %c0_i32, %c0_i32_0 : i32, i32, i32
  }
  func.func @transform_1(%arg0: i32) -> (i32, i32) {
    %c0_i32 = arith.constant 0 : i32
    %c0_i32_0 = arith.constant 0 : i32
    %c0_i32_1 = arith.constant 0 : i32
    return %c0_i32, %c0_i32_0 : i32, i32
  }
  func.func @transform_2(%arg0: i32) -> (i32, i32, i32) {
    %c0_i32 = arith.constant 0 : i32
    %c0_i32_0 = arith.constant 0 : i32
    %c0_i32_1 = arith.constant 0 : i32
    %c0_i32_2 = arith.constant 0 : i32
    return %c0_i32, %c0_i32_0, %c0_i32_1 : i32, i32, i32
  }
  func.func @transform_3(%arg0: i32) -> (i32, i32) {
    %c0_i32 = arith.constant 0 : i32
    %c0_i32_0 = arith.constant 0 : i32
    %c0_i32_1 = arith.constant 0 : i32
    return %c0_i32, %c0_i32_0 : i32, i32
  }
  func.func @transform_4(%arg0: i32) -> (i32, i32, i32) {
    %c0_i32 = arith.constant 0 : i32
    %c0_i32_0 = arith.constant 0 : i32
    %c0_i32_1 = arith.constant 0 : i32
    %c0_i32_2 = arith.constant 0 : i32
    return %c0_i32, %c0_i32_0, %c0_i32_1 : i32, i32, i32
  }
  func.func @transform_5(%arg0: i32) -> (i32, i32) {
    %c0_i32 = arith.constant 0 : i32
    %c0_i32_0 = arith.constant 0 : i32
    %c0_i32_1 = arith.constant 0 : i32
    return %c0_i32, %c0_i32_0 : i32, i32
  }
  func.func @transform_6(%arg0: i32) -> (i32, i32, i32) {
    %c0_i32 = arith.constant 0 : i32
    %c0_i32_0 = arith.constant 0 : i32
    %c0_i32_1 = arith.constant 0 : i32
    return %arg0, %c0_i32, %c0_i32_0 : i32, i32, i32
  }
  func.func @transform_7(%arg0: i32) -> (i32, i32, i32) {
    %c0_i32 = arith.constant 0 : i32
    %c0_i32_0 = arith.constant 0 : i32
    %c0_i32_1 = arith.constant 0 : i32
    return %arg0, %c0_i32, %c0_i32_0 : i32, i32, i32
  }
}

module attributes {stable_mosaic.version = 11 : i64} {
  func.func @_stage2_kernel(%arg0: i32, %arg1: memref<1x8x256xf32, #tpu.memory_space<vmem>>, %arg2: memref<1x256xi32, #tpu.memory_space<vmem>>, %arg3: memref<8x1xf32, #tpu.memory_space<vmem>>, %arg4: memref<8x1xf32, #tpu.memory_space<vmem>>, %arg5: memref<3x8x8xf32, #tpu.memory_space<vmem>>, %arg6: memref<8x1xf32, #tpu.memory_space<vmem>>, %arg7: memref<3x8x8xf32, #tpu.memory_space<vmem>>, %arg8: memref<8x1xf32, #tpu.memory_space<vmem>>, %arg9: memref<1x8x256xf32, #tpu.memory_space<vmem>>, %arg10: memref<1x8x2xf32, #tpu.memory_space<vmem>>) attributes {dimension_semantics = [#tpu.dimension_semantics<parallel>], iteration_bounds = array<i64: 2>, scalar_prefetch = 0 : i64, scratch_operands = 0 : i64, tpu.core_type = #tpu.core_type<tc>, window_params = [{transform_indices = @transform_0, window_bounds = array<i64: 1, 8, 256>}, {pipeline_mode = #tpu.pipeline_mode<synchronous>, transform_indices = @transform_1, window_bounds = array<i64: 1, 256>}, {pipeline_mode = #tpu.pipeline_mode<synchronous>, transform_indices = @transform_2, window_bounds = array<i64: 8, 1>}, {pipeline_mode = #tpu.pipeline_mode<synchronous>, transform_indices = @transform_3, window_bounds = array<i64: 8, 1>}, {pipeline_mode = #tpu.pipeline_mode<synchronous>, transform_indices = @transform_4, window_bounds = array<i64: 3, 8, 8>}, {pipeline_mode = #tpu.pipeline_mode<synchronous>, transform_indices = @transform_5, window_bounds = array<i64: 8, 1>}, {pipeline_mode = #tpu.pipeline_mode<synchronous>, transform_indices = @transform_6, window_bounds = array<i64: 3, 8, 8>}, {pipeline_mode = #tpu.pipeline_mode<synchronous>, transform_indices = @transform_7, window_bounds = array<i64: 8, 1>}, {transform_indices = @transform_8, window_bounds = array<i64: 1, 8, 256>}, {transform_indices = @transform_9, window_bounds = array<i64: 1, 8, 2>}]} {
    %c0 = arith.constant 0 : index
    %c0_0 = arith.constant 0 : index
    %0 = vector.load %arg2[%c0, %c0_0] : memref<1x256xi32, #tpu.memory_space<vmem>>, vector<1x256xi32>
    %c0_1 = arith.constant 0 : index
    %c0_2 = arith.constant 0 : index
    %c0_3 = arith.constant 0 : index
    %1 = vector.load %arg1[%c0_1, %c0_2, %c0_3] : memref<1x8x256xf32, #tpu.memory_space<vmem>>, vector<1x8x256xf32>
    %2 = vector.shape_cast %1 : vector<1x8x256xf32> to vector<8x256xf32>
    %c0_4 = arith.constant 0 : index
    %c0_5 = arith.constant 0 : index
    %3 = vector.load %arg3[%c0_4, %c0_5] : memref<8x1xf32, #tpu.memory_space<vmem>>, vector<8x1xf32>
    %4 = vector.broadcast %3 : vector<8x1xf32> to vector<8x256xf32>
    %5 = arith.mulf %2, %4 : vector<8x256xf32>
    %c0_6 = arith.constant 0 : index
    %c0_7 = arith.constant 0 : index
    %6 = vector.load %arg4[%c0_6, %c0_7] : memref<8x1xf32, #tpu.memory_space<vmem>>, vector<8x1xf32>
    %7 = vector.broadcast %6 : vector<8x1xf32> to vector<8x256xf32>
    %8 = arith.addf %5, %7 : vector<8x256xf32>
    %cst = arith.constant 0.000000e+00 : f32
    %9 = vector.broadcast %cst : f32 to vector<8x256xf32>
    %10 = arith.maximumf %8, %9 : vector<8x256xf32>
    %c1 = arith.constant 1 : index
    %c0_8 = arith.constant 0 : index
    %c0_9 = arith.constant 0 : index
    %11 = vector.load %arg5[%c1, %c0_8, %c0_9] : memref<3x8x8xf32, #tpu.memory_space<vmem>>, vector<1x8x8xf32>
    %12 = vector.shape_cast %11 : vector<1x8x8xf32> to vector<8x8xf32>
    %cst_10 = arith.constant dense<0.000000e+00> : vector<8x256xf32>
    %13 = tpu.matmul %12, %10, %cst_10 {dimension_numbers = #tpu.dot_dimension_numbers<[1], [0], [0], [1], [0, 0, 1, 1], [], []>} : vector<8x8xf32>, vector<8x256xf32>, vector<8x256xf32> -> vector<8x256xf32>
    %c0_11 = arith.constant 0 : index
    %c0_12 = arith.constant 0 : index
    %c0_13 = arith.constant 0 : index
    %14 = vector.load %arg5[%c0_11, %c0_12, %c0_13] : memref<3x8x8xf32, #tpu.memory_space<vmem>>, vector<1x8x8xf32>
    %15 = vector.shape_cast %14 : vector<1x8x8xf32> to vector<8x8xf32>
    %cst_14 = arith.constant 0.000000e+00 : f32
    %16 = vector.broadcast %cst_14 : f32 to vector<8x32xf32>
    %17 = vector.extract_strided_slice %10 {offsets = [0, 0], sizes = [8, 224], strides = [1, 1]} : vector<8x256xf32> to vector<8x224xf32>
    %18 = tpu.concatenate %16, %17 in 1 : vector<8x32xf32>, vector<8x224xf32> -> vector<8x256xf32>
    %cst_15 = arith.constant dense<0.000000e+00> : vector<8x256xf32>
    %19 = tpu.matmul %15, %18, %cst_15 {dimension_numbers = #tpu.dot_dimension_numbers<[1], [0], [0], [1], [0, 0, 1, 1], [], []>} : vector<8x8xf32>, vector<8x256xf32>, vector<8x256xf32> -> vector<8x256xf32>
    %20 = arith.addf %13, %19 : vector<8x256xf32>
    %c2 = arith.constant 2 : index
    %c0_16 = arith.constant 0 : index
    %c0_17 = arith.constant 0 : index
    %21 = vector.load %arg5[%c2, %c0_16, %c0_17] : memref<3x8x8xf32, #tpu.memory_space<vmem>>, vector<1x8x8xf32>
    %22 = vector.shape_cast %21 : vector<1x8x8xf32> to vector<8x8xf32>
    %cst_18 = arith.constant 0.000000e+00 : f32
    %23 = vector.broadcast %cst_18 : f32 to vector<8x32xf32>
    %24 = vector.extract_strided_slice %10 {offsets = [0, 32], sizes = [8, 224], strides = [1, 1]} : vector<8x256xf32> to vector<8x224xf32>
    %25 = tpu.concatenate %24, %23 in 1 : vector<8x224xf32>, vector<8x32xf32> -> vector<8x256xf32>
    %cst_19 = arith.constant dense<0.000000e+00> : vector<8x256xf32>
    %26 = tpu.matmul %22, %25, %cst_19 {dimension_numbers = #tpu.dot_dimension_numbers<[1], [0], [0], [1], [0, 0, 1, 1], [], []>} : vector<8x8xf32>, vector<8x256xf32>, vector<8x256xf32> -> vector<8x256xf32>
    %27 = arith.addf %20, %26 : vector<8x256xf32>
    %c0_20 = arith.constant 0 : index
    %c0_21 = arith.constant 0 : index
    %28 = vector.load %arg6[%c0_20, %c0_21] : memref<8x1xf32, #tpu.memory_space<vmem>>, vector<8x1xf32>
    %29 = vector.broadcast %28 : vector<8x1xf32> to vector<8x256xf32>
    %30 = arith.addf %27, %29 : vector<8x256xf32>
    %cst_22 = arith.constant 0.000000e+00 : f32
    %31 = vector.broadcast %cst_22 : f32 to vector<8x256xf32>
    %32 = arith.maximumf %30, %31 : vector<8x256xf32>
    %c1_23 = arith.constant 1 : index
    %c0_24 = arith.constant 0 : index
    %c0_25 = arith.constant 0 : index
    %33 = vector.load %arg7[%c1_23, %c0_24, %c0_25] : memref<3x8x8xf32, #tpu.memory_space<vmem>>, vector<1x8x8xf32>
    %34 = vector.shape_cast %33 : vector<1x8x8xf32> to vector<8x8xf32>
    %cst_26 = arith.constant dense<0.000000e+00> : vector<8x256xf32>
    %35 = tpu.matmul %34, %32, %cst_26 {dimension_numbers = #tpu.dot_dimension_numbers<[1], [0], [0], [1], [0, 0, 1, 1], [], []>} : vector<8x8xf32>, vector<8x256xf32>, vector<8x256xf32> -> vector<8x256xf32>
    %c2_i32 = arith.constant 2 : i32
    %36 = vector.broadcast %c2_i32 : i32 to vector<1x256xi32>
    %37 = arith.cmpi sge, %0, %36 : vector<1x256xi32>
    %cst_27 = arith.constant 0.000000e+00 : f32
    %38 = vector.broadcast %cst_27 : f32 to vector<8x2xf32>
    %39 = vector.extract_strided_slice %32 {offsets = [0, 0], sizes = [8, 254], strides = [1, 1]} : vector<8x256xf32> to vector<8x254xf32>
    %40 = tpu.concatenate %38, %39 in 1 : vector<8x2xf32>, vector<8x254xf32> -> vector<8x256xf32>
    %cst_28 = arith.constant 0.000000e+00 : f32
    %41 = vector.shape_cast %37 : vector<1x256xi1> to vector<1x256xi1>
    %42 = vector.broadcast %41 : vector<1x256xi1> to vector<8x256xi1>
    %43 = vector.broadcast %cst_28 : f32 to vector<8x256xf32>
    %44 = arith.select %42, %40, %43 : vector<8x256xi1>, vector<8x256xf32>
    %c0_29 = arith.constant 0 : index
    %c0_30 = arith.constant 0 : index
    %c0_31 = arith.constant 0 : index
    %45 = vector.load %arg7[%c0_29, %c0_30, %c0_31] : memref<3x8x8xf32, #tpu.memory_space<vmem>>, vector<1x8x8xf32>
    %46 = vector.shape_cast %45 : vector<1x8x8xf32> to vector<8x8xf32>
    %cst_32 = arith.constant dense<0.000000e+00> : vector<8x256xf32>
    %47 = tpu.matmul %46, %44, %cst_32 {dimension_numbers = #tpu.dot_dimension_numbers<[1], [0], [0], [1], [0, 0, 1, 1], [], []>} : vector<8x8xf32>, vector<8x256xf32>, vector<8x256xf32> -> vector<8x256xf32>
    %48 = arith.addf %35, %47 : vector<8x256xf32>
    %c14_i32 = arith.constant 14 : i32
    %49 = vector.broadcast %c14_i32 : i32 to vector<1x256xi32>
    %50 = arith.cmpi slt, %0, %49 : vector<1x256xi32>
    %cst_33 = arith.constant 0.000000e+00 : f32
    %51 = vector.broadcast %cst_33 : f32 to vector<8x2xf32>
    %52 = vector.extract_strided_slice %32 {offsets = [0, 2], sizes = [8, 254], strides = [1, 1]} : vector<8x256xf32> to vector<8x254xf32>
    %53 = tpu.concatenate %52, %51 in 1 : vector<8x254xf32>, vector<8x2xf32> -> vector<8x256xf32>
    %cst_34 = arith.constant 0.000000e+00 : f32
    %54 = vector.shape_cast %50 : vector<1x256xi1> to vector<1x256xi1>
    %55 = vector.broadcast %54 : vector<1x256xi1> to vector<8x256xi1>
    %56 = vector.broadcast %cst_34 : f32 to vector<8x256xf32>
    %57 = arith.select %55, %53, %56 : vector<8x256xi1>, vector<8x256xf32>
    %c2_35 = arith.constant 2 : index
    %c0_36 = arith.constant 0 : index
    %c0_37 = arith.constant 0 : index
    %58 = vector.load %arg7[%c2_35, %c0_36, %c0_37] : memref<3x8x8xf32, #tpu.memory_space<vmem>>, vector<1x8x8xf32>
    %59 = vector.shape_cast %58 : vector<1x8x8xf32> to vector<8x8xf32>
    %cst_38 = arith.constant dense<0.000000e+00> : vector<8x256xf32>
    %60 = tpu.matmul %59, %57, %cst_38 {dimension_numbers = #tpu.dot_dimension_numbers<[1], [0], [0], [1], [0, 0, 1, 1], [], []>} : vector<8x8xf32>, vector<8x256xf32>, vector<8x256xf32> -> vector<8x256xf32>
    %61 = arith.addf %48, %60 : vector<8x256xf32>
    %c0_39 = arith.constant 0 : index
    %c0_40 = arith.constant 0 : index
    %62 = vector.load %arg8[%c0_39, %c0_40] : memref<8x1xf32, #tpu.memory_space<vmem>>, vector<8x1xf32>
    %63 = vector.broadcast %62 : vector<8x1xf32> to vector<8x256xf32>
    %64 = arith.addf %61, %63 : vector<8x256xf32>
    %c0_41 = arith.constant 0 : index
    %c0_42 = arith.constant 0 : index
    %c0_43 = arith.constant 0 : index
    %65 = vector.load %arg9[%c0_41, %c0_42, %c0_43] : memref<1x8x256xf32, #tpu.memory_space<vmem>>, vector<1x8x256xf32>
    %66 = vector.shape_cast %65 : vector<1x8x256xf32> to vector<8x256xf32>
    %67 = vector.shape_cast %64 : vector<8x256xf32> to vector<1x8x256xf32>
    tpu.vector_store %arg9[%c0_41, %c0_42, %c0_43], %67 {strides = array<i32>} : memref<1x8x256xf32, #tpu.memory_space<vmem>>, vector<1x8x256xf32>,
    %cst_44 = arith.constant dense<0.000000e+00> : vector<8xf32>
    %68 = vector.multi_reduction <add>, %64, %cst_44 [1] : vector<8x256xf32> to vector<8xf32>
    %69 = vector.shape_cast %68 : vector<8xf32> to vector<8x1xf32>
    %c0_45 = arith.constant 0 : index
    %c0_46 = arith.constant 0 : index
    %c0_47 = arith.constant 0 : index
    %70 = vector.load %arg10[%c0_45, %c0_46, %c0_47] : memref<1x8x2xf32, #tpu.memory_space<vmem>>, vector<1x8x1xf32>
    %71 = vector.shape_cast %70 : vector<1x8x1xf32> to vector<8x1xf32>
    %72 = vector.shape_cast %69 : vector<8x1xf32> to vector<1x8x1xf32>
    tpu.vector_store %arg10[%c0_45, %c0_46, %c0_47], %72 {strides = array<i32>} : memref<1x8x2xf32, #tpu.memory_space<vmem>>, vector<1x8x1xf32>,
    %73 = arith.mulf %64, %64 : vector<8x256xf32>
    %cst_48 = arith.constant dense<0.000000e+00> : vector<8xf32>
    %74 = vector.multi_reduction <add>, %73, %cst_48 [1] : vector<8x256xf32> to vector<8xf32>
    %75 = vector.shape_cast %74 : vector<8xf32> to vector<8x1xf32>
    %c0_49 = arith.constant 0 : index
    %c0_50 = arith.constant 0 : index
    %c1_51 = arith.constant 1 : index
    %76 = vector.load %arg10[%c0_49, %c0_50, %c1_51] : memref<1x8x2xf32, #tpu.memory_space<vmem>>, vector<1x8x1xf32>
    %77 = vector.shape_cast %76 : vector<1x8x1xf32> to vector<8x1xf32>
    %78 = vector.shape_cast %75 : vector<8x1xf32> to vector<1x8x1xf32>
    tpu.vector_store %arg10[%c0_49, %c0_50, %c1_51], %78 {strides = array<i32>} : memref<1x8x2xf32, #tpu.memory_space<vmem>>, vector<1x8x1xf32>,
    return
  }
  func.func @transform_0(%arg0: i32) -> (i32, i32, i32) {
    %c0_i32 = arith.constant 0 : i32
    %c0_i32_0 = arith.constant 0 : i32
    %c0_i32_1 = arith.constant 0 : i32
    return %arg0, %c0_i32, %c0_i32_0 : i32, i32, i32
  }
  func.func @transform_1(%arg0: i32) -> (i32, i32) {
    %c0_i32 = arith.constant 0 : i32
    %c0_i32_0 = arith.constant 0 : i32
    %c0_i32_1 = arith.constant 0 : i32
    return %c0_i32, %c0_i32_0 : i32, i32
  }
  func.func @transform_2(%arg0: i32) -> (i32, i32) {
    %c0_i32 = arith.constant 0 : i32
    %c0_i32_0 = arith.constant 0 : i32
    %c0_i32_1 = arith.constant 0 : i32
    return %c0_i32, %c0_i32_0 : i32, i32
  }
  func.func @transform_3(%arg0: i32) -> (i32, i32) {
    %c0_i32 = arith.constant 0 : i32
    %c0_i32_0 = arith.constant 0 : i32
    %c0_i32_1 = arith.constant 0 : i32
    return %c0_i32, %c0_i32_0 : i32, i32
  }
  func.func @transform_4(%arg0: i32) -> (i32, i32, i32) {
    %c0_i32 = arith.constant 0 : i32
    %c0_i32_0 = arith.constant 0 : i32
    %c0_i32_1 = arith.constant 0 : i32
    %c0_i32_2 = arith.constant 0 : i32
    return %c0_i32, %c0_i32_0, %c0_i32_1 : i32, i32, i32
  }
  func.func @transform_5(%arg0: i32) -> (i32, i32) {
    %c0_i32 = arith.constant 0 : i32
    %c0_i32_0 = arith.constant 0 : i32
    %c0_i32_1 = arith.constant 0 : i32
    return %c0_i32, %c0_i32_0 : i32, i32
  }
  func.func @transform_6(%arg0: i32) -> (i32, i32, i32) {
    %c0_i32 = arith.constant 0 : i32
    %c0_i32_0 = arith.constant 0 : i32
    %c0_i32_1 = arith.constant 0 : i32
    %c0_i32_2 = arith.constant 0 : i32
    return %c0_i32, %c0_i32_0, %c0_i32_1 : i32, i32, i32
  }
  func.func @transform_7(%arg0: i32) -> (i32, i32) {
    %c0_i32 = arith.constant 0 : i32
    %c0_i32_0 = arith.constant 0 : i32
    %c0_i32_1 = arith.constant 0 : i32
    return %c0_i32, %c0_i32_0 : i32, i32
  }
  func.func @transform_8(%arg0: i32) -> (i32, i32, i32) {
    %c0_i32 = arith.constant 0 : i32
    %c0_i32_0 = arith.constant 0 : i32
    %c0_i32_1 = arith.constant 0 : i32
    return %arg0, %c0_i32, %c0_i32_0 : i32, i32, i32
  }
  func.func @transform_9(%arg0: i32) -> (i32, i32, i32) {
    %c0_i32 = arith.constant 0 : i32
    %c0_i32_0 = arith.constant 0 : i32
    %c0_i32_1 = arith.constant 0 : i32
    return %arg0, %c0_i32, %c0_i32_0 : i32, i32, i32
  }
}

module attributes {stable_mosaic.version = 11 : i64} {
  func.func @_stage3_kernel(%arg0: i32, %arg1: memref<1x8x256xf32, #tpu.memory_space<vmem>>, %arg2: memref<1x8x256xf32, #tpu.memory_space<vmem>>, %arg3: memref<8x1xf32, #tpu.memory_space<vmem>>, %arg4: memref<8x1xf32, #tpu.memory_space<vmem>>, %arg5: memref<1x8x256xf32, #tpu.memory_space<vmem>>) attributes {dimension_semantics = [#tpu.dimension_semantics<parallel>], iteration_bounds = array<i64: 2>, scalar_prefetch = 0 : i64, scratch_operands = 0 : i64, tpu.core_type = #tpu.core_type<tc>, window_params = [{transform_indices = @transform_0, window_bounds = array<i64: 1, 8, 256>}, {transform_indices = @transform_1, window_bounds = array<i64: 1, 8, 256>}, {pipeline_mode = #tpu.pipeline_mode<synchronous>, transform_indices = @transform_2, window_bounds = array<i64: 8, 1>}, {pipeline_mode = #tpu.pipeline_mode<synchronous>, transform_indices = @transform_3, window_bounds = array<i64: 8, 1>}, {transform_indices = @transform_4, window_bounds = array<i64: 1, 8, 256>}]} {
    %c0 = arith.constant 0 : index
    %c0_0 = arith.constant 0 : index
    %c0_1 = arith.constant 0 : index
    %0 = vector.load %arg1[%c0, %c0_0, %c0_1] : memref<1x8x256xf32, #tpu.memory_space<vmem>>, vector<1x8x256xf32>
    %1 = vector.shape_cast %0 : vector<1x8x256xf32> to vector<8x256xf32>
    %c0_2 = arith.constant 0 : index
    %c0_3 = arith.constant 0 : index
    %2 = vector.load %arg3[%c0_2, %c0_3] : memref<8x1xf32, #tpu.memory_space<vmem>>, vector<8x1xf32>
    %3 = vector.broadcast %2 : vector<8x1xf32> to vector<8x256xf32>
    %4 = arith.mulf %1, %3 : vector<8x256xf32>
    %c0_4 = arith.constant 0 : index
    %c0_5 = arith.constant 0 : index
    %5 = vector.load %arg4[%c0_4, %c0_5] : memref<8x1xf32, #tpu.memory_space<vmem>>, vector<8x1xf32>
    %6 = vector.broadcast %5 : vector<8x1xf32> to vector<8x256xf32>
    %7 = arith.addf %4, %6 : vector<8x256xf32>
    %c0_6 = arith.constant 0 : index
    %c0_7 = arith.constant 0 : index
    %c0_8 = arith.constant 0 : index
    %8 = vector.load %arg2[%c0_6, %c0_7, %c0_8] : memref<1x8x256xf32, #tpu.memory_space<vmem>>, vector<1x8x256xf32>
    %9 = vector.shape_cast %8 : vector<1x8x256xf32> to vector<8x256xf32>
    %10 = arith.addf %7, %9 : vector<8x256xf32>
    %cst = arith.constant 0.000000e+00 : f32
    %11 = vector.broadcast %cst : f32 to vector<8x256xf32>
    %12 = arith.maximumf %10, %11 : vector<8x256xf32>
    %c0_9 = arith.constant 0 : index
    %c0_10 = arith.constant 0 : index
    %c0_11 = arith.constant 0 : index
    %13 = vector.load %arg5[%c0_9, %c0_10, %c0_11] : memref<1x8x256xf32, #tpu.memory_space<vmem>>, vector<1x8x256xf32>
    %14 = vector.shape_cast %13 : vector<1x8x256xf32> to vector<8x256xf32>
    %15 = vector.shape_cast %12 : vector<8x256xf32> to vector<1x8x256xf32>
    tpu.vector_store %arg5[%c0_9, %c0_10, %c0_11], %15 {strides = array<i32>} : memref<1x8x256xf32, #tpu.memory_space<vmem>>, vector<1x8x256xf32>,
    return
  }
  func.func @transform_0(%arg0: i32) -> (i32, i32, i32) {
    %c0_i32 = arith.constant 0 : i32
    %c0_i32_0 = arith.constant 0 : i32
    %c0_i32_1 = arith.constant 0 : i32
    return %arg0, %c0_i32, %c0_i32_0 : i32, i32, i32
  }
  func.func @transform_1(%arg0: i32) -> (i32, i32, i32) {
    %c0_i32 = arith.constant 0 : i32
    %c0_i32_0 = arith.constant 0 : i32
    %c0_i32_1 = arith.constant 0 : i32
    return %arg0, %c0_i32, %c0_i32_0 : i32, i32, i32
  }
  func.func @transform_2(%arg0: i32) -> (i32, i32) {
    %c0_i32 = arith.constant 0 : i32
    %c0_i32_0 = arith.constant 0 : i32
    %c0_i32_1 = arith.constant 0 : i32
    return %c0_i32, %c0_i32_0 : i32, i32
  }
  func.func @transform_3(%arg0: i32) -> (i32, i32) {
    %c0_i32 = arith.constant 0 : i32
    %c0_i32_0 = arith.constant 0 : i32
    %c0_i32_1 = arith.constant 0 : i32
    return %c0_i32, %c0_i32_0 : i32, i32
  }
  func.func @transform_4(%arg0: i32) -> (i32, i32, i32) {
    %c0_i32 = arith.constant 0 : i32
    %c0_i32_0 = arith.constant 0 : i32
    %c0_i32_1 = arith.constant 0 : i32
    return %arg0, %c0_i32, %c0_i32_0 : i32, i32, i32
  }
}

</mosaic_0001>

<llo_original>
// kernel: non_bottleneck_1d_forward.5
$region0: #{non_bottleneck_1d_forward.5}
  #allocation0 [shape = 'u32[]', space=smem, size = 0x4, offset = 0x4, fixed_abs, tag = 'smem constant byte address 0x4 - core index']
  #allocation1 [shape = 'u32[144,128]{1,0:T(1,128)}', space=vmem, size = 0x12000, scoped, tag = 'internal scratch']
  %s0 = inlined_call_operand.hbm [shape: f32[2,8,256], index: 0, kind: input, shape index: {}, may-alias: {0,4}]
  %s1 = inlined_call_operand.hbm [shape: f32[2,8,256], index: 1, kind: input, shape index: {}]
  %s2 = inlined_call_operand.hbm [shape: f32[8,1], index: 2, kind: input, shape index: {}]
  %s3 = inlined_call_operand.hbm [shape: f32[8,1], index: 3, kind: input, shape index: {}]
  %s4 = inlined_call_operand.hbm [shape: f32[2,8,256], index: 4, kind: output, shape index: {}, may-alias: {0,4}]
  %s5 = sld [smem:[#allocation0]]
  $region65: #{non_bottleneck_1d_forward.5} parent=0
    _
  %s7 = ssub.s32 1, %s5
  %s8 = scalar_select 0, %s7, %s5
  $region1: #{non_bottleneck_1d_forward.5} parent=0
    #allocation2 [shape = 'u8[16384]{0}', space=vmem, size = 0x4000, scoped, tag = 'input window, operand 0']
    #allocation3 [shape = 's32[2]{0}', space=sflag, size = 0x8, scoped, tag = 'scoped memory for non_bottleneck_1d_forward.5']
    #allocation4 [shape = 's32[2]{0}', space=sflag, size = 0x8, scoped, tag = 'scoped memory for non_bottleneck_1d_forward.5']
    #allocation5 [shape = 'u8[16384]{0}', space=vmem, size = 0x4000, scoped, tag = 'input window, operand 1']
    #allocation6 [shape = 's32[2]{0}', space=sflag, size = 0x8, scoped, tag = 'scoped memory for non_bottleneck_1d_forward.5']
    #allocation7 [shape = 'u8[4096]{0}', space=vmem, size = 0x1000, scoped, tag = 'input window, operand 2, single buffered']
    #allocation8 [shape = 'u8[4096]{0}', space=vmem, size = 0x1000, scoped, tag = 'input window, operand 3, single buffered']
    #allocation9 [shape = 's32[1]{0}', space=sflag, size = 0x4, scoped, tag = 'scoped memory for non_bottleneck_1d_forward.5']
    #allocation10 [shape = 'u8[16384]{0}', space=vmem, size = 0x4000, scoped, tag = 'output window, operand 0']
    %9 = vsyncpa [#allocation3], 0
    %s10 = scalar_lea.sflag [#allocation3], 1
    %11 = vsyncpa %s10, 0
    %12 = vsyncpa [#allocation6], 0
    %s13 = scalar_lea.sflag [#allocation6], 1
    %14 = vsyncpa %s13, 0
    %15 = vsyncpa [#allocation9], 0
    %16 = vsyncpa [#allocation4], 0
    %s17 = scalar_lea.sflag [#allocation4], 1
    %18 = vsyncpa %s17, 0
    loop: start=0, step=1, limit=4
    $region2: #{non_bottleneck_1d_forward.5} parent=1 // loop_pre_header
      _
    $region3: #{non_bottleneck_1d_forward.5} parent=1 // loop_header
      %s20 = sphi 0, %s24
      %p21 = scmp.ge.s32.totalorder %s20, 4
      %s30 = sphi 0, %s32
      %s33 = sphi 0, %s30
      %s34 = sphi 0, %s33
      %s50 = sphi 0, %s34
      %s56 = sphi 0, %s58
      %s59 = sphi 0, %s56
      %s60 = sphi 0, %s59
      %s76 = sphi 0, %s60
      %s80 = sphi 0, %s80
      %s82 = sphi 0, %s80
      %s83 = sphi 0, %s82
      %s97 = sphi 0, %s83
      %s101 = sphi 0, %s101
      %s103 = sphi 0, %s101
      %s104 = sphi 0, %s103
      %s118 = sphi 0, %s104
      %s124 = sphi 0, %s126
      %s127 = sphi 0, %s124
      %s128 = sphi 0, %s127
      %s144 = sphi 0, %s128
    $region4: #{non_bottleneck_1d_forward.5} parent=1 // loop_header_branch
      %23 = sbr.rel (%p21) target = $region8
    $region5: #{non_bottleneck_1d_forward.5} parent=1 // loop_body
      %s25 = ssub.s32 %s20, 1
      %s26 = ssub.s32 %s20, 2
      %s27 = sadd.s32 %s20, 1
      %s28 = ssub.s32 %s20, %s27
      %p29 = scmp.eq.s32.totalorder %s28, 0
      %s31 = sadd.s32 %s30, 1
      %s32 = scalar_select %p29, %s30, %s31
      %p35 = pneg %p29
      %p36 = scmp.eq.s32.totalorder %s20, 1
      %p37 = por %p35, %p36
      %p38 = scmp.ne.s32.totalorder %s30, %s33
      %p39 = scmp.eq.s32.totalorder %s20, 0
      %p40 = por %p38, %p39
      %p41 = scmp.ne.s32.totalorder %s30, %s33
      %p42 = scmp.eq.s32.totalorder %s25, 1
      %p43 = por %p41, %p42
      %p44 = scmp.ne.s32.totalorder %s33, %s34
      %p45 = scmp.eq.s32.totalorder %s25, 0
      %p46 = por %p44, %p45
      %p47 = scmp.ne.s32.totalorder %s33, %s34
      %p48 = scmp.eq.s32.totalorder %s26, 1
      %p49 = por %p47, %p48
      %p51 = scmp.ne.s32.totalorder %s34, %s50
      %p52 = scmp.eq.s32.totalorder %s26, 0
      %p53 = por %p51, %p52
      %s54 = ssub.s32 %s20, %s27
      %p55 = scmp.eq.s32.totalorder %s54, 0
      %s57 = sadd.s32 %s56, 1
      %s58 = scalar_select %p55, %s56, %s57
      %p61 = pneg %p55
      %p62 = scmp.eq.s32.totalorder %s20, 1
      %p63 = por %p61, %p62
      %p64 = scmp.ne.s32.totalorder %s56, %s59
      %p65 = scmp.eq.s32.totalorder %s20, 0
      %p66 = por %p64, %p65
      %p67 = scmp.ne.s32.totalorder %s56, %s59
      %p68 = scmp.eq.s32.totalorder %s25, 1
      %p69 = por %p67, %p68
      %p70 = scmp.ne.s32.totalorder %s59, %s60
      %p71 = scmp.eq.s32.totalorder %s25, 0
      %p72 = por %p70, %p71
      %p73 = scmp.ne.s32.totalorder %s59, %s60
      %p74 = scmp.eq.s32.totalorder %s26, 1
      %p75 = por %p73, %p74
      %p77 = scmp.ne.s32.totalorder %s60, %s76
      %p78 = scmp.eq.s32.totalorder %s26, 0
      %p79 = por %p77, %p78
      %s81 = sadd.s32 %s80, 1
      %p84 = scmp.eq.s32.totalorder %s20, 1
      %p85 = scmp.ne.s32.totalorder %s80, %s82
      %p86 = scmp.eq.s32.totalorder %s20, 0
      %p87 = por %p85, %p86
      %p88 = scmp.ne.s32.totalorder %s80, %s82
      %p89 = scmp.eq.s32.totalorder %s25, 1
      %p90 = por %p88, %p89
      %p91 = scmp.ne.s32.totalorder %s82, %s83
      %p92 = scmp.eq.s32.totalorder %s25, 0
      %p93 = por %p91, %p92
      %p94 = scmp.ne.s32.totalorder %s82, %s83
      %p95 = scmp.eq.s32.totalorder %s26, 1
      %p96 = por %p94, %p95
      %p98 = scmp.ne.s32.totalorder %s83, %s97
      %p99 = scmp.eq.s32.totalorder %s26, 0
      %p100 = por %p98, %p99
      %s102 = sadd.s32 %s101, 1
      %p105 = scmp.eq.s32.totalorder %s20, 1
      %p106 = scmp.ne.s32.totalorder %s101, %s103
      %p107 = scmp.eq.s32.totalorder %s20, 0
      %p108 = por %p106, %p107
      %p109 = scmp.ne.s32.totalorder %s101, %s103
      %p110 = scmp.eq.s32.totalorder %s25, 1
      %p111 = por %p109, %p110
      %p112 = scmp.ne.s32.totalorder %s103, %s104
      %p113 = scmp.eq.s32.totalorder %s25, 0
      %p114 = por %p112, %p113
      %p115 = scmp.ne.s32.totalorder %s103, %s104
      %p116 = scmp.eq.s32.totalorder %s26, 1
      %p117 = por %p115, %p116
      %p119 = scmp.ne.s32.totalorder %s104, %s118
      %p120 = scmp.eq.s32.totalorder %s26, 0
      %p121 = por %p119, %p120
      %s122 = ssub.s32 %s20, %s27
      %p123 = scmp.eq.s32.totalorder %s122, 0
      %s125 = sadd.s32 %s124, 1
      %s126 = scalar_select %p123, %s124, %s125
      %p129 = pneg %p123
      %p130 = scmp.eq.s32.totalorder %s20, 1
      %p131 = por %p129, %p130
      %p132 = scmp.ne.s32.totalorder %s124, %s127
      %p133 = scmp.eq.s32.totalorder %s20, 0
      %p134 = por %p132, %p133
      %p135 = scmp.ne.s32.totalorder %s124, %s127
      %p136 = scmp.eq.s32.totalorder %s25, 1
      %p137 = por %p135, %p136
      %p138 = scmp.ne.s32.totalorder %s127, %s128
      %p139 = scmp.eq.s32.totalorder %s25, 0
      %p140 = por %p138, %p139
      %p141 = scmp.ne.s32.totalorder %s127, %s128
      %p142 = scmp.eq.s32.totalorder %s26, 1
      %p143 = por %p141, %p142
      %p145 = scmp.ne.s32.totalorder %s128, %s144
      %p146 = scmp.eq.s32.totalorder %s26, 0
      %p147 = por %p145, %p146
      %p148 = scmp.le.s32.totalorder 1, %s20
      %p149 = scmp.lt.s32.totalorder %s20, 3
      %p150 = pnand %p148, %p149
      %p151 = pneg %p150
      // Predicated region
      $region9: #{non_bottleneck_1d_forward.5} parent=5 // pred_check
        _
      $region10: #{non_bottleneck_1d_forward.5} parent=5 // pred_check_branch
        %153 = sbr.rel (%p150) target = $region12
      $region11: #{non_bottleneck_1d_forward.5} parent=5 // pred_region
        %s154 = ssub.s32 %s20, 1
        // Predicated region
        $region13: #{non_bottleneck_1d_forward.5} parent=11 // pred_check
          %p155 = pneg %p93
        $region14: #{non_bottleneck_1d_forward.5} parent=11 // pred_check_branch
          %157 = sbr.rel (%p155) target = $region16
        $region15: #{non_bottleneck_1d_forward.5} parent=11 // pred_region
          %s159 = ssub.s32 128, 128
          %160 = vsyncadd [#allocation6], %s159
          %s162 = sshll.u32 [#allocation7], 4
          %s163 = int_to_ptr.vmem [resolvable:$true] %s162
          %165 = dma.hbm_to_vmem [thread:$0]  %s2, 128, %s163, [#allocation6]
        $region16: #{non_bottleneck_1d_forward.5} parent=11 // pred_fallthru
          _
        // Predicated region
        $region17: #{non_bottleneck_1d_forward.5} parent=11 // pred_check
          %p166 = pneg %p114
        $region18: #{non_bottleneck_1d_forward.5} parent=11 // pred_check_branch
          %168 = sbr.rel (%p166) target = $region20
        $region19: #{non_bottleneck_1d_forward.5} parent=11 // pred_region
          %s170 = ssub.s32 128, 128
          %171 = vsyncadd [#allocation9], %s170
          %s173 = sshll.u32 [#allocation8], 4
          %s174 = int_to_ptr.vmem [resolvable:$true] %s173
          %176 = dma.hbm_to_vmem [thread:$0]  %s3, 128, %s174, [#allocation9]
        $region20: #{non_bottleneck_1d_forward.5} parent=11 // pred_fallthru
          _
      $region12: #{non_bottleneck_1d_forward.5} parent=5 // pred_fallthru
        _
      %p177 = scmp.lt.s32.totalorder %s20, 2
      // Predicated region
      $region21: #{non_bottleneck_1d_forward.5} parent=5 // pred_check
        %p178 = pneg %p177
      $region22: #{non_bottleneck_1d_forward.5} parent=5 // pred_check_branch
        %180 = sbr.rel (%p178) target = $region24
      $region23: #{non_bottleneck_1d_forward.5} parent=5 // pred_region
        // Predicated region
        $region25: #{non_bottleneck_1d_forward.5} parent=23 // pred_check
          %p181 = pneg %p40
        $region26: #{non_bottleneck_1d_forward.5} parent=23 // pred_check_branch
          %183 = sbr.rel (%p181) target = $region28
        $region27: #{non_bottleneck_1d_forward.5} parent=23 // pred_region
          %s184 = sand.u32 %s30, 1
          %s185 = scalar_lea.sflag [#allocation3], %s184
          %s186 = sand.u32 %s30, 1
          %s187 = smul.addr %s186, 16
          %s188 = scalar_lea.vmem [#allocation2], %s187
          %s190 = ssub.s32 256, 256
          %191 = vsyncadd %s185, %s190
          %s192 = smul.addr %s20, 2
          %s193 = smul.addr %s192, 128
          %s194 = scalar_lea.hbm %s0, %s193
          %s196 = sshll.u32 %s188, 4
          %s197 = int_to_ptr.vmem [resolvable:$true] %s196
          %199 = dma.hbm_to_vmem [thread:$0]  %s194, 256, %s197, %s185
        $region28: #{non_bottleneck_1d_forward.5} parent=23 // pred_fallthru
          _
        // Predicated region
        $region29: #{non_bottleneck_1d_forward.5} parent=23 // pred_check
          %p200 = pneg %p66
        $region30: #{non_bottleneck_1d_forward.5} parent=23 // pred_check_branch
          %202 = sbr.rel (%p200) target = $region32
        $region31: #{non_bottleneck_1d_forward.5} parent=23 // pred_region
          %s203 = sand.u32 %s20, 1
          %s204 = scalar_lea.sflag [#allocation6], %s203
          %s205 = sand.u32 %s56, 1
          %s206 = smul.addr %s205, 16
          %s207 = scalar_lea.vmem [#allocation5], %s206
          %s209 = ssub.s32 256, 256
          %210 = vsyncadd %s204, %s209
          %s211 = smul.addr %s20, 2
          %s212 = smul.addr %s211, 128
          %s213 = scalar_lea.hbm %s1, %s212
          %s215 = sshll.u32 %s207, 4
          %s216 = int_to_ptr.vmem [resolvable:$true] %s215
          %218 = dma.hbm_to_vmem [thread:$0]  %s213, 256, %s216, %s204
        $region32: #{non_bottleneck_1d_forward.5} parent=23 // pred_fallthru
          _
      $region24: #{non_bottleneck_1d_forward.5} parent=5 // pred_fallthru
        _
      %p219 = scmp.le.s32.totalorder 1, %s20
      %p220 = scmp.lt.s32.totalorder %s20, 3
      %p221 = pnand %p219, %p220
      %p222 = pneg %p221
      // Predicated region
      $region33: #{non_bottleneck_1d_forward.5} parent=5 // pred_check
        _
      $region34: #{non_bottleneck_1d_forward.5} parent=5 // pred_check_branch
        %224 = sbr.rel (%p221) target = $region36
      $region35: #{non_bottleneck_1d_forward.5} parent=5 // pred_region
        %s225 = ssub.s32 %s20, 1
        %s226 = sand.u32 %s33, 1
        %s227 = scalar_lea.sflag [#allocation3], %s226
        %s228 = sand.u32 %s33, 1
        %s229 = smul.addr %s228, 16
        %s230 = scalar_lea.vmem [#allocation2], %s229
        // Predicated region
        $region37: #{non_bottleneck_1d_forward.5} parent=35 // pred_check
          %p231 = pneg %p46
        $region38: #{non_bottleneck_1d_forward.5} parent=35 // pred_check_branch
          %233 = sbr.rel (%p231) target = $region40
        $region39: #{non_bottleneck_1d_forward.5} parent=35 // pred_region
          %234 = dma.done %s227, 256
        $region40: #{non_bottleneck_1d_forward.5} parent=35 // pred_fallthru
          _
        %s235 = sand.u32 %s25, 1
        %s236 = scalar_lea.sflag [#allocation6], %s235
        %s237 = sand.u32 %s59, 1
        %s238 = smul.addr %s237, 16
        %s239 = scalar_lea.vmem [#allocation5], %s238
        // Predicated region
        $region41: #{non_bottleneck_1d_forward.5} parent=35 // pred_check
          %p240 = pneg %p72
        $region42: #{non_bottleneck_1d_forward.5} parent=35 // pred_check_branch
          %242 = sbr.rel (%p240) target = $region44
        $region43: #{non_bottleneck_1d_forward.5} parent=35 // pred_region
          %243 = dma.done %s236, 256
        $region44: #{non_bottleneck_1d_forward.5} parent=35 // pred_fallthru
          _
        // Predicated region
        $region45: #{non_bottleneck_1d_forward.5} parent=35 // pred_check
          %p244 = pneg %p93
        $region46: #{non_bottleneck_1d_forward.5} parent=35 // pred_check_branch
          %246 = sbr.rel (%p244) target = $region48
        $region47: #{non_bottleneck_1d_forward.5} parent=35 // pred_region
          %247 = dma.done [#allocation6], 128
        $region48: #{non_bottleneck_1d_forward.5} parent=35 // pred_fallthru
          _
        // Predicated region
        $region49: #{non_bottleneck_1d_forward.5} parent=35 // pred_check
          %p248 = pneg %p114
        $region50: #{non_bottleneck_1d_forward.5} parent=35 // pred_check_branch
          %250 = sbr.rel (%p248) target = $region52
        $region51: #{non_bottleneck_1d_forward.5} parent=35 // pred_region
          %251 = dma.done [#allocation9], 128
        $region52: #{non_bottleneck_1d_forward.5} parent=35 // pred_fallthru
          _
        %s252 = sand.u32 %s33, 1
        %s253 = scalar_lea.sflag [#allocation3], %s252
        %s254 = sand.u32 %s33, 1
        %s255 = smul.addr %s254, 16
        %s256 = scalar_lea.vmem [#allocation2], %s255
        %p257 = pneg %p46
        %p258 = pneg %p43
        %s259 = sand.u32 %s25, 1
        %s260 = scalar_lea.sflag [#allocation6], %s259
        %s261 = sand.u32 %s59, 1
        %s262 = smul.addr %s261, 16
        %s263 = scalar_lea.vmem [#allocation5], %s262
        %p264 = pneg %p72
        %p265 = pneg %p69
        %p266 = pneg %p93
        %p267 = pneg %p90
        %p268 = pneg %p114
        %p269 = pneg %p111
        %p270 = pneg %p140
        %p271 = pneg %p137
        %s272 = sand.u32 %s127, 1
        %s273 = scalar_lea.sflag [#allocation4], %s272
        %s274 = sand.u32 %s127, 1
        %s275 = smul.addr %s274, 16
        %s276 = scalar_lea.vmem [#allocation10], %s275
        %v277 = vld [vmem:[%s230] sm:$0xff]
        %v278 = vld [vmem:[%s230 + $0x8] sm:$0xff]
        %v279 = vld [vmem:[#allocation7] sm:$0xff]
        %281 = vset.pattern.permute.xlu0 0
        %282 = vperm.xlu0 %281, %v279
        %v283 = vpop.permute.xlu0 %282
        %v285 = vmul.f32 %v277, %v283
        %v286 = vmul.f32 %v278, %v283
        %v287 = vld [vmem:[#allocation8] sm:$0xff]
        %289 = vset.pattern.permute.xlu0 0
        %290 = vperm.xlu0 %289, %v287
        %v291 = vpop.permute.xlu0 %290
        %v293 = vadd.f32 %v285, %v291
        %v294 = vadd.f32 %v286, %v291
        %v295 = vld [vmem:[%s239] sm:$0xff]
        %v296 = vld [vmem:[%s239 + $0x8] sm:$0xff]
        %v297 = vadd.f32 %v293, %v295
        %v298 = vadd.f32 %v294, %v296
        %v299 = vmax.f32 %v297, 0.0
        %v300 = vmax.f32 %v298, 0.0
        %301 = vst [vmem:[%s276] sm:$0xff] %v299
        %302 = vst [vmem:[%s276 + $0x8] sm:$0xff] %v300
        %s303 = sand.u32 %s127, 1
        %s304 = scalar_lea.sflag [#allocation4], %s303
        %s305 = sand.u32 %s127, 1
        %s306 = smul.addr %s305, 16
        %s307 = scalar_lea.vmem [#allocation10], %s306
        // Predicated region
        $region53: #{non_bottleneck_1d_forward.5} parent=35 // pred_check
          %p308 = pneg %p137
        $region54: #{non_bottleneck_1d_forward.5} parent=35 // pred_check_branch
          %310 = sbr.rel (%p308) target = $region56
        $region55: #{non_bottleneck_1d_forward.5} parent=35 // pred_region
          %s312 = ssub.s32 256, 256
          %313 = vsyncadd %s304, %s312
          %s314 = smul.addr %s25, 2
          %s315 = smul.addr %s314, 128
          %s316 = scalar_lea.hbm %s4, %s315
          %s318 = sshll.u32 %s307, 4
          %s319 = int_to_ptr.vmem [resolvable:$true] %s318
          %321 = dma.vmem_to_hbm [thread:$0]  %s319, 256, %s316, %s304
        $region56: #{non_bottleneck_1d_forward.5} parent=35 // pred_fallthru
          _
      $region36: #{non_bottleneck_1d_forward.5} parent=5 // pred_fallthru
        _
      %p322 = scmp.le.s32.totalorder 2, %s20
      // Predicated region
      $region57: #{non_bottleneck_1d_forward.5} parent=5 // pred_check
        %p323 = pneg %p322
      $region58: #{non_bottleneck_1d_forward.5} parent=5 // pred_check_branch
        %325 = sbr.rel (%p323) target = $region60
      $region59: #{non_bottleneck_1d_forward.5} parent=5 // pred_region
        %s326 = ssub.s32 %s20, 2
        // Predicated region
        $region61: #{non_bottleneck_1d_forward.5} parent=59 // pred_check
          %p327 = pneg %p143
        $region62: #{non_bottleneck_1d_forward.5} parent=59 // pred_check_branch
          %329 = sbr.rel (%p327) target = $region64
        $region63: #{non_bottleneck_1d_forward.5} parent=59 // pred_region
          %s330 = sand.u32 %s128, 1
          %s331 = scalar_lea.sflag [#allocation4], %s330
          %s332 = sand.u32 %s128, 1
          %s333 = smul.addr %s332, 16
          %s334 = scalar_lea.vmem [#allocation10], %s333
          %335 = dma.done %s331, 256
        $region64: #{non_bottleneck_1d_forward.5} parent=59 // pred_fallthru
          _
      $region60: #{non_bottleneck_1d_forward.5} parent=5 // pred_fallthru
        _
    $region6: #{non_bottleneck_1d_forward.5} parent=1 // loop_footer
      %s24 = sadd.s32 1, %s20
    $region7: #{non_bottleneck_1d_forward.5} parent=1 // loop_footer_branch
      %19 = sbr.rel target = $region3
    $region8: #{non_bottleneck_1d_forward.5} parent=1 // loop_exit
      _
    %336 = vsyncpa [#allocation3], 1
    %s337 = scalar_lea.sflag [#allocation3], 1
    %338 = vsyncpa %s337, 1
    %339 = vsyncpa [#allocation6], 1
    %s340 = scalar_lea.sflag [#allocation6], 1
    %341 = vsyncpa %s340, 1
    %342 = vsyncpa [#allocation9], 1
    %343 = vsyncpa [#allocation4], 1
    %s344 = scalar_lea.sflag [#allocation4], 1
    %345 = vsyncpa %s344, 1

// kernel: non_bottleneck_1d_forward.3
$region0: #{non_bottleneck_1d_forward.3}
  #allocation0 [shape = 'u32[]', space=smem, size = 0x4, offset = 0x4, fixed_abs, tag = 'smem constant byte address 0x4 - core index']
  #allocation1 [shape = 'u32[144,128]{1,0:T(1,128)}', space=vmem, size = 0x12000, scoped, tag = 'internal scratch']
  %s0 = inlined_call_operand.hbm [shape: f32[2,8,256], index: 0, kind: input, shape index: {}]
  %s1 = inlined_call_operand.hbm [shape: s32[1,256], index: 1, kind: input, shape index: {}]
  %s2 = inlined_call_operand.hbm [shape: f32[3,8,8], index: 2, kind: input, shape index: {}]
  %s3 = inlined_call_operand.hbm [shape: f32[8,1], index: 3, kind: input, shape index: {}]
  %s4 = inlined_call_operand.hbm [shape: f32[3,8,8], index: 4, kind: input, shape index: {}]
  %s5 = inlined_call_operand.hbm [shape: f32[8,1], index: 5, kind: input, shape index: {}]
  %s6 = inlined_call_operand.hbm [shape: f32[2,8,256], index: 6, kind: output, shape index: {0}]
  %s7 = inlined_call_operand.hbm [shape: f32[2,8,2], index: 7, kind: output, shape index: {1}]
  %8 = xla_tuple %s6, %s7
  %s9 = sld [smem:[#allocation0]]
  $region89: #{non_bottleneck_1d_forward.3} parent=0
    _
  %s11 = ssub.s32 1, %s9
  %s12 = scalar_select 0, %s11, %s9
  $region1: #{non_bottleneck_1d_forward.3} parent=0
    #allocation2 [shape = 'u8[16384]{0}', space=vmem, size = 0x4000, scoped, tag = 'input window, operand 0']
    #allocation3 [shape = 's32[2]{0}', space=sflag, size = 0x8, scoped, tag = 'scoped memory for non_bottleneck_1d_forward.3']
    #allocation4 [shape = 's32[2]{0}', space=sflag, size = 0x8, scoped, tag = 'scoped memory for non_bottleneck_1d_forward.3']
    #allocation5 [shape = 'u8[1024]{0}', space=vmem, size = 0x400, scoped, tag = 'input window, operand 1, single buffered']
    #allocation6 [shape = 's32[1]{0}', space=sflag, size = 0x4, scoped, tag = 'scoped memory for non_bottleneck_1d_forward.3']
    #allocation7 [shape = 'u8[12288]{0}', space=vmem, size = 0x3000, scoped, tag = 'input window, operand 2, single buffered']
    #allocation8 [shape = 'u8[4096]{0}', space=vmem, size = 0x1000, scoped, tag = 'input window, operand 3, single buffered']
    #allocation9 [shape = 's32[1]{0}', space=sflag, size = 0x4, scoped, tag = 'scoped memory for non_bottleneck_1d_forward.3']
    #allocation10 [shape = 'u8[12288]{0}', space=vmem, size = 0x3000, scoped, tag = 'input window, operand 4, single buffered']
    #allocation11 [shape = 'u8[4096]{0}', space=vmem, size = 0x1000, scoped, tag = 'input window, operand 5, single buffered']
    #allocation12 [shape = 's32[1]{0}', space=sflag, size = 0x4, scoped, tag = 'scoped memory for non_bottleneck_1d_forward.3']
    #allocation13 [shape = 'u8[16384]{0}', space=vmem, size = 0x4000, scoped, tag = 'output window, operand 0']
    #allocation14 [shape = 'u8[8192]{0}', space=vmem, size = 0x2000, scoped, tag = 'output window, operand 1']
    #allocation15 [shape = 's32[2]{0}', space=sflag, size = 0x8, scoped, tag = 'scoped memory for non_bottleneck_1d_forward.3']
    %13 = vsyncpa [#allocation3], 0
    %s14 = scalar_lea.sflag [#allocation3], 1
    %15 = vsyncpa %s14, 0
    %16 = vsyncpa [#allocation6], 0
    %17 = vsyncpa [#allocation9], 0
    %18 = vsyncpa [#allocation12], 0
    %19 = vsyncpa [#allocation4], 0
    %s20 = scalar_lea.sflag [#allocation4], 1
    %21 = vsyncpa %s20, 0
    %22 = vsyncpa [#allocation15], 0
    %s23 = scalar_lea.sflag [#allocation15], 1
    %24 = vsyncpa %s23, 0
    loop: start=0, step=1, limit=4
    $region2: #{non_bottleneck_1d_forward.3} parent=1 // loop_pre_header
      _
    $region3: #{non_bottleneck_1d_forward.3} parent=1 // loop_header
      %s26 = sphi 0, %s30
      %p27 = scmp.ge.s32.totalorder %s26, 4
      %s36 = sphi 0, %s38
      %s39 = sphi 0, %s36
      %s40 = sphi 0, %s39
      %s56 = sphi 0, %s40
      %s60 = sphi 0, %s60
      %s62 = sphi 0, %s60
      %s63 = sphi 0, %s62
      %s77 = sphi 0, %s63
      %s81 = sphi 0, %s81
      %s83 = sphi 0, %s81
      %s84 = sphi 0, %s83
      %s98 = sphi 0, %s84
      %s102 = sphi 0, %s102
      %s104 = sphi 0, %s102
      %s105 = sphi 0, %s104
      %s119 = sphi 0, %s105
      %s123 = sphi 0, %s123
      %s125 = sphi 0, %s123
      %s126 = sphi 0, %s125
      %s140 = sphi 0, %s126
      %s144 = sphi 0, %s144
      %s146 = sphi 0, %s144
      %s147 = sphi 0, %s146
      %s161 = sphi 0, %s147
      %s167 = sphi 0, %s169
      %s170 = sphi 0, %s167
      %s171 = sphi 0, %s170
      %s187 = sphi 0, %s171
      %s193 = sphi 0, %s195
      %s196 = sphi 0, %s193
      %s197 = sphi 0, %s196
      %s213 = sphi 0, %s197
    $region4: #{non_bottleneck_1d_forward.3} parent=1 // loop_header_branch
      %29 = sbr.rel (%p27) target = $region8
    $region5: #{non_bottleneck_1d_forward.3} parent=1 // loop_body
      %s31 = ssub.s32 %s26, 1
      %s32 = ssub.s32 %s26, 2
      %s33 = sadd.s32 %s26, 1
      %s34 = ssub.s32 %s26, %s33
      %p35 = scmp.eq.s32.totalorder %s34, 0
      %s37 = sadd.s32 %s36, 1
      %s38 = scalar_select %p35, %s36, %s37
      %p41 = pneg %p35
      %p42 = scmp.eq.s32.totalorder %s26, 1
      %p43 = por %p41, %p42
      %p44 = scmp.ne.s32.totalorder %s36, %s39
      %p45 = scmp.eq.s32.totalorder %s26, 0
      %p46 = por %p44, %p45
      %p47 = scmp.ne.s32.totalorder %s36, %s39
      %p48 = scmp.eq.s32.totalorder %s31, 1
      %p49 = por %p47, %p48
      %p50 = scmp.ne.s32.totalorder %s39, %s40
      %p51 = scmp.eq.s32.totalorder %s31, 0
      %p52 = por %p50, %p51
      %p53 = scmp.ne.s32.totalorder %s39, %s40
      %p54 = scmp.eq.s32.totalorder %s32, 1
      %p55 = por %p53, %p54
      %p57 = scmp.ne.s32.totalorder %s40, %s56
      %p58 = scmp.eq.s32.totalorder %s32, 0
      %p59 = por %p57, %p58
      %s61 = sadd.s32 %s60, 1
      %p64 = scmp.eq.s32.totalorder %s26, 1
      %p65 = scmp.ne.s32.totalorder %s60, %s62
      %p66 = scmp.eq.s32.totalorder %s26, 0
      %p67 = por %p65, %p66
      %p68 = scmp.ne.s32.totalorder %s60, %s62
      %p69 = scmp.eq.s32.totalorder %s31, 1
      %p70 = por %p68, %p69
      %p71 = scmp.ne.s32.totalorder %s62, %s63
      %p72 = scmp.eq.s32.totalorder %s31, 0
      %p73 = por %p71, %p72
      %p74 = scmp.ne.s32.totalorder %s62, %s63
      %p75 = scmp.eq.s32.totalorder %s32, 1
      %p76 = por %p74, %p75
      %p78 = scmp.ne.s32.totalorder %s63, %s77
      %p79 = scmp.eq.s32.totalorder %s32, 0
      %p80 = por %p78, %p79
      %s82 = sadd.s32 %s81, 1
      %p85 = scmp.eq.s32.totalorder %s26, 1
      %p86 = scmp.ne.s32.totalorder %s81, %s83
      %p87 = scmp.eq.s32.totalorder %s26, 0
      %p88 = por %p86, %p87
      %p89 = scmp.ne.s32.totalorder %s81, %s83
      %p90 = scmp.eq.s32.totalorder %s31, 1
      %p91 = por %p89, %p90
      %p92 = scmp.ne.s32.totalorder %s83, %s84
      %p93 = scmp.eq.s32.totalorder %s31, 0
      %p94 = por %p92, %p93
      %p95 = scmp.ne.s32.totalorder %s83, %s84
      %p96 = scmp.eq.s32.totalorder %s32, 1
      %p97 = por %p95, %p96
      %p99 = scmp.ne.s32.totalorder %s84, %s98
      %p100 = scmp.eq.s32.totalorder %s32, 0
      %p101 = por %p99, %p100
      %s103 = sadd.s32 %s102, 1
      %p106 = scmp.eq.s32.totalorder %s26, 1
      %p107 = scmp.ne.s32.totalorder %s102, %s104
      %p108 = scmp.eq.s32.totalorder %s26, 0
      %p109 = por %p107, %p108
      %p110 = scmp.ne.s32.totalorder %s102, %s104
      %p111 = scmp.eq.s32.totalorder %s31, 1
      %p112 = por %p110, %p111
      %p113 = scmp.ne.s32.totalorder %s104, %s105
      %p114 = scmp.eq.s32.totalorder %s31, 0
      %p115 = por %p113, %p114
      %p116 = scmp.ne.s32.totalorder %s104, %s105
      %p117 = scmp.eq.s32.totalorder %s32, 1
      %p118 = por %p116, %p117
      %p120 = scmp.ne.s32.totalorder %s105, %s119
      %p121 = scmp.eq.s32.totalorder %s32, 0
      %p122 = por %p120, %p121
      %s124 = sadd.s32 %s123, 1
      %p127 = scmp.eq.s32.totalorder %s26, 1
      %p128 = scmp.ne.s32.totalorder %s123, %s125
      %p129 = scmp.eq.s32.totalorder %s26, 0
      %p130 = por %p128, %p129
      %p131 = scmp.ne.s32.totalorder %s123, %s125
      %p132 = scmp.eq.s32.totalorder %s31, 1
      %p133 = por %p131, %p132
      %p134 = scmp.ne.s32.totalorder %s125, %s126
      %p135 = scmp.eq.s32.totalorder %s31, 0
      %p136 = por %p134, %p135
      %p137 = scmp.ne.s32.totalorder %s125, %s126
      %p138 = scmp.eq.s32.totalorder %s32, 1
      %p139 = por %p137, %p138
      %p141 = scmp.ne.s32.totalorder %s126, %s140
      %p142 = scmp.eq.s32.totalorder %s32, 0
      %p143 = por %p141, %p142
      %s145 = sadd.s32 %s144, 1
      %p148 = scmp.eq.s32.totalorder %s26, 1
      %p149 = scmp.ne.s32.totalorder %s144, %s146
      %p150 = scmp.eq.s32.totalorder %s26, 0
      %p151 = por %p149, %p150
      %p152 = scmp.ne.s32.totalorder %s144, %s146
      %p153 = scmp.eq.s32.totalorder %s31, 1
      %p154 = por %p152, %p153
      %p155 = scmp.ne.s32.totalorder %s146, %s147
      %p156 = scmp.eq.s32.totalorder %s31, 0
      %p157 = por %p155, %p156
      %p158 = scmp.ne.s32.totalorder %s146, %s147
      %p159 = scmp.eq.s32.totalorder %s32, 1
      %p160 = por %p158, %p159
      %p162 = scmp.ne.s32.totalorder %s147, %s161
      %p163 = scmp.eq.s32.totalorder %s32, 0
      %p164 = por %p162, %p163
      %s165 = ssub.s32 %s26, %s33
      %p166 = scmp.eq.s32.totalorder %s165, 0
      %s168 = sadd.s32 %s167, 1
      %s169 = scalar_select %p166, %s167, %s168
      %p172 = pneg %p166
      %p173 = scmp.eq.s32.totalorder %s26, 1
      %p174 = por %p172, %p173
      %p175 = scmp.ne.s32.totalorder %s167, %s170
      %p176 = scmp.eq.s32.totalorder %s26, 0
      %p177 = por %p175, %p176
      %p178 = scmp.ne.s32.totalorder %s167, %s170
      %p179 = scmp.eq.s32.totalorder %s31, 1
      %p180 = por %p178, %p179
      %p181 = scmp.ne.s32.totalorder %s170, %s171
      %p182 = scmp.eq.s32.totalorder %s31, 0
      %p183 = por %p181, %p182
      %p184 = scmp.ne.s32.totalorder %s170, %s171
      %p185 = scmp.eq.s32.totalorder %s32, 1
      %p186 = por %p184, %p185
      %p188 = scmp.ne.s32.totalorder %s171, %s187
      %p189 = scmp.eq.s32.totalorder %s32, 0
      %p190 = por %p188, %p189
      %s191 = ssub.s32 %s26, %s33
      %p192 = scmp.eq.s32.totalorder %s191, 0
      %s194 = sadd.s32 %s193, 1
      %s195 = scalar_select %p192, %s193, %s194
      %p198 = pneg %p192
      %p199 = scmp.eq.s32.totalorder %s26, 1
      %p200 = por %p198, %p199
      %p201 = scmp.ne.s32.totalorder %s193, %s196
      %p202 = scmp.eq.s32.totalorder %s26, 0
      %p203 = por %p201, %p202
      %p204 = scmp.ne.s32.totalorder %s193, %s196
      %p205 = scmp.eq.s32.totalorder %s31, 1
      %p206 = por %p204, %p205
      %p207 = scmp.ne.s32.totalorder %s196, %s197
      %p208 = scmp.eq.s32.totalorder %s31, 0
      %p209 = por %p207, %p208
      %p210 = scmp.ne.s32.totalorder %s196, %s197
      %p211 = scmp.eq.s32.totalorder %s32, 1
      %p212 = por %p210, %p211
      %p214 = scmp.ne.s32.totalorder %s197, %s213
      %p215 = scmp.eq.s32.totalorder %s32, 0
      %p216 = por %p214, %p215
      %p217 = scmp.le.s32.totalorder 1, %s26
      %p218 = scmp.lt.s32.totalorder %s26, 3
      %p219 = pnand %p217, %p218
      %p220 = pneg %p219
      // Predicated region
      $region9: #{non_bottleneck_1d_forward.3} parent=5 // pred_check
        _
      $region10: #{non_bottleneck_1d_forward.3} parent=5 // pred_check_branch
        %222 = sbr.rel (%p219) target = $region12
      $region11: #{non_bottleneck_1d_forward.3} parent=5 // pred_region
        %s223 = ssub.s32 %s26, 1
        // Predicated region
        $region13: #{non_bottleneck_1d_forward.3} parent=11 // pred_check
          %p224 = pneg %p73
        $region14: #{non_bottleneck_1d_forward.3} parent=11 // pred_check_branch
          %226 = sbr.rel (%p224) target = $region16
        $region15: #{non_bottleneck_1d_forward.3} parent=11 // pred_region
          %s228 = ssub.s32 32, 32
          %229 = vsyncadd [#allocation6], %s228
          %s231 = sshll.u32 [#allocation5], 4
          %s232 = int_to_ptr.vmem [resolvable:$true] %s231
          %234 = dma.hbm_to_vmem [thread:$0]  %s1, 32, %s232, [#allocation6]
        $region16: #{non_bottleneck_1d_forward.3} parent=11 // pred_fallthru
          _
        // Predicated region
        $region17: #{non_bottleneck_1d_forward.3} parent=11 // pred_check
          %p235 = pneg %p94
        $region18: #{non_bottleneck_1d_forward.3} parent=11 // pred_check_branch
          %237 = sbr.rel (%p235) target = $region20
        $region19: #{non_bottleneck_1d_forward.3} parent=11 // pred_region
          %s239 = ssub.s32 384, 384
          %240 = vsyncadd [#allocation6], %s239
          %s241 = sshll.u32 [#allocation7], 4
          %s242 = int_to_ptr.vmem [resolvable:$true] %s241
          %247 = dma.hbm_to_vmem [thread:$0]  %s2, 384, %s242, [#allocation6], 128, 128, 8
        $region20: #{non_bottleneck_1d_forward.3} parent=11 // pred_fallthru
          _
        // Predicated region
        $region21: #{non_bottleneck_1d_forward.3} parent=11 // pred_check
          %p248 = pneg %p115
        $region22: #{non_bottleneck_1d_forward.3} parent=11 // pred_check_branch
          %250 = sbr.rel (%p248) target = $region24
        $region23: #{non_bottleneck_1d_forward.3} parent=11 // pred_region
          %s252 = ssub.s32 128, 128
          %253 = vsyncadd [#allocation9], %s252
          %s255 = sshll.u32 [#allocation8], 4
          %s256 = int_to_ptr.vmem [resolvable:$true] %s255
          %258 = dma.hbm_to_vmem [thread:$0]  %s3, 128, %s256, [#allocation9]
        $region24: #{non_bottleneck_1d_forward.3} parent=11 // pred_fallthru
          _
        // Predicated region
        $region25: #{non_bottleneck_1d_forward.3} parent=11 // pred_check
          %p259 = pneg %p136
        $region26: #{non_bottleneck_1d_forward.3} parent=11 // pred_check_branch
          %261 = sbr.rel (%p259) target = $region28
        $region27: #{non_bottleneck_1d_forward.3} parent=11 // pred_region
          %s263 = ssub.s32 384, 384
          %264 = vsyncadd [#allocation9], %s263
          %s265 = sshll.u32 [#allocation10], 4
          %s266 = int_to_ptr.vmem [resolvable:$true] %s265
          %271 = dma.hbm_to_vmem [thread:$0]  %s4, 384, %s266, [#allocation9], 128, 128, 8
        $region28: #{non_bottleneck_1d_forward.3} parent=11 // pred_fallthru
          _
        // Predicated region
        $region29: #{non_bottleneck_1d_forward.3} parent=11 // pred_check
          %p272 = pneg %p157
        $region30: #{non_bottleneck_1d_forward.3} parent=11 // pred_check_branch
          %274 = sbr.rel (%p272) target = $region32
        $region31: #{non_bottleneck_1d_forward.3} parent=11 // pred_region
          %s276 = ssub.s32 128, 128
          %277 = vsyncadd [#allocation12], %s276
          %s279 = sshll.u32 [#allocation11], 4
          %s280 = int_to_ptr.vmem [resolvable:$true] %s279
          %282 = dma.hbm_to_vmem [thread:$0]  %s5, 128, %s280, [#allocation12]
        $region32: #{non_bottleneck_1d_forward.3} parent=11 // pred_fallthru
          _
      $region12: #{non_bottleneck_1d_forward.3} parent=5 // pred_fallthru
        _
      %p283 = scmp.lt.s32.totalorder %s26, 2
      // Predicated region
      $region33: #{non_bottleneck_1d_forward.3} parent=5 // pred_check
        %p284 = pneg %p283
      $region34: #{non_bottleneck_1d_forward.3} parent=5 // pred_check_branch
        %286 = sbr.rel (%p284) target = $region36
      $region35: #{non_bottleneck_1d_forward.3} parent=5 // pred_region
        // Predicated region
        $region37: #{non_bottleneck_1d_forward.3} parent=35 // pred_check
          %p287 = pneg %p46
        $region38: #{non_bottleneck_1d_forward.3} parent=35 // pred_check_branch
          %289 = sbr.rel (%p287) target = $region40
        $region39: #{non_bottleneck_1d_forward.3} parent=35 // pred_region
          %s290 = sand.u32 %s36, 1
          %s291 = scalar_lea.sflag [#allocation3], %s290
          %s292 = sand.u32 %s36, 1
          %s293 = smul.addr %s292, 16
          %s294 = scalar_lea.vmem [#allocation2], %s293
          %s296 = ssub.s32 256, 256
          %297 = vsyncadd %s291, %s296
          %s298 = smul.addr %s26, 2
          %s299 = smul.addr %s298, 128
          %s300 = scalar_lea.hbm %s0, %s299
          %s302 = sshll.u32 %s294, 4
          %s303 = int_to_ptr.vmem [resolvable:$true] %s302
          %305 = dma.hbm_to_vmem [thread:$0]  %s300, 256, %s303, %s291
        $region40: #{non_bottleneck_1d_forward.3} parent=35 // pred_fallthru
          _
      $region36: #{non_bottleneck_1d_forward.3} parent=5 // pred_fallthru
        _
      %p306 = scmp.le.s32.totalorder 1, %s26
      %p307 = scmp.lt.s32.totalorder %s26, 3
      %p308 = pnand %p306, %p307
      %p309 = pneg %p308
      // Predicated region
      $region41: #{non_bottleneck_1d_forward.3} parent=5 // pred_check
        _
      $region42: #{non_bottleneck_1d_forward.3} parent=5 // pred_check_branch
        %311 = sbr.rel (%p308) target = $region44
      $region43: #{non_bottleneck_1d_forward.3} parent=5 // pred_region
        %s312 = ssub.s32 %s26, 1
        %s313 = sand.u32 %s39, 1
        %s314 = scalar_lea.sflag [#allocation3], %s313
        %s315 = sand.u32 %s39, 1
        %s316 = smul.addr %s315, 16
        %s317 = scalar_lea.vmem [#allocation2], %s316
        // Predicated region
        $region45: #{non_bottleneck_1d_forward.3} parent=43 // pred_check
          %p318 = pneg %p52
        $region46: #{non_bottleneck_1d_forward.3} parent=43 // pred_check_branch
          %320 = sbr.rel (%p318) target = $region48
        $region47: #{non_bottleneck_1d_forward.3} parent=43 // pred_region
          %321 = dma.done %s314, 256
        $region48: #{non_bottleneck_1d_forward.3} parent=43 // pred_fallthru
          _
        // Predicated region
        $region49: #{non_bottleneck_1d_forward.3} parent=43 // pred_check
          %p322 = pneg %p73
        $region50: #{non_bottleneck_1d_forward.3} parent=43 // pred_check_branch
          %324 = sbr.rel (%p322) target = $region52
        $region51: #{non_bottleneck_1d_forward.3} parent=43 // pred_region
          %325 = dma.done [#allocation6], 32
        $region52: #{non_bottleneck_1d_forward.3} parent=43 // pred_fallthru
          _
        // Predicated region
        $region53: #{non_bottleneck_1d_forward.3} parent=43 // pred_check
          %p326 = pneg %p94
        $region54: #{non_bottleneck_1d_forward.3} parent=43 // pred_check_branch
          %328 = sbr.rel (%p326) target = $region56
        $region55: #{non_bottleneck_1d_forward.3} parent=43 // pred_region
          %329 = dma.done [#allocation6], 384
        $region56: #{non_bottleneck_1d_forward.3} parent=43 // pred_fallthru
          _
        // Predicated region
        $region57: #{non_bottleneck_1d_forward.3} parent=43 // pred_check
          %p330 = pneg %p115
        $region58: #{non_bottleneck_1d_forward.3} parent=43 // pred_check_branch
          %332 = sbr.rel (%p330) target = $region60
        $region59: #{non_bottleneck_1d_forward.3} parent=43 // pred_region
          %333 = dma.done [#allocation9], 128
        $region60: #{non_bottleneck_1d_forward.3} parent=43 // pred_fallthru
          _
        // Predicated region
        $region61: #{non_bottleneck_1d_forward.3} parent=43 // pred_check
          %p334 = pneg %p136
        $region62: #{non_bottleneck_1d_forward.3} parent=43 // pred_check_branch
          %336 = sbr.rel (%p334) target = $region64
        $region63: #{non_bottleneck_1d_forward.3} parent=43 // pred_region
          %337 = dma.done [#allocation9], 384
        $region64: #{non_bottleneck_1d_forward.3} parent=43 // pred_fallthru
          _
        // Predicated region
        $region65: #{non_bottleneck_1d_forward.3} parent=43 // pred_check
          %p338 = pneg %p157
        $region66: #{non_bottleneck_1d_forward.3} parent=43 // pred_check_branch
          %340 = sbr.rel (%p338) target = $region68
        $region67: #{non_bottleneck_1d_forward.3} parent=43 // pred_region
          %341 = dma.done [#allocation12], 128
        $region68: #{non_bottleneck_1d_forward.3} parent=43 // pred_fallthru
          _
        %s342 = sand.u32 %s39, 1
        %s343 = scalar_lea.sflag [#allocation3], %s342
        %s344 = sand.u32 %s39, 1
        %s345 = smul.addr %s344, 16
        %s346 = scalar_lea.vmem [#allocation2], %s345
        %p347 = pneg %p52
        %p348 = pneg %p49
        %p349 = pneg %p73
        %p350 = pneg %p70
        %p351 = pneg %p94
        %p352 = pneg %p91
        %p353 = pneg %p115
        %p354 = pneg %p112
        %p355 = pneg %p136
        %p356 = pneg %p133
        %p357 = pneg %p157
        %p358 = pneg %p154
        %p359 = pneg %p183
        %p360 = pneg %p180
        %s361 = sand.u32 %s170, 1
        %s362 = scalar_lea.sflag [#allocation4], %s361
        %s363 = sand.u32 %s170, 1
        %s364 = smul.addr %s363, 16
        %s365 = scalar_lea.vmem [#allocation13], %s364
        %p366 = pneg %p209
        %p367 = pneg %p206
        %s368 = sand.u32 %s196, 1
        %s369 = scalar_lea.sflag [#allocation15], %s368
        %s370 = sand.u32 %s196, 1
        %s371 = smul.addr %s370, 8
        %s372 = scalar_lea.vmem [#allocation14], %s371
        %v373 = vld [vmem:[%s317] sm:$0xff]
        %v374 = vld [vmem:[%s317 + $0x8] sm:$0xff]
        %v375 = vld [vmem:[#allocation5] sm:$0x3]
        %s376 = scalar_lea.vmem [#allocation7], 8
        %v377 = vld [vmem:[%s376] sm:$0xff]
        %v378 = vld [vmem:[#allocation7] sm:$0xff]
        %381 = vrot.lane.b32.xlu0 %v373, 16
        %v382 = vpop.permute.xlu0 %381
        %383 = vrot.lane.b32.xlu0 %v374, 16
        %v384 = vpop.permute.xlu0 %383
        %vm385 = vcmask 130048
        %v386 = vsel %vm385, %v382, %v384
        %v389 = vsel %vm385, 0.0, %v382
        %vm390 = vcmask 64512
        %v392 = vsel %vm390, %v378, 0
        %394 = vmatprep.subr.mxu0 %v386
        %395 = vmatpush1.msra.mxu0 %v389
        %396 = vmatprep.subr.mxu0 0.0
        %397 = vmatpush1.msra.mxu0 0.0
        %398 = vmatprep.subr.mxu0 0.0
        %399 = vmatpush1.msra.mxu0 0.0
        %400 = vmatprep.subr.mxu0 0.0
        %401 = vmatpush1.msra.mxu0 0.0
        %402 = vmatprep.subr.mxu0 0.0
        %403 = vmatpush1.msra.mxu0 0.0
        %404 = vmatprep.subr.mxu0 0.0
        %405 = vmatpush1.msra.mxu0 0.0
        %406 = vmatprep.subr.mxu0 0.0
        %407 = vmatpush1.msra.mxu0 0.0
        %408 = vmatprep.subr.mxu0 0.0
        %409 = vmatpush1.msra.mxu0 0.0
        %410 = vmatprep.subr.mxu0 0.0
        %411 = vmatpush1.msra.mxu0 0.0
        %412 = vmatprep.subr.mxu0 0.0
        %413 = vmatpush1.msra.mxu0 0.0
        %414 = vmatprep.subr.mxu0 0.0
        %415 = vmatpush1.msra.mxu0 0.0
        %416 = vmatprep.subr.mxu0 0.0
        %417 = vmatpush1.msra.mxu0 0.0
        %418 = vmatprep.subr.mxu0 0.0
        %419 = vmatpush1.msra.mxu0 0.0
        %420 = vmatprep.subr.mxu0 0.0
        %421 = vmatpush1.msra.mxu0 0.0
        %422 = vmatprep.subr.mxu0 0.0
        %423 = vmatpush1.msra.mxu0 0.0
        %424 = vmatprep.subr.mxu0 0.0
        %425 = vmatpush1.msra.mxu0 0.0
        %426 = vmatprep.subr.mxu0 0.0
        %427 = vmatpush1.msra.mxu0 0.0
        %428 = vmatprep.subr.mxu0 0.0
        %429 = vmatpush1.msra.mxu0 0.0
        %430 = vmatprep.subr.mxu0 0.0
        %431 = vmatpush1.msra.mxu0 0.0
        %432 = vmatprep.subr.mxu0 0.0
        %433 = vmatpush1.msra.mxu0 0.0
        %434 = vmatprep.subr.mxu0 0.0
        %435 = vmatpush1.msra.mxu0 0.0
        %436 = vmatprep.subr.mxu0 0.0
        %437 = vmatpush1.msra.mxu0 0.0
        %438 = vmatprep.subr.mxu0 0.0
        %439 = vmatpush1.msra.mxu0 0.0
        %440 = vmatprep.subr.mxu0 0.0
        %441 = vmatpush1.msra.mxu0 0.0
        %442 = vmatprep.subr.mxu0 0.0
        %443 = vmatpush1.msra.mxu0 0.0
        %444 = vmatprep.subr.mxu0 0.0
        %445 = vmatpush1.msra.mxu0 0.0
        %446 = vmatprep.subr.mxu0 0.0
        %447 = vmatpush1.msra.mxu0 0.0
        %448 = vmatprep.subr.mxu0 0.0
        %449 = vmatpush1.msra.mxu0 0.0
        %450 = vmatprep.subr.mxu0 0.0
        %451 = vmatpush1.msra.mxu0 0.0
        %452 = vmatprep.subr.mxu0 0.0
        %453 = vmatpush1.msra.mxu0 0.0
        %454 = vmatprep.subr.mxu0 0.0
        %455 = vmatpush1.msra.mxu0 0.0
        %456 = vmatprep.subr.mxu0 0.0
        %457 = vmatpush1.msra.mxu0 0.0
        %458 = vmatprep.mubr.f32.mxu0 0.0
        %459 = vmatmul.mubr.f32.gmra.mrb[0].mxu0 %v392
        %v460 = vpop.f32.mrb[0].mxu0
        %v461 = vadd.f32 0.0, %v460
        %v462 = vpop.f32.mrb[0].mxu0
        %v463 = vadd.f32 0.0, %v462
        %464 = vdwg.mxu0
        %v466 = vsel %vm390, %v377, 0
        %468 = vmatprep.subr.mxu0 %v374
        %469 = vmatpush1.msra.mxu0 %v373
        %470 = vmatprep.subr.mxu0 0.0
        %471 = vmatpush1.msra.mxu0 0.0
        %472 = vmatprep.subr.mxu0 0.0
        %473 = vmatpush1.msra.mxu0 0.0
        %474 = vmatprep.subr.mxu0 0.0
        %475 = vmatpush1.msra.mxu0 0.0
        %476 = vmatprep.subr.mxu0 0.0
        %477 = vmatpush1.msra.mxu0 0.0
        %478 = vmatprep.subr.mxu0 0.0
        %479 = vmatpush1.msra.mxu0 0.0
        %480 = vmatprep.subr.mxu0 0.0
        %481 = vmatpush1.msra.mxu0 0.0
        %482 = vmatprep.subr.mxu0 0.0
        %483 = vmatpush1.msra.mxu0 0.0
        %484 = vmatprep.subr.mxu0 0.0
        %485 = vmatpush1.msra.mxu0 0.0
        %486 = vmatprep.subr.mxu0 0.0
        %487 = vmatpush1.msra.mxu0 0.0
        %488 = vmatprep.subr.mxu0 0.0
        %489 = vmatpush1.msra.mxu0 0.0
        %490 = vmatprep.subr.mxu0 0.0
        %491 = vmatpush1.msra.mxu0 0.0
        %492 = vmatprep.subr.mxu0 0.0
        %493 = vmatpush1.msra.mxu0 0.0
        %494 = vmatprep.subr.mxu0 0.0
        %495 = vmatpush1.msra.mxu0 0.0
        %496 = vmatprep.subr.mxu0 0.0
        %497 = vmatpush1.msra.mxu0 0.0
        %498 = vmatprep.subr.mxu0 0.0
        %499 = vmatpush1.msra.mxu0 0.0
        %500 = vmatprep.subr.mxu0 0.0
        %501 = vmatpush1.msra.mxu0 0.0
        %502 = vmatprep.subr.mxu0 0.0
        %503 = vmatpush1.msra.mxu0 0.0
        %504 = vmatprep.subr.mxu0 0.0
        %505 = vmatpush1.msra.mxu0 0.0
        %506 = vmatprep.subr.mxu0 0.0
        %507 = vmatpush1.msra.mxu0 0.0
        %508 = vmatprep.subr.mxu0 0.0
        %509 = vmatpush1.msra.mxu0 0.0
        %510 = vmatprep.subr.mxu0 0.0
        %511 = vmatpush1.msra.mxu0 0.0
        %512 = vmatprep.subr.mxu0 0.0
        %513 = vmatpush1.msra.mxu0 0.0
        %514 = vmatprep.subr.mxu0 0.0
        %515 = vmatpush1.msra.mxu0 0.0
        %516 = vmatprep.subr.mxu0 0.0
        %517 = vmatpush1.msra.mxu0 0.0
        %518 = vmatprep.subr.mxu0 0.0
        %519 = vmatpush1.msra.mxu0 0.0
        %520 = vmatprep.subr.mxu0 0.0
        %521 = vmatpush1.msra.mxu0 0.0
        %522 = vmatprep.subr.mxu0 0.0
        %523 = vmatpush1.msra.mxu0 0.0
        %524 = vmatprep.subr.mxu0 0.0
        %525 = vmatpush1.msra.mxu0 0.0
        %526 = vmatprep.subr.mxu0 0.0
        %527 = vmatpush1.msra.mxu0 0.0
        %528 = vmatprep.subr.mxu0 0.0
        %529 = vmatpush1.msra.mxu0 0.0
        %530 = vmatprep.subr.mxu0 0.0
        %531 = vmatpush1.msra.mxu0 0.0
        %532 = vmatprep.mubr.f32.mxu0 0.0
        %533 = vmatmul.mubr.f32.gmra.mrb[0].mxu0 %v466
        %v534 = vpop.f32.mrb[0].mxu0
        %v535 = vadd.f32 %v461, %v534
        %v536 = vpop.f32.mrb[0].mxu0
        %v537 = vadd.f32 %v463, %v536
        %538 = vdwg.mxu0
        %s539 = scalar_lea.vmem [#allocation7], 16
        %v540 = vld [vmem:[%s539] sm:$0xff]
        %541 = vrot.lane.b32.xlu0 %v373, 112
        %v542 = vpop.permute.xlu0 %541
        %543 = vrot.lane.b32.xlu0 %v374, 112
        %v544 = vpop.permute.xlu0 %543
        %vm545 = vcmask 916480
        %v546 = vsel %vm545, %v542, %v544
        %v549 = vsel %vm545, %v544, 0.0
        %v551 = vsel %vm390, %v540, 0
        %553 = vmatprep.subr.mxu0 %v549
        %554 = vmatpush1.msra.mxu0 %v546
        %555 = vmatprep.subr.mxu0 0.0
        %556 = vmatpush1.msra.mxu0 0.0
        %557 = vmatprep.subr.mxu0 0.0
        %558 = vmatpush1.msra.mxu0 0.0
        %559 = vmatprep.subr.mxu0 0.0
        %560 = vmatpush1.msra.mxu0 0.0
        %561 = vmatprep.subr.mxu0 0.0
        %562 = vmatpush1.msra.mxu0 0.0
        %563 = vmatprep.subr.mxu0 0.0
        %564 = vmatpush1.msra.mxu0 0.0
        %565 = vmatprep.subr.mxu0 0.0
        %566 = vmatpush1.msra.mxu0 0.0
        %567 = vmatprep.subr.mxu0 0.0
        %568 = vmatpush1.msra.mxu0 0.0
        %569 = vmatprep.subr.mxu0 0.0
        %570 = vmatpush1.msra.mxu0 0.0
        %571 = vmatprep.subr.mxu0 0.0
        %572 = vmatpush1.msra.mxu0 0.0
        %573 = vmatprep.subr.mxu0 0.0
        %574 = vmatpush1.msra.mxu0 0.0
        %575 = vmatprep.subr.mxu0 0.0
        %576 = vmatpush1.msra.mxu0 0.0
        %577 = vmatprep.subr.mxu0 0.0
        %578 = vmatpush1.msra.mxu0 0.0
        %579 = vmatprep.subr.mxu0 0.0
        %580 = vmatpush1.msra.mxu0 0.0
        %581 = vmatprep.subr.mxu0 0.0
        %582 = vmatpush1.msra.mxu0 0.0
        %583 = vmatprep.subr.mxu0 0.0
        %584 = vmatpush1.msra.mxu0 0.0
        %585 = vmatprep.subr.mxu0 0.0
        %586 = vmatpush1.msra.mxu0 0.0
        %587 = vmatprep.subr.mxu0 0.0
        %588 = vmatpush1.msra.mxu0 0.0
        %589 = vmatprep.subr.mxu0 0.0
        %590 = vmatpush1.msra.mxu0 0.0
        %591 = vmatprep.subr.mxu0 0.0
        %592 = vmatpush1.msra.mxu0 0.0
        %593 = vmatprep.subr.mxu0 0.0
        %594 = vmatpush1.msra.mxu0 0.0
        %595 = vmatprep.subr.mxu0 0.0
        %596 = vmatpush1.msra.mxu0 0.0
        %597 = vmatprep.subr.mxu0 0.0
        %598 = vmatpush1.msra.mxu0 0.0
        %599 = vmatprep.subr.mxu0 0.0
        %600 = vmatpush1.msra.mxu0 0.0
        %601 = vmatprep.subr.mxu0 0.0
        %602 = vmatpush1.msra.mxu0 0.0
        %603 = vmatprep.subr.mxu0 0.0
        %604 = vmatpush1.msra.mxu0 0.0
        %605 = vmatprep.subr.mxu0 0.0
        %606 = vmatpush1.msra.mxu0 0.0
        %607 = vmatprep.subr.mxu0 0.0
        %608 = vmatpush1.msra.mxu0 0.0
        %609 = vmatprep.subr.mxu0 0.0
        %610 = vmatpush1.msra.mxu0 0.0
        %611 = vmatprep.subr.mxu0 0.0
        %612 = vmatpush1.msra.mxu0 0.0
        %613 = vmatprep.subr.mxu0 0.0
        %614 = vmatpush1.msra.mxu0 0.0
        %615 = vmatprep.subr.mxu0 0.0
        %616 = vmatpush1.msra.mxu0 0.0
        %617 = vmatprep.mubr.f32.mxu0 0.0
        %618 = vmatmul.mubr.f32.gmra.mrb[0].mxu0 %v551
        %v619 = vpop.f32.mrb[0].mxu0
        %v620 = vadd.f32 0.0, %v619
        %v621 = vpop.f32.mrb[0].mxu0
        %v622 = vadd.f32 0.0, %v621
        %623 = vdwg.mxu0
        %v624 = vadd.f32 %v535, %v620
        %v625 = vadd.f32 %v537, %v622
        %v626 = vld [vmem:[#allocation8] sm:$0xff]
        %628 = vset.pattern.permute.xlu0 0
        %629 = vperm.xlu0 %628, %v626
        %v630 = vpop.permute.xlu0 %629
        %v632 = vadd.f32 %v624, %v630
        %v633 = vadd.f32 %v625, %v630
        %v634 = vmax.f32 %v632, 0.0
        %v635 = vmax.f32 %v633, 0.0
        %s636 = scalar_lea.vmem [#allocation10], 8
        %v637 = vld [vmem:[%s636] sm:$0xff]
        %vm638 = vcmp.ge.s32.totalorder %v375, 1
        %641 = vrot.lane.b32.xlu0 %v634, 1
        %v642 = vpop.permute.xlu0 %641
        %643 = vrot.lane.b32.xlu0 %v635, 1
        %v644 = vpop.permute.xlu0 %643
        %vm645 = vcmask 7168
        %v646 = vsel %vm645, %v642, %v644
        %v649 = vsel %vm645, 0.0, %v642
        %v650 = vsel %vm638, 1, 0
        %v651 = vlaneseq
        %v652 = vshrl.u32 %v651, 7
        %v653 = vsub.s32 0, %v652
        %v654 = vrot.slane %v650, %v653
        %v655 = vlaneseq
        %v656 = vshrl.u32 %v655, 7
        %v657 = vsub.s32 1, %v656
        %v658 = vrot.slane %v650, %v657
        %vm659 = vcmp.eq.s32.totalorder %v654, 1
        %vm660 = vcmp.eq.s32.totalorder %v658, 1
        %v661 = vsel %vm659, %v649, 0.0
        %v662 = vsel %vm660, %v646, 0.0
        %v663 = vld [vmem:[#allocation10] sm:$0xff]
        %v665 = vsel %vm390, %v663, 0
        %667 = vmatprep.subr.mxu0 %v662
        %668 = vmatpush1.msra.mxu0 %v661
        %669 = vmatprep.subr.mxu0 0.0
        %670 = vmatpush1.msra.mxu0 0.0
        %671 = vmatprep.subr.mxu0 0.0
        %672 = vmatpush1.msra.mxu0 0.0
        %673 = vmatprep.subr.mxu0 0.0
        %674 = vmatpush1.msra.mxu0 0.0
        %675 = vmatprep.subr.mxu0 0.0
        %676 = vmatpush1.msra.mxu0 0.0
        %677 = vmatprep.subr.mxu0 0.0
        %678 = vmatpush1.msra.mxu0 0.0
        %679 = vmatprep.subr.mxu0 0.0
        %680 = vmatpush1.msra.mxu0 0.0
        %681 = vmatprep.subr.mxu0 0.0
        %682 = vmatpush1.msra.mxu0 0.0
        %683 = vmatprep.subr.mxu0 0.0
        %684 = vmatpush1.msra.mxu0 0.0
        %685 = vmatprep.subr.mxu0 0.0
        %686 = vmatpush1.msra.mxu0 0.0
        %687 = vmatprep.subr.mxu0 0.0
        %688 = vmatpush1.msra.mxu0 0.0
        %689 = vmatprep.subr.mxu0 0.0
        %690 = vmatpush1.msra.mxu0 0.0
        %691 = vmatprep.subr.mxu0 0.0
        %692 = vmatpush1.msra.mxu0 0.0
        %693 = vmatprep.subr.mxu0 0.0
        %694 = vmatpush1.msra.mxu0 0.0
        %695 = vmatprep.subr.mxu0 0.0
        %696 = vmatpush1.msra.mxu0 0.0
        %697 = vmatprep.subr.mxu0 0.0
        %698 = vmatpush1.msra.mxu0 0.0
        %699 = vmatprep.subr.mxu0 0.0
        %700 = vmatpush1.msra.mxu0 0.0
        %701 = vmatprep.subr.mxu0 0.0
        %702 = vmatpush1.msra.mxu0 0.0
        %703 = vmatprep.subr.mxu0 0.0
        %704 = vmatpush1.msra.mxu0 0.0
        %705 = vmatprep.subr.mxu0 0.0
        %706 = vmatpush1.msra.mxu0 0.0
        %707 = vmatprep.subr.mxu0 0.0
        %708 = vmatpush1.msra.mxu0 0.0
        %709 = vmatprep.subr.mxu0 0.0
        %710 = vmatpush1.msra.mxu0 0.0
        %711 = vmatprep.subr.mxu0 0.0
        %712 = vmatpush1.msra.mxu0 0.0
        %713 = vmatprep.subr.mxu0 0.0
        %714 = vmatpush1.msra.mxu0 0.0
        %715 = vmatprep.subr.mxu0 0.0
        %716 = vmatpush1.msra.mxu0 0.0
        %717 = vmatprep.subr.mxu0 0.0
        %718 = vmatpush1.msra.mxu0 0.0
        %719 = vmatprep.subr.mxu0 0.0
        %720 = vmatpush1.msra.mxu0 0.0
        %721 = vmatprep.subr.mxu0 0.0
        %722 = vmatpush1.msra.mxu0 0.0
        %723 = vmatprep.subr.mxu0 0.0
        %724 = vmatpush1.msra.mxu0 0.0
        %725 = vmatprep.subr.mxu0 0.0
        %726 = vmatpush1.msra.mxu0 0.0
        %727 = vmatprep.subr.mxu0 0.0
        %728 = vmatpush1.msra.mxu0 0.0
        %729 = vmatprep.subr.mxu0 0.0
        %730 = vmatpush1.msra.mxu0 0.0
        %731 = vmatprep.mubr.f32.mxu0 0.0
        %732 = vmatmul.mubr.f32.gmra.mrb[0].mxu0 %v665
        %v733 = vpop.f32.mrb[0].mxu0
        %v734 = vadd.f32 0.0, %v733
        %v735 = vpop.f32.mrb[0].mxu0
        %v736 = vadd.f32 0.0, %v735
        %737 = vdwg.mxu0
        %v739 = vsel %vm390, %v637, 0
        %741 = vmatprep.subr.mxu0 %v635
        %742 = vmatpush1.msra.mxu0 %v634
        %743 = vmatprep.subr.mxu0 0.0
        %744 = vmatpush1.msra.mxu0 0.0
        %745 = vmatprep.subr.mxu0 0.0
        %746 = vmatpush1.msra.mxu0 0.0
        %747 = vmatprep.subr.mxu0 0.0
        %748 = vmatpush1.msra.mxu0 0.0
        %749 = vmatprep.subr.mxu0 0.0
        %750 = vmatpush1.msra.mxu0 0.0
        %751 = vmatprep.subr.mxu0 0.0
        %752 = vmatpush1.msra.mxu0 0.0
        %753 = vmatprep.subr.mxu0 0.0
        %754 = vmatpush1.msra.mxu0 0.0
        %755 = vmatprep.subr.mxu0 0.0
        %756 = vmatpush1.msra.mxu0 0.0
        %757 = vmatprep.subr.mxu0 0.0
        %758 = vmatpush1.msra.mxu0 0.0
        %759 = vmatprep.subr.mxu0 0.0
        %760 = vmatpush1.msra.mxu0 0.0
        %761 = vmatprep.subr.mxu0 0.0
        %762 = vmatpush1.msra.mxu0 0.0
        %763 = vmatprep.subr.mxu0 0.0
        %764 = vmatpush1.msra.mxu0 0.0
        %765 = vmatprep.subr.mxu0 0.0
        %766 = vmatpush1.msra.mxu0 0.0
        %767 = vmatprep.subr.mxu0 0.0
        %768 = vmatpush1.msra.mxu0 0.0
        %769 = vmatprep.subr.mxu0 0.0
        %770 = vmatpush1.msra.mxu0 0.0
        %771 = vmatprep.subr.mxu0 0.0
        %772 = vmatpush1.msra.mxu0 0.0
        %773 = vmatprep.subr.mxu0 0.0
        %774 = vmatpush1.msra.mxu0 0.0
        %775 = vmatprep.subr.mxu0 0.0
        %776 = vmatpush1.msra.mxu0 0.0
        %777 = vmatprep.subr.mxu0 0.0
        %778 = vmatpush1.msra.mxu0 0.0
        %779 = vmatprep.subr.mxu0 0.0
        %780 = vmatpush1.msra.mxu0 0.0
        %781 = vmatprep.subr.mxu0 0.0
        %782 = vmatpush1.msra.mxu0 0.0
        %783 = vmatprep.subr.mxu0 0.0
        %784 = vmatpush1.msra.mxu0 0.0
        %785 = vmatprep.subr.mxu0 0.0
        %786 = vmatpush1.msra.mxu0 0.0
        %787 = vmatprep.subr.mxu0 0.0
        %788 = vmatpush1.msra.mxu0 0.0
        %789 = vmatprep.subr.mxu0 0.0
        %790 = vmatpush1.msra.mxu0 0.0
        %791 = vmatprep.subr.mxu0 0.0
        %792 = vmatpush1.msra.mxu0 0.0
        %793 = vmatprep.subr.mxu0 0.0
        %794 = vmatpush1.msra.mxu0 0.0
        %795 = vmatprep.subr.mxu0 0.0
        %796 = vmatpush1.msra.mxu0 0.0
        %797 = vmatprep.subr.mxu0 0.0
        %798 = vmatpush1.msra.mxu0 0.0
        %799 = vmatprep.subr.mxu0 0.0
        %800 = vmatpush1.msra.mxu0 0.0
        %801 = vmatprep.subr.mxu0 0.0
        %802 = vmatpush1.msra.mxu0 0.0
        %803 = vmatprep.subr.mxu0 0.0
        %804 = vmatpush1.msra.mxu0 0.0
        %805 = vmatprep.mubr.f32.mxu0 0.0
        %806 = vmatmul.mubr.f32.gmra.mrb[0].mxu0 %v739
        %v807 = vpop.f32.mrb[0].mxu0
        %v808 = vadd.f32 %v734, %v807
        %v809 = vpop.f32.mrb[0].mxu0
        %v810 = vadd.f32 %v736, %v809
        %811 = vdwg.mxu0
        %vm812 = vcmp.lt.s32.totalorder %v375, 15
        %813 = vrot.lane.b32.xlu0 %v634, 127
        %v814 = vpop.permute.xlu0 %813
        %815 = vrot.lane.b32.xlu0 %v635, 127
        %v816 = vpop.permute.xlu0 %815
        %vm817 = vcmask 1039360
        %v818 = vsel %vm817, %v814, %v816
        %v821 = vsel %vm817, %v816, 0.0
        %v822 = vsel %vm812, 1, 0
        %v823 = vlaneseq
        %v824 = vshrl.u32 %v823, 7
        %v825 = vsub.s32 0, %v824
        %v826 = vrot.slane %v822, %v825
        %v827 = vlaneseq
        %v828 = vshrl.u32 %v827, 7
        %v829 = vsub.s32 1, %v828
        %v830 = vrot.slane %v822, %v829
        %vm831 = vcmp.eq.s32.totalorder %v826, 1
        %vm832 = vcmp.eq.s32.totalorder %v830, 1
        %v833 = vsel %vm831, %v818, 0.0
        %v834 = vsel %vm832, %v821, 0.0
        %s835 = scalar_lea.vmem [#allocation10], 16
        %v836 = vld [vmem:[%s835] sm:$0xff]
        %v838 = vsel %vm390, %v836, 0
        %840 = vmatprep.subr.mxu0 %v834
        %841 = vmatpush1.msra.mxu0 %v833
        %842 = vmatprep.subr.mxu0 0.0
        %843 = vmatpush1.msra.mxu0 0.0
        %844 = vmatprep.subr.mxu0 0.0
        %845 = vmatpush1.msra.mxu0 0.0
        %846 = vmatprep.subr.mxu0 0.0
        %847 = vmatpush1.msra.mxu0 0.0
        %848 = vmatprep.subr.mxu0 0.0
        %849 = vmatpush1.msra.mxu0 0.0
        %850 = vmatprep.subr.mxu0 0.0
        %851 = vmatpush1.msra.mxu0 0.0
        %852 = vmatprep.subr.mxu0 0.0
        %853 = vmatpush1.msra.mxu0 0.0
        %854 = vmatprep.subr.mxu0 0.0
        %855 = vmatpush1.msra.mxu0 0.0
        %856 = vmatprep.subr.mxu0 0.0
        %857 = vmatpush1.msra.mxu0 0.0
        %858 = vmatprep.subr.mxu0 0.0
        %859 = vmatpush1.msra.mxu0 0.0
        %860 = vmatprep.subr.mxu0 0.0
        %861 = vmatpush1.msra.mxu0 0.0
        %862 = vmatprep.subr.mxu0 0.0
        %863 = vmatpush1.msra.mxu0 0.0
        %864 = vmatprep.subr.mxu0 0.0
        %865 = vmatpush1.msra.mxu0 0.0
        %866 = vmatprep.subr.mxu0 0.0
        %867 = vmatpush1.msra.mxu0 0.0
        %868 = vmatprep.subr.mxu0 0.0
        %869 = vmatpush1.msra.mxu0 0.0
        %870 = vmatprep.subr.mxu0 0.0
        %871 = vmatpush1.msra.mxu0 0.0
        %872 = vmatprep.subr.mxu0 0.0
        %873 = vmatpush1.msra.mxu0 0.0
        %874 = vmatprep.subr.mxu0 0.0
        %875 = vmatpush1.msra.mxu0 0.0
        %876 = vmatprep.subr.mxu0 0.0
        %877 = vmatpush1.msra.mxu0 0.0
        %878 = vmatprep.subr.mxu0 0.0
        %879 = vmatpush1.msra.mxu0 0.0
        %880 = vmatprep.subr.mxu0 0.0
        %881 = vmatpush1.msra.mxu0 0.0
        %882 = vmatprep.subr.mxu0 0.0
        %883 = vmatpush1.msra.mxu0 0.0
        %884 = vmatprep.subr.mxu0 0.0
        %885 = vmatpush1.msra.mxu0 0.0
        %886 = vmatprep.subr.mxu0 0.0
        %887 = vmatpush1.msra.mxu0 0.0
        %888 = vmatprep.subr.mxu0 0.0
        %889 = vmatpush1.msra.mxu0 0.0
        %890 = vmatprep.subr.mxu0 0.0
        %891 = vmatpush1.msra.mxu0 0.0
        %892 = vmatprep.subr.mxu0 0.0
        %893 = vmatpush1.msra.mxu0 0.0
        %894 = vmatprep.subr.mxu0 0.0
        %895 = vmatpush1.msra.mxu0 0.0
        %896 = vmatprep.subr.mxu0 0.0
        %897 = vmatpush1.msra.mxu0 0.0
        %898 = vmatprep.subr.mxu0 0.0
        %899 = vmatpush1.msra.mxu0 0.0
        %900 = vmatprep.subr.mxu0 0.0
        %901 = vmatpush1.msra.mxu0 0.0
        %902 = vmatprep.subr.mxu0 0.0
        %903 = vmatpush1.msra.mxu0 0.0
        %904 = vmatprep.mubr.f32.mxu0 0.0
        %905 = vmatmul.mubr.f32.gmra.mrb[0].mxu0 %v838
        %v906 = vpop.f32.mrb[0].mxu0
        %v907 = vadd.f32 0.0, %v906
        %v908 = vpop.f32.mrb[0].mxu0
        %v909 = vadd.f32 0.0, %v908
        %910 = vdwg.mxu0
        %v911 = vadd.f32 %v808, %v907
        %v912 = vadd.f32 %v810, %v909
        %v913 = vld [vmem:[#allocation11] sm:$0xff]
        %915 = vset.pattern.permute.xlu0 0
        %916 = vperm.xlu0 %915, %v913
        %v917 = vpop.permute.xlu0 %916
        %v919 = vadd.f32 %v911, %v917
        %v920 = vadd.f32 %v912, %v917
        %921 = vst [vmem:[%s365] sm:$0xff] %v919
        %922 = vst [vmem:[%s365 + $0x8] sm:$0xff] %v920
        %v923 = vadd.f32 %v919, %v920
        %924 = vadd.xlane.f32.xlu0 %v923
        %v925 = vpop.xlane.xlu0 %924
        %926 = vst.msk [vmem:[%s372] sm:$0xff] %vm645, %v925
        %v927 = vmul.f32 %v919, %v919
        %v928 = vmul.f32 %v920, %v920
        %v929 = vadd.f32 %v927, %v928
        %930 = vadd.xlane.f32.xlu0 %v929
        %v931 = vpop.xlane.xlu0 %930
        %vm932 = vcmask 15368
        %933 = vst.msk [vmem:[%s372] sm:$0xff] %vm932, %v931
        %s934 = sand.u32 %s170, 1
        %s935 = scalar_lea.sflag [#allocation4], %s934
        %s936 = sand.u32 %s170, 1
        %s937 = smul.addr %s936, 16
        %s938 = scalar_lea.vmem [#allocation13], %s937
        %s939 = sand.u32 %s196, 1
        %s940 = scalar_lea.sflag [#allocation15], %s939
        %s941 = sand.u32 %s196, 1
        %s942 = smul.addr %s941, 8
        %s943 = scalar_lea.vmem [#allocation14], %s942
        // Predicated region
        $region69: #{non_bottleneck_1d_forward.3} parent=43 // pred_check
          %p944 = pneg %p180
        $region70: #{non_bottleneck_1d_forward.3} parent=43 // pred_check_branch
          %946 = sbr.rel (%p944) target = $region72
        $region71: #{non_bottleneck_1d_forward.3} parent=43 // pred_region
          %s948 = ssub.s32 256, 256
          %949 = vsyncadd %s935, %s948
          %s950 = smul.addr %s31, 2
          %s951 = smul.addr %s950, 128
          %s952 = scalar_lea.hbm %s6, %s951
          %s954 = sshll.u32 %s938, 4
          %s955 = int_to_ptr.vmem [resolvable:$true] %s954
          %957 = dma.vmem_to_hbm [thread:$0]  %s955, 256, %s952, %s935
        $region72: #{non_bottleneck_1d_forward.3} parent=43 // pred_fallthru
          _
        // Predicated region
        $region73: #{non_bottleneck_1d_forward.3} parent=43 // pred_check
          %p958 = pneg %p206
        $region74: #{non_bottleneck_1d_forward.3} parent=43 // pred_check_branch
          %960 = sbr.rel (%p958) target = $region76
        $region75: #{non_bottleneck_1d_forward.3} parent=43 // pred_region
          %s962 = ssub.s32 128, 128
          %963 = vsyncadd %s940, %s962
          %s964 = smul.addr %s31, 128
          %s965 = scalar_lea.hbm %s7, %s964
          %s967 = sshll.u32 %s943, 4
          %s968 = int_to_ptr.vmem [resolvable:$true] %s967
          %970 = dma.vmem_to_hbm [thread:$0]  %s968, 128, %s965, %s940
        $region76: #{non_bottleneck_1d_forward.3} parent=43 // pred_fallthru
          _
      $region44: #{non_bottleneck_1d_forward.3} parent=5 // pred_fallthru
        _
      %p971 = scmp.le.s32.totalorder 2, %s26
      // Predicated region
      $region77: #{non_bottleneck_1d_forward.3} parent=5 // pred_check
        %p972 = pneg %p971
      $region78: #{non_bottleneck_1d_forward.3} parent=5 // pred_check_branch
        %974 = sbr.rel (%p972) target = $region80
      $region79: #{non_bottleneck_1d_forward.3} parent=5 // pred_region
        %s975 = ssub.s32 %s26, 2
        // Predicated region
        $region81: #{non_bottleneck_1d_forward.3} parent=79 // pred_check
          %p976 = pneg %p186
        $region82: #{non_bottleneck_1d_forward.3} parent=79 // pred_check_branch
          %978 = sbr.rel (%p976) target = $region84
        $region83: #{non_bottleneck_1d_forward.3} parent=79 // pred_region
          %s979 = sand.u32 %s171, 1
          %s980 = scalar_lea.sflag [#allocation4], %s979
          %s981 = sand.u32 %s171, 1
          %s982 = smul.addr %s981, 16
          %s983 = scalar_lea.vmem [#allocation13], %s982
          %984 = dma.done %s980, 256
        $region84: #{non_bottleneck_1d_forward.3} parent=79 // pred_fallthru
          _
        // Predicated region
        $region85: #{non_bottleneck_1d_forward.3} parent=79 // pred_check
          %p985 = pneg %p212
        $region86: #{non_bottleneck_1d_forward.3} parent=79 // pred_check_branch
          %987 = sbr.rel (%p985) target = $region88
        $region87: #{non_bottleneck_1d_forward.3} parent=79 // pred_region
          %s988 = sand.u32 %s197, 1
          %s989 = scalar_lea.sflag [#allocation15], %s988
          %s990 = sand.u32 %s197, 1
          %s991 = smul.addr %s990, 8
          %s992 = scalar_lea.vmem [#allocation14], %s991
          %993 = dma.done %s989, 128
        $region88: #{non_bottleneck_1d_forward.3} parent=79 // pred_fallthru
          _
      $region80: #{non_bottleneck_1d_forward.3} parent=5 // pred_fallthru
        _
    $region6: #{non_bottleneck_1d_forward.3} parent=1 // loop_footer
      %s30 = sadd.s32 1, %s26
    $region7: #{non_bottleneck_1d_forward.3} parent=1 // loop_footer_branch
      %25 = sbr.rel target = $region3
    $region8: #{non_bottleneck_1d_forward.3} parent=1 // loop_exit
      _
    %994 = vsyncpa [#allocation3], 1
    %s995 = scalar_lea.sflag [#allocation3], 1
    %996 = vsyncpa %s995, 1
    %997 = vsyncpa [#allocation6], 1
    %998 = vsyncpa [#allocation9], 1
    %999 = vsyncpa [#allocation12], 1
    %1000 = vsyncpa [#allocation4], 1
    %s1001 = scalar_lea.sflag [#allocation4], 1
    %1002 = vsyncpa %s1001, 1
    %1003 = vsyncpa [#allocation15], 1
    %s1004 = scalar_lea.sflag [#allocation15], 1
    %1005 = vsyncpa %s1004, 1

// kernel: non_bottleneck_1d_forward.4
$region0: #{non_bottleneck_1d_forward.4}
  #allocation0 [shape = 'u32[]', space=smem, size = 0x4, offset = 0x4, fixed_abs, tag = 'smem constant byte address 0x4 - core index']
  #allocation1 [shape = 'u32[144,128]{1,0:T(1,128)}', space=vmem, size = 0x12000, scoped, tag = 'internal scratch']
  %s0 = inlined_call_operand.hbm [shape: f32[2,8,256], index: 0, kind: input, shape index: {}]
  %s1 = inlined_call_operand.hbm [shape: s32[1,256], index: 1, kind: input, shape index: {}]
  %s2 = inlined_call_operand.hbm [shape: f32[8,1], index: 2, kind: input, shape index: {}]
  %s3 = inlined_call_operand.hbm [shape: f32[8,1], index: 3, kind: input, shape index: {}]
  %s4 = inlined_call_operand.hbm [shape: f32[3,8,8], index: 4, kind: input, shape index: {}]
  %s5 = inlined_call_operand.hbm [shape: f32[8,1], index: 5, kind: input, shape index: {}]
  %s6 = inlined_call_operand.hbm [shape: f32[3,8,8], index: 6, kind: input, shape index: {}]
  %s7 = inlined_call_operand.hbm [shape: f32[8,1], index: 7, kind: input, shape index: {}]
  %s8 = inlined_call_operand.hbm [shape: f32[2,8,256], index: 8, kind: output, shape index: {0}]
  %s9 = inlined_call_operand.hbm [shape: f32[2,8,2], index: 9, kind: output, shape index: {1}]
  %10 = xla_tuple %s8, %s9
  %s11 = sld [smem:[#allocation0]]
  $region105: #{non_bottleneck_1d_forward.4} parent=0
    _
  %s13 = ssub.s32 1, %s11
  %s14 = scalar_select 0, %s13, %s11
  $region1: #{non_bottleneck_1d_forward.4} parent=0
    #allocation2 [shape = 'u8[16384]{0}', space=vmem, size = 0x4000, scoped, tag = 'input window, operand 0']
    #allocation3 [shape = 's32[2]{0}', space=sflag, size = 0x8, scoped, tag = 'scoped memory for non_bottleneck_1d_forward.4']
    #allocation4 [shape = 's32[2]{0}', space=sflag, size = 0x8, scoped, tag = 'scoped memory for non_bottleneck_1d_forward.4']
    #allocation5 [shape = 'u8[1024]{0}', space=vmem, size = 0x400, scoped, tag = 'input window, operand 1, single buffered']
    #allocation6 [shape = 's32[1]{0}', space=sflag, size = 0x4, scoped, tag = 'scoped memory for non_bottleneck_1d_forward.4']
    #allocation7 [shape = 'u8[4096]{0}', space=vmem, size = 0x1000, scoped, tag = 'input window, operand 2, single buffered']
    #allocation8 [shape = 'u8[4096]{0}', space=vmem, size = 0x1000, scoped, tag = 'input window, operand 3, single buffered']
    #allocation9 [shape = 's32[1]{0}', space=sflag, size = 0x4, scoped, tag = 'scoped memory for non_bottleneck_1d_forward.4']
    #allocation10 [shape = 'u8[12288]{0}', space=vmem, size = 0x3000, scoped, tag = 'input window, operand 4, single buffered']
    #allocation11 [shape = 'u8[4096]{0}', space=vmem, size = 0x1000, scoped, tag = 'input window, operand 5, single buffered']
    #allocation12 [shape = 's32[1]{0}', space=sflag, size = 0x4, scoped, tag = 'scoped memory for non_bottleneck_1d_forward.4']
    #allocation13 [shape = 'u8[12288]{0}', space=vmem, size = 0x3000, scoped, tag = 'input window, operand 6, single buffered']
    #allocation14 [shape = 'u8[4096]{0}', space=vmem, size = 0x1000, scoped, tag = 'input window, operand 7, single buffered']
    #allocation15 [shape = 's32[1]{0}', space=sflag, size = 0x4, scoped, tag = 'scoped memory for non_bottleneck_1d_forward.4']
    #allocation16 [shape = 'u8[16384]{0}', space=vmem, size = 0x4000, scoped, tag = 'output window, operand 0']
    #allocation17 [shape = 'u8[8192]{0}', space=vmem, size = 0x2000, scoped, tag = 'output window, operand 1']
    #allocation18 [shape = 's32[2]{0}', space=sflag, size = 0x8, scoped, tag = 'scoped memory for non_bottleneck_1d_forward.4']
    %15 = vsyncpa [#allocation3], 0
    %s16 = scalar_lea.sflag [#allocation3], 1
    %17 = vsyncpa %s16, 0
    %18 = vsyncpa [#allocation6], 0
    %19 = vsyncpa [#allocation9], 0
    %20 = vsyncpa [#allocation12], 0
    %21 = vsyncpa [#allocation15], 0
    %22 = vsyncpa [#allocation4], 0
    %s23 = scalar_lea.sflag [#allocation4], 1
    %24 = vsyncpa %s23, 0
    %25 = vsyncpa [#allocation18], 0
    %s26 = scalar_lea.sflag [#allocation18], 1
    %27 = vsyncpa %s26, 0
    loop: start=0, step=1, limit=4
    $region2: #{non_bottleneck_1d_forward.4} parent=1 // loop_pre_header
      _
    $region3: #{non_bottleneck_1d_forward.4} parent=1 // loop_header
      %s29 = sphi 0, %s33
      %p30 = scmp.ge.s32.totalorder %s29, 4
      %s39 = sphi 0, %s41
      %s42 = sphi 0, %s39
      %s43 = sphi 0, %s42
      %s59 = sphi 0, %s43
      %s63 = sphi 0, %s63
      %s65 = sphi 0, %s63
      %s66 = sphi 0, %s65
      %s80 = sphi 0, %s66
      %s84 = sphi 0, %s84
      %s86 = sphi 0, %s84
      %s87 = sphi 0, %s86
      %s101 = sphi 0, %s87
      %s105 = sphi 0, %s105
      %s107 = sphi 0, %s105
      %s108 = sphi 0, %s107
      %s122 = sphi 0, %s108
      %s126 = sphi 0, %s126
      %s128 = sphi 0, %s126
      %s129 = sphi 0, %s128
      %s143 = sphi 0, %s129
      %s147 = sphi 0, %s147
      %s149 = sphi 0, %s147
      %s150 = sphi 0, %s149
      %s164 = sphi 0, %s150
      %s168 = sphi 0, %s168
      %s170 = sphi 0, %s168
      %s171 = sphi 0, %s170
      %s185 = sphi 0, %s171
      %s189 = sphi 0, %s189
      %s191 = sphi 0, %s189
      %s192 = sphi 0, %s191
      %s206 = sphi 0, %s192
      %s212 = sphi 0, %s214
      %s215 = sphi 0, %s212
      %s216 = sphi 0, %s215
      %s232 = sphi 0, %s216
      %s238 = sphi 0, %s240
      %s241 = sphi 0, %s238
      %s242 = sphi 0, %s241
      %s258 = sphi 0, %s242
    $region4: #{non_bottleneck_1d_forward.4} parent=1 // loop_header_branch
      %32 = sbr.rel (%p30) target = $region8
    $region5: #{non_bottleneck_1d_forward.4} parent=1 // loop_body
      %s34 = ssub.s32 %s29, 1
      %s35 = ssub.s32 %s29, 2
      %s36 = sadd.s32 %s29, 1
      %s37 = ssub.s32 %s29, %s36
      %p38 = scmp.eq.s32.totalorder %s37, 0
      %s40 = sadd.s32 %s39, 1
      %s41 = scalar_select %p38, %s39, %s40
      %p44 = pneg %p38
      %p45 = scmp.eq.s32.totalorder %s29, 1
      %p46 = por %p44, %p45
      %p47 = scmp.ne.s32.totalorder %s39, %s42
      %p48 = scmp.eq.s32.totalorder %s29, 0
      %p49 = por %p47, %p48
      %p50 = scmp.ne.s32.totalorder %s39, %s42
      %p51 = scmp.eq.s32.totalorder %s34, 1
      %p52 = por %p50, %p51
      %p53 = scmp.ne.s32.totalorder %s42, %s43
      %p54 = scmp.eq.s32.totalorder %s34, 0
      %p55 = por %p53, %p54
      %p56 = scmp.ne.s32.totalorder %s42, %s43
      %p57 = scmp.eq.s32.totalorder %s35, 1
      %p58 = por %p56, %p57
      %p60 = scmp.ne.s32.totalorder %s43, %s59
      %p61 = scmp.eq.s32.totalorder %s35, 0
      %p62 = por %p60, %p61
      %s64 = sadd.s32 %s63, 1
      %p67 = scmp.eq.s32.totalorder %s29, 1
      %p68 = scmp.ne.s32.totalorder %s63, %s65
      %p69 = scmp.eq.s32.totalorder %s29, 0
      %p70 = por %p68, %p69
      %p71 = scmp.ne.s32.totalorder %s63, %s65
      %p72 = scmp.eq.s32.totalorder %s34, 1
      %p73 = por %p71, %p72
      %p74 = scmp.ne.s32.totalorder %s65, %s66
      %p75 = scmp.eq.s32.totalorder %s34, 0
      %p76 = por %p74, %p75
      %p77 = scmp.ne.s32.totalorder %s65, %s66
      %p78 = scmp.eq.s32.totalorder %s35, 1
      %p79 = por %p77, %p78
      %p81 = scmp.ne.s32.totalorder %s66, %s80
      %p82 = scmp.eq.s32.totalorder %s35, 0
      %p83 = por %p81, %p82
      %s85 = sadd.s32 %s84, 1
      %p88 = scmp.eq.s32.totalorder %s29, 1
      %p89 = scmp.ne.s32.totalorder %s84, %s86
      %p90 = scmp.eq.s32.totalorder %s29, 0
      %p91 = por %p89, %p90
      %p92 = scmp.ne.s32.totalorder %s84, %s86
      %p93 = scmp.eq.s32.totalorder %s34, 1
      %p94 = por %p92, %p93
      %p95 = scmp.ne.s32.totalorder %s86, %s87
      %p96 = scmp.eq.s32.totalorder %s34, 0
      %p97 = por %p95, %p96
      %p98 = scmp.ne.s32.totalorder %s86, %s87
      %p99 = scmp.eq.s32.totalorder %s35, 1
      %p100 = por %p98, %p99
      %p102 = scmp.ne.s32.totalorder %s87, %s101
      %p103 = scmp.eq.s32.totalorder %s35, 0
      %p104 = por %p102, %p103
      %s106 = sadd.s32 %s105, 1
      %p109 = scmp.eq.s32.totalorder %s29, 1
      %p110 = scmp.ne.s32.totalorder %s105, %s107
      %p111 = scmp.eq.s32.totalorder %s29, 0
      %p112 = por %p110, %p111
      %p113 = scmp.ne.s32.totalorder %s105, %s107
      %p114 = scmp.eq.s32.totalorder %s34, 1
      %p115 = por %p113, %p114
      %p116 = scmp.ne.s32.totalorder %s107, %s108
      %p117 = scmp.eq.s32.totalorder %s34, 0
      %p118 = por %p116, %p117
      %p119 = scmp.ne.s32.totalorder %s107, %s108
      %p120 = scmp.eq.s32.totalorder %s35, 1
      %p121 = por %p119, %p120
      %p123 = scmp.ne.s32.totalorder %s108, %s122
      %p124 = scmp.eq.s32.totalorder %s35, 0
      %p125 = por %p123, %p124
      %s127 = sadd.s32 %s126, 1
      %p130 = scmp.eq.s32.totalorder %s29, 1
      %p131 = scmp.ne.s32.totalorder %s126, %s128
      %p132 = scmp.eq.s32.totalorder %s29, 0
      %p133 = por %p131, %p132
      %p134 = scmp.ne.s32.totalorder %s126, %s128
      %p135 = scmp.eq.s32.totalorder %s34, 1
      %p136 = por %p134, %p135
      %p137 = scmp.ne.s32.totalorder %s128, %s129
      %p138 = scmp.eq.s32.totalorder %s34, 0
      %p139 = por %p137, %p138
      %p140 = scmp.ne.s32.totalorder %s128, %s129
      %p141 = scmp.eq.s32.totalorder %s35, 1
      %p142 = por %p140, %p141
      %p144 = scmp.ne.s32.totalorder %s129, %s143
      %p145 = scmp.eq.s32.totalorder %s35, 0
      %p146 = por %p144, %p145
      %s148 = sadd.s32 %s147, 1
      %p151 = scmp.eq.s32.totalorder %s29, 1
      %p152 = scmp.ne.s32.totalorder %s147, %s149
      %p153 = scmp.eq.s32.totalorder %s29, 0
      %p154 = por %p152, %p153
      %p155 = scmp.ne.s32.totalorder %s147, %s149
      %p156 = scmp.eq.s32.totalorder %s34, 1
      %p157 = por %p155, %p156
      %p158 = scmp.ne.s32.totalorder %s149, %s150
      %p159 = scmp.eq.s32.totalorder %s34, 0
      %p160 = por %p158, %p159
      %p161 = scmp.ne.s32.totalorder %s149, %s150
      %p162 = scmp.eq.s32.totalorder %s35, 1
      %p163 = por %p161, %p162
      %p165 = scmp.ne.s32.totalorder %s150, %s164
      %p166 = scmp.eq.s32.totalorder %s35, 0
      %p167 = por %p165, %p166
      %s169 = sadd.s32 %s168, 1
      %p172 = scmp.eq.s32.totalorder %s29, 1
      %p173 = scmp.ne.s32.totalorder %s168, %s170
      %p174 = scmp.eq.s32.totalorder %s29, 0
      %p175 = por %p173, %p174
      %p176 = scmp.ne.s32.totalorder %s168, %s170
      %p177 = scmp.eq.s32.totalorder %s34, 1
      %p178 = por %p176, %p177
      %p179 = scmp.ne.s32.totalorder %s170, %s171
      %p180 = scmp.eq.s32.totalorder %s34, 0
      %p181 = por %p179, %p180
      %p182 = scmp.ne.s32.totalorder %s170, %s171
      %p183 = scmp.eq.s32.totalorder %s35, 1
      %p184 = por %p182, %p183
      %p186 = scmp.ne.s32.totalorder %s171, %s185
      %p187 = scmp.eq.s32.totalorder %s35, 0
      %p188 = por %p186, %p187
      %s190 = sadd.s32 %s189, 1
      %p193 = scmp.eq.s32.totalorder %s29, 1
      %p194 = scmp.ne.s32.totalorder %s189, %s191
      %p195 = scmp.eq.s32.totalorder %s29, 0
      %p196 = por %p194, %p195
      %p197 = scmp.ne.s32.totalorder %s189, %s191
      %p198 = scmp.eq.s32.totalorder %s34, 1
      %p199 = por %p197, %p198
      %p200 = scmp.ne.s32.totalorder %s191, %s192
      %p201 = scmp.eq.s32.totalorder %s34, 0
      %p202 = por %p200, %p201
      %p203 = scmp.ne.s32.totalorder %s191, %s192
      %p204 = scmp.eq.s32.totalorder %s35, 1
      %p205 = por %p203, %p204
      %p207 = scmp.ne.s32.totalorder %s192, %s206
      %p208 = scmp.eq.s32.totalorder %s35, 0
      %p209 = por %p207, %p208
      %s210 = ssub.s32 %s29, %s36
      %p211 = scmp.eq.s32.totalorder %s210, 0
      %s213 = sadd.s32 %s212, 1
      %s214 = scalar_select %p211, %s212, %s213
      %p217 = pneg %p211
      %p218 = scmp.eq.s32.totalorder %s29, 1
      %p219 = por %p217, %p218
      %p220 = scmp.ne.s32.totalorder %s212, %s215
      %p221 = scmp.eq.s32.totalorder %s29, 0
      %p222 = por %p220, %p221
      %p223 = scmp.ne.s32.totalorder %s212, %s215
      %p224 = scmp.eq.s32.totalorder %s34, 1
      %p225 = por %p223, %p224
      %p226 = scmp.ne.s32.totalorder %s215, %s216
      %p227 = scmp.eq.s32.totalorder %s34, 0
      %p228 = por %p226, %p227
      %p229 = scmp.ne.s32.totalorder %s215, %s216
      %p230 = scmp.eq.s32.totalorder %s35, 1
      %p231 = por %p229, %p230
      %p233 = scmp.ne.s32.totalorder %s216, %s232
      %p234 = scmp.eq.s32.totalorder %s35, 0
      %p235 = por %p233, %p234
      %s236 = ssub.s32 %s29, %s36
      %p237 = scmp.eq.s32.totalorder %s236, 0
      %s239 = sadd.s32 %s238, 1
      %s240 = scalar_select %p237, %s238, %s239
      %p243 = pneg %p237
      %p244 = scmp.eq.s32.totalorder %s29, 1
      %p245 = por %p243, %p244
      %p246 = scmp.ne.s32.totalorder %s238, %s241
      %p247 = scmp.eq.s32.totalorder %s29, 0
      %p248 = por %p246, %p247
      %p249 = scmp.ne.s32.totalorder %s238, %s241
      %p250 = scmp.eq.s32.totalorder %s34, 1
      %p251 = por %p249, %p250
      %p252 = scmp.ne.s32.totalorder %s241, %s242
      %p253 = scmp.eq.s32.totalorder %s34, 0
      %p254 = por %p252, %p253
      %p255 = scmp.ne.s32.totalorder %s241, %s242
      %p256 = scmp.eq.s32.totalorder %s35, 1
      %p257 = por %p255, %p256
      %p259 = scmp.ne.s32.totalorder %s242, %s258
      %p260 = scmp.eq.s32.totalorder %s35, 0
      %p261 = por %p259, %p260
      %p262 = scmp.le.s32.totalorder 1, %s29
      %p263 = scmp.lt.s32.totalorder %s29, 3
      %p264 = pnand %p262, %p263
      %p265 = pneg %p264
      // Predicated region
      $region9: #{non_bottleneck_1d_forward.4} parent=5 // pred_check
        _
      $region10: #{non_bottleneck_1d_forward.4} parent=5 // pred_check_branch
        %267 = sbr.rel (%p264) target = $region12
      $region11: #{non_bottleneck_1d_forward.4} parent=5 // pred_region
        %s268 = ssub.s32 %s29, 1
        // Predicated region
        $region13: #{non_bottleneck_1d_forward.4} parent=11 // pred_check
          %p269 = pneg %p76
        $region14: #{non_bottleneck_1d_forward.4} parent=11 // pred_check_branch
          %271 = sbr.rel (%p269) target = $region16
        $region15: #{non_bottleneck_1d_forward.4} parent=11 // pred_region
          %s273 = ssub.s32 32, 32
          %274 = vsyncadd [#allocation6], %s273
          %s276 = sshll.u32 [#allocation5], 4
          %s277 = int_to_ptr.vmem [resolvable:$true] %s276
          %279 = dma.hbm_to_vmem [thread:$0]  %s1, 32, %s277, [#allocation6]
        $region16: #{non_bottleneck_1d_forward.4} parent=11 // pred_fallthru
          _
        // Predicated region
        $region17: #{non_bottleneck_1d_forward.4} parent=11 // pred_check
          %p280 = pneg %p97
        $region18: #{non_bottleneck_1d_forward.4} parent=11 // pred_check_branch
          %282 = sbr.rel (%p280) target = $region20
        $region19: #{non_bottleneck_1d_forward.4} parent=11 // pred_region
          %s284 = ssub.s32 128, 128
          %285 = vsyncadd [#allocation6], %s284
          %s287 = sshll.u32 [#allocation7], 4
          %s288 = int_to_ptr.vmem [resolvable:$true] %s287
          %290 = dma.hbm_to_vmem [thread:$0]  %s2, 128, %s288, [#allocation6]
        $region20: #{non_bottleneck_1d_forward.4} parent=11 // pred_fallthru
          _
        // Predicated region
        $region21: #{non_bottleneck_1d_forward.4} parent=11 // pred_check
          %p291 = pneg %p118
        $region22: #{non_bottleneck_1d_forward.4} parent=11 // pred_check_branch
          %293 = sbr.rel (%p291) target = $region24
        $region23: #{non_bottleneck_1d_forward.4} parent=11 // pred_region
          %s295 = ssub.s32 128, 128
          %296 = vsyncadd [#allocation9], %s295
          %s298 = sshll.u32 [#allocation8], 4
          %s299 = int_to_ptr.vmem [resolvable:$true] %s298
          %301 = dma.hbm_to_vmem [thread:$0]  %s3, 128, %s299, [#allocation9]
        $region24: #{non_bottleneck_1d_forward.4} parent=11 // pred_fallthru
          _
        // Predicated region
        $region25: #{non_bottleneck_1d_forward.4} parent=11 // pred_check
          %p302 = pneg %p139
        $region26: #{non_bottleneck_1d_forward.4} parent=11 // pred_check_branch
          %304 = sbr.rel (%p302) target = $region28
        $region27: #{non_bottleneck_1d_forward.4} parent=11 // pred_region
          %s306 = ssub.s32 384, 384
          %307 = vsyncadd [#allocation9], %s306
          %s308 = sshll.u32 [#allocation10], 4
          %s309 = int_to_ptr.vmem [resolvable:$true] %s308
          %314 = dma.hbm_to_vmem [thread:$0]  %s4, 384, %s309, [#allocation9], 128, 128, 8
        $region28: #{non_bottleneck_1d_forward.4} parent=11 // pred_fallthru
          _
        // Predicated region
        $region29: #{non_bottleneck_1d_forward.4} parent=11 // pred_check
          %p315 = pneg %p160
        $region30: #{non_bottleneck_1d_forward.4} parent=11 // pred_check_branch
          %317 = sbr.rel (%p315) target = $region32
        $region31: #{non_bottleneck_1d_forward.4} parent=11 // pred_region
          %s319 = ssub.s32 128, 128
          %320 = vsyncadd [#allocation12], %s319
          %s322 = sshll.u32 [#allocation11], 4
          %s323 = int_to_ptr.vmem [resolvable:$true] %s322
          %325 = dma.hbm_to_vmem [thread:$0]  %s5, 128, %s323, [#allocation12]
        $region32: #{non_bottleneck_1d_forward.4} parent=11 // pred_fallthru
          _
        // Predicated region
        $region33: #{non_bottleneck_1d_forward.4} parent=11 // pred_check
          %p326 = pneg %p181
        $region34: #{non_bottleneck_1d_forward.4} parent=11 // pred_check_branch
          %328 = sbr.rel (%p326) target = $region36
        $region35: #{non_bottleneck_1d_forward.4} parent=11 // pred_region
          %s330 = ssub.s32 384, 384
          %331 = vsyncadd [#allocation12], %s330
          %s332 = sshll.u32 [#allocation13], 4
          %s333 = int_to_ptr.vmem [resolvable:$true] %s332
          %338 = dma.hbm_to_vmem [thread:$0]  %s6, 384, %s333, [#allocation12], 128, 128, 8
        $region36: #{non_bottleneck_1d_forward.4} parent=11 // pred_fallthru
          _
        // Predicated region
        $region37: #{non_bottleneck_1d_forward.4} parent=11 // pred_check
          %p339 = pneg %p202
        $region38: #{non_bottleneck_1d_forward.4} parent=11 // pred_check_branch
          %341 = sbr.rel (%p339) target = $region40
        $region39: #{non_bottleneck_1d_forward.4} parent=11 // pred_region
          %s343 = ssub.s32 128, 128
          %344 = vsyncadd [#allocation15], %s343
          %s346 = sshll.u32 [#allocation14], 4
          %s347 = int_to_ptr.vmem [resolvable:$true] %s346
          %349 = dma.hbm_to_vmem [thread:$0]  %s7, 128, %s347, [#allocation15]
        $region40: #{non_bottleneck_1d_forward.4} parent=11 // pred_fallthru
          _
      $region12: #{non_bottleneck_1d_forward.4} parent=5 // pred_fallthru
        _
      %p350 = scmp.lt.s32.totalorder %s29, 2
      // Predicated region
      $region41: #{non_bottleneck_1d_forward.4} parent=5 // pred_check
        %p351 = pneg %p350
      $region42: #{non_bottleneck_1d_forward.4} parent=5 // pred_check_branch
        %353 = sbr.rel (%p351) target = $region44
      $region43: #{non_bottleneck_1d_forward.4} parent=5 // pred_region
        // Predicated region
        $region45: #{non_bottleneck_1d_forward.4} parent=43 // pred_check
          %p354 = pneg %p49
        $region46: #{non_bottleneck_1d_forward.4} parent=43 // pred_check_branch
          %356 = sbr.rel (%p354) target = $region48
        $region47: #{non_bottleneck_1d_forward.4} parent=43 // pred_region
          %s357 = sand.u32 %s39, 1
          %s358 = scalar_lea.sflag [#allocation3], %s357
          %s359 = sand.u32 %s39, 1
          %s360 = smul.addr %s359, 16
          %s361 = scalar_lea.vmem [#allocation2], %s360
          %s363 = ssub.s32 256, 256
          %364 = vsyncadd %s358, %s363
          %s365 = smul.addr %s29, 2
          %s366 = smul.addr %s365, 128
          %s367 = scalar_lea.hbm %s0, %s366
          %s369 = sshll.u32 %s361, 4
          %s370 = int_to_ptr.vmem [resolvable:$true] %s369
          %372 = dma.hbm_to_vmem [thread:$0]  %s367, 256, %s370, %s358
        $region48: #{non_bottleneck_1d_forward.4} parent=43 // pred_fallthru
          _
      $region44: #{non_bottleneck_1d_forward.4} parent=5 // pred_fallthru
        _
      %p373 = scmp.le.s32.totalorder 1, %s29
      %p374 = scmp.lt.s32.totalorder %s29, 3
      %p375 = pnand %p373, %p374
      %p376 = pneg %p375
      // Predicated region
      $region49: #{non_bottleneck_1d_forward.4} parent=5 // pred_check
        _
      $region50: #{non_bottleneck_1d_forward.4} parent=5 // pred_check_branch
        %378 = sbr.rel (%p375) target = $region52
      $region51: #{non_bottleneck_1d_forward.4} parent=5 // pred_region
        %s379 = ssub.s32 %s29, 1
        %s380 = sand.u32 %s42, 1
        %s381 = scalar_lea.sflag [#allocation3], %s380
        %s382 = sand.u32 %s42, 1
        %s383 = smul.addr %s382, 16
        %s384 = scalar_lea.vmem [#allocation2], %s383
        // Predicated region
        $region53: #{non_bottleneck_1d_forward.4} parent=51 // pred_check
          %p385 = pneg %p55
        $region54: #{non_bottleneck_1d_forward.4} parent=51 // pred_check_branch
          %387 = sbr.rel (%p385) target = $region56
        $region55: #{non_bottleneck_1d_forward.4} parent=51 // pred_region
          %388 = dma.done %s381, 256
        $region56: #{non_bottleneck_1d_forward.4} parent=51 // pred_fallthru
          _
        // Predicated region
        $region57: #{non_bottleneck_1d_forward.4} parent=51 // pred_check
          %p389 = pneg %p76
        $region58: #{non_bottleneck_1d_forward.4} parent=51 // pred_check_branch
          %391 = sbr.rel (%p389) target = $region60
        $region59: #{non_bottleneck_1d_forward.4} parent=51 // pred_region
          %392 = dma.done [#allocation6], 32
        $region60: #{non_bottleneck_1d_forward.4} parent=51 // pred_fallthru
          _
        // Predicated region
        $region61: #{non_bottleneck_1d_forward.4} parent=51 // pred_check
          %p393 = pneg %p97
        $region62: #{non_bottleneck_1d_forward.4} parent=51 // pred_check_branch
          %395 = sbr.rel (%p393) target = $region64
        $region63: #{non_bottleneck_1d_forward.4} parent=51 // pred_region
          %396 = dma.done [#allocation6], 128
        $region64: #{non_bottleneck_1d_forward.4} parent=51 // pred_fallthru
          _
        // Predicated region
        $region65: #{non_bottleneck_1d_forward.4} parent=51 // pred_check
          %p397 = pneg %p118
        $region66: #{non_bottleneck_1d_forward.4} parent=51 // pred_check_branch
          %399 = sbr.rel (%p397) target = $region68
        $region67: #{non_bottleneck_1d_forward.4} parent=51 // pred_region
          %400 = dma.done [#allocation9], 128
        $region68: #{non_bottleneck_1d_forward.4} parent=51 // pred_fallthru
          _
        // Predicated region
        $region69: #{non_bottleneck_1d_forward.4} parent=51 // pred_check
          %p401 = pneg %p139
        $region70: #{non_bottleneck_1d_forward.4} parent=51 // pred_check_branch
          %403 = sbr.rel (%p401) target = $region72
        $region71: #{non_bottleneck_1d_forward.4} parent=51 // pred_region
          %404 = dma.done [#allocation9], 384
        $region72: #{non_bottleneck_1d_forward.4} parent=51 // pred_fallthru
          _
        // Predicated region
        $region73: #{non_bottleneck_1d_forward.4} parent=51 // pred_check
          %p405 = pneg %p160
        $region74: #{non_bottleneck_1d_forward.4} parent=51 // pred_check_branch
          %407 = sbr.rel (%p405) target = $region76
        $region75: #{non_bottleneck_1d_forward.4} parent=51 // pred_region
          %408 = dma.done [#allocation12], 128
        $region76: #{non_bottleneck_1d_forward.4} parent=51 // pred_fallthru
          _
        // Predicated region
        $region77: #{non_bottleneck_1d_forward.4} parent=51 // pred_check
          %p409 = pneg %p181
        $region78: #{non_bottleneck_1d_forward.4} parent=51 // pred_check_branch
          %411 = sbr.rel (%p409) target = $region80
        $region79: #{non_bottleneck_1d_forward.4} parent=51 // pred_region
          %412 = dma.done [#allocation12], 384
        $region80: #{non_bottleneck_1d_forward.4} parent=51 // pred_fallthru
          _
        // Predicated region
        $region81: #{non_bottleneck_1d_forward.4} parent=51 // pred_check
          %p413 = pneg %p202
        $region82: #{non_bottleneck_1d_forward.4} parent=51 // pred_check_branch
          %415 = sbr.rel (%p413) target = $region84
        $region83: #{non_bottleneck_1d_forward.4} parent=51 // pred_region
          %416 = dma.done [#allocation15], 128
        $region84: #{non_bottleneck_1d_forward.4} parent=51 // pred_fallthru
          _
        %s417 = sand.u32 %s42, 1
        %s418 = scalar_lea.sflag [#allocation3], %s417
        %s419 = sand.u32 %s42, 1
        %s420 = smul.addr %s419, 16
        %s421 = scalar_lea.vmem [#allocation2], %s420
        %p422 = pneg %p55
        %p423 = pneg %p52
        %p424 = pneg %p76
        %p425 = pneg %p73
        %p426 = pneg %p97
        %p427 = pneg %p94
        %p428 = pneg %p118
        %p429 = pneg %p115
        %p430 = pneg %p139
        %p431 = pneg %p136
        %p432 = pneg %p160
        %p433 = pneg %p157
        %p434 = pneg %p181
        %p435 = pneg %p178
        %p436 = pneg %p202
        %p437 = pneg %p199
        %p438 = pneg %p228
        %p439 = pneg %p225
        %s440 = sand.u32 %s215, 1
        %s441 = scalar_lea.sflag [#allocation4], %s440
        %s442 = sand.u32 %s215, 1
        %s443 = smul.addr %s442, 16
        %s444 = scalar_lea.vmem [#allocation16], %s443
        %p445 = pneg %p254
        %p446 = pneg %p251
        %s447 = sand.u32 %s241, 1
        %s448 = scalar_lea.sflag [#allocation18], %s447
        %s449 = sand.u32 %s241, 1
        %s450 = smul.addr %s449, 8
        %s451 = scalar_lea.vmem [#allocation17], %s450
        %v452 = vld [vmem:[#allocation5] sm:$0x3]
        %v453 = vld [vmem:[%s384] sm:$0xff]
        %v454 = vld [vmem:[%s384 + $0x8] sm:$0xff]
        %v455 = vld [vmem:[#allocation7] sm:$0xff]
        %457 = vset.pattern.permute.xlu0 0
        %458 = vperm.xlu0 %457, %v455
        %v459 = vpop.permute.xlu0 %458
        %v461 = vmul.f32 %v453, %v459
        %v462 = vmul.f32 %v454, %v459
        %v463 = vld [vmem:[#allocation8] sm:$0xff]
        %465 = vset.pattern.permute.xlu0 0
        %466 = vperm.xlu0 %465, %v463
        %v467 = vpop.permute.xlu0 %466
        %v469 = vadd.f32 %v461, %v467
        %v470 = vadd.f32 %v462, %v467
        %v471 = vmax.f32 %v469, 0.0
        %v472 = vmax.f32 %v470, 0.0
        %s473 = scalar_lea.vmem [#allocation10], 8
        %v474 = vld [vmem:[%s473] sm:$0xff]
        %v475 = vld [vmem:[#allocation10] sm:$0xff]
        %478 = vrot.lane.b32.xlu0 %v471, 32
        %v479 = vpop.permute.xlu0 %478
        %480 = vrot.lane.b32.xlu0 %v472, 32
        %v481 = vpop.permute.xlu0 %480
        %vm482 = vcmask 261120
        %v483 = vsel %vm482, %v479, %v481
        %v486 = vsel %vm482, 0.0, %v479
        %vm487 = vcmask 64512
        %v489 = vsel %vm487, %v475, 0
        %491 = vmatprep.subr.mxu0 %v483
        %492 = vmatpush1.msra.mxu0 %v486
        %493 = vmatprep.subr.mxu0 0.0
        %494 = vmatpush1.msra.mxu0 0.0
        %495 = vmatprep.subr.mxu0 0.0
        %496 = vmatpush1.msra.mxu0 0.0
        %497 = vmatprep.subr.mxu0 0.0
        %498 = vmatpush1.msra.mxu0 0.0
        %499 = vmatprep.subr.mxu0 0.0
        %500 = vmatpush1.msra.mxu0 0.0
        %501 = vmatprep.subr.mxu0 0.0
        %502 = vmatpush1.msra.mxu0 0.0
        %503 = vmatprep.subr.mxu0 0.0
        %504 = vmatpush1.msra.mxu0 0.0
        %505 = vmatprep.subr.mxu0 0.0
        %506 = vmatpush1.msra.mxu0 0.0
        %507 = vmatprep.subr.mxu0 0.0
        %508 = vmatpush1.msra.mxu0 0.0
        %509 = vmatprep.subr.mxu0 0.0
        %510 = vmatpush1.msra.mxu0 0.0
        %511 = vmatprep.subr.mxu0 0.0
        %512 = vmatpush1.msra.mxu0 0.0
        %513 = vmatprep.subr.mxu0 0.0
        %514 = vmatpush1.msra.mxu0 0.0
        %515 = vmatprep.subr.mxu0 0.0
        %516 = vmatpush1.msra.mxu0 0.0
        %517 = vmatprep.subr.mxu0 0.0
        %518 = vmatpush1.msra.mxu0 0.0
        %519 = vmatprep.subr.mxu0 0.0
        %520 = vmatpush1.msra.mxu0 0.0
        %521 = vmatprep.subr.mxu0 0.0
        %522 = vmatpush1.msra.mxu0 0.0
        %523 = vmatprep.subr.mxu0 0.0
        %524 = vmatpush1.msra.mxu0 0.0
        %525 = vmatprep.subr.mxu0 0.0
        %526 = vmatpush1.msra.mxu0 0.0
        %527 = vmatprep.subr.mxu0 0.0
        %528 = vmatpush1.msra.mxu0 0.0
        %529 = vmatprep.subr.mxu0 0.0
        %530 = vmatpush1.msra.mxu0 0.0
        %531 = vmatprep.subr.mxu0 0.0
        %532 = vmatpush1.msra.mxu0 0.0
        %533 = vmatprep.subr.mxu0 0.0
        %534 = vmatpush1.msra.mxu0 0.0
        %535 = vmatprep.subr.mxu0 0.0
        %536 = vmatpush1.msra.mxu0 0.0
        %537 = vmatprep.subr.mxu0 0.0
        %538 = vmatpush1.msra.mxu0 0.0
        %539 = vmatprep.subr.mxu0 0.0
        %540 = vmatpush1.msra.mxu0 0.0
        %541 = vmatprep.subr.mxu0 0.0
        %542 = vmatpush1.msra.mxu0 0.0
        %543 = vmatprep.subr.mxu0 0.0
        %544 = vmatpush1.msra.mxu0 0.0
        %545 = vmatprep.subr.mxu0 0.0
        %546 = vmatpush1.msra.mxu0 0.0
        %547 = vmatprep.subr.mxu0 0.0
        %548 = vmatpush1.msra.mxu0 0.0
        %549 = vmatprep.subr.mxu0 0.0
        %550 = vmatpush1.msra.mxu0 0.0
        %551 = vmatprep.subr.mxu0 0.0
        %552 = vmatpush1.msra.mxu0 0.0
        %553 = vmatprep.subr.mxu0 0.0
        %554 = vmatpush1.msra.mxu0 0.0
        %555 = vmatprep.mubr.f32.mxu0 0.0
        %556 = vmatmul.mubr.f32.gmra.mrb[0].mxu0 %v489
        %v557 = vpop.f32.mrb[0].mxu0
        %v558 = vadd.f32 0.0, %v557
        %v559 = vpop.f32.mrb[0].mxu0
        %v560 = vadd.f32 0.0, %v559
        %561 = vdwg.mxu0
        %v563 = vsel %vm487, %v474, 0
        %565 = vmatprep.subr.mxu0 %v472
        %566 = vmatpush1.msra.mxu0 %v471
        %567 = vmatprep.subr.mxu0 0.0
        %568 = vmatpush1.msra.mxu0 0.0
        %569 = vmatprep.subr.mxu0 0.0
        %570 = vmatpush1.msra.mxu0 0.0
        %571 = vmatprep.subr.mxu0 0.0
        %572 = vmatpush1.msra.mxu0 0.0
        %573 = vmatprep.subr.mxu0 0.0
        %574 = vmatpush1.msra.mxu0 0.0
        %575 = vmatprep.subr.mxu0 0.0
        %576 = vmatpush1.msra.mxu0 0.0
        %577 = vmatprep.subr.mxu0 0.0
        %578 = vmatpush1.msra.mxu0 0.0
        %579 = vmatprep.subr.mxu0 0.0
        %580 = vmatpush1.msra.mxu0 0.0
        %581 = vmatprep.subr.mxu0 0.0
        %582 = vmatpush1.msra.mxu0 0.0
        %583 = vmatprep.subr.mxu0 0.0
        %584 = vmatpush1.msra.mxu0 0.0
        %585 = vmatprep.subr.mxu0 0.0
        %586 = vmatpush1.msra.mxu0 0.0
        %587 = vmatprep.subr.mxu0 0.0
        %588 = vmatpush1.msra.mxu0 0.0
        %589 = vmatprep.subr.mxu0 0.0
        %590 = vmatpush1.msra.mxu0 0.0
        %591 = vmatprep.subr.mxu0 0.0
        %592 = vmatpush1.msra.mxu0 0.0
        %593 = vmatprep.subr.mxu0 0.0
        %594 = vmatpush1.msra.mxu0 0.0
        %595 = vmatprep.subr.mxu0 0.0
        %596 = vmatpush1.msra.mxu0 0.0
        %597 = vmatprep.subr.mxu0 0.0
        %598 = vmatpush1.msra.mxu0 0.0
        %599 = vmatprep.subr.mxu0 0.0
        %600 = vmatpush1.msra.mxu0 0.0
        %601 = vmatprep.subr.mxu0 0.0
        %602 = vmatpush1.msra.mxu0 0.0
        %603 = vmatprep.subr.mxu0 0.0
        %604 = vmatpush1.msra.mxu0 0.0
        %605 = vmatprep.subr.mxu0 0.0
        %606 = vmatpush1.msra.mxu0 0.0
        %607 = vmatprep.subr.mxu0 0.0
        %608 = vmatpush1.msra.mxu0 0.0
        %609 = vmatprep.subr.mxu0 0.0
        %610 = vmatpush1.msra.mxu0 0.0
        %611 = vmatprep.subr.mxu0 0.0
        %612 = vmatpush1.msra.mxu0 0.0
        %613 = vmatprep.subr.mxu0 0.0
        %614 = vmatpush1.msra.mxu0 0.0
        %615 = vmatprep.subr.mxu0 0.0
        %616 = vmatpush1.msra.mxu0 0.0
        %617 = vmatprep.subr.mxu0 0.0
        %618 = vmatpush1.msra.mxu0 0.0
        %619 = vmatprep.subr.mxu0 0.0
        %620 = vmatpush1.msra.mxu0 0.0
        %621 = vmatprep.subr.mxu0 0.0
        %622 = vmatpush1.msra.mxu0 0.0
        %623 = vmatprep.subr.mxu0 0.0
        %624 = vmatpush1.msra.mxu0 0.0
        %625 = vmatprep.subr.mxu0 0.0
        %626 = vmatpush1.msra.mxu0 0.0
        %627 = vmatprep.subr.mxu0 0.0
        %628 = vmatpush1.msra.mxu0 0.0
        %629 = vmatprep.mubr.f32.mxu0 0.0
        %630 = vmatmul.mubr.f32.gmra.mrb[0].mxu0 %v563
        %v631 = vpop.f32.mrb[0].mxu0
        %v632 = vadd.f32 %v558, %v631
        %v633 = vpop.f32.mrb[0].mxu0
        %v634 = vadd.f32 %v560, %v633
        %635 = vdwg.mxu0
        %s636 = scalar_lea.vmem [#allocation10], 16
        %v637 = vld [vmem:[%s636] sm:$0xff]
        %638 = vrot.lane.b32.xlu0 %v471, 96
        %v639 = vpop.permute.xlu0 %638
        %640 = vrot.lane.b32.xlu0 %v472, 96
        %v641 = vpop.permute.xlu0 %640
        %vm642 = vcmask 785408
        %v643 = vsel %vm642, %v639, %v641
        %v646 = vsel %vm642, %v641, 0.0
        %v648 = vsel %vm487, %v637, 0
        %650 = vmatprep.subr.mxu0 %v646
        %651 = vmatpush1.msra.mxu0 %v643
        %652 = vmatprep.subr.mxu0 0.0
        %653 = vmatpush1.msra.mxu0 0.0
        %654 = vmatprep.subr.mxu0 0.0
        %655 = vmatpush1.msra.mxu0 0.0
        %656 = vmatprep.subr.mxu0 0.0
        %657 = vmatpush1.msra.mxu0 0.0
        %658 = vmatprep.subr.mxu0 0.0
        %659 = vmatpush1.msra.mxu0 0.0
        %660 = vmatprep.subr.mxu0 0.0
        %661 = vmatpush1.msra.mxu0 0.0
        %662 = vmatprep.subr.mxu0 0.0
        %663 = vmatpush1.msra.mxu0 0.0
        %664 = vmatprep.subr.mxu0 0.0
        %665 = vmatpush1.msra.mxu0 0.0
        %666 = vmatprep.subr.mxu0 0.0
        %667 = vmatpush1.msra.mxu0 0.0
        %668 = vmatprep.subr.mxu0 0.0
        %669 = vmatpush1.msra.mxu0 0.0
        %670 = vmatprep.subr.mxu0 0.0
        %671 = vmatpush1.msra.mxu0 0.0
        %672 = vmatprep.subr.mxu0 0.0
        %673 = vmatpush1.msra.mxu0 0.0
        %674 = vmatprep.subr.mxu0 0.0
        %675 = vmatpush1.msra.mxu0 0.0
        %676 = vmatprep.subr.mxu0 0.0
        %677 = vmatpush1.msra.mxu0 0.0
        %678 = vmatprep.subr.mxu0 0.0
        %679 = vmatpush1.msra.mxu0 0.0
        %680 = vmatprep.subr.mxu0 0.0
        %681 = vmatpush1.msra.mxu0 0.0
        %682 = vmatprep.subr.mxu0 0.0
        %683 = vmatpush1.msra.mxu0 0.0
        %684 = vmatprep.subr.mxu0 0.0
        %685 = vmatpush1.msra.mxu0 0.0
        %686 = vmatprep.subr.mxu0 0.0
        %687 = vmatpush1.msra.mxu0 0.0
        %688 = vmatprep.subr.mxu0 0.0
        %689 = vmatpush1.msra.mxu0 0.0
        %690 = vmatprep.subr.mxu0 0.0
        %691 = vmatpush1.msra.mxu0 0.0
        %692 = vmatprep.subr.mxu0 0.0
        %693 = vmatpush1.msra.mxu0 0.0
        %694 = vmatprep.subr.mxu0 0.0
        %695 = vmatpush1.msra.mxu0 0.0
        %696 = vmatprep.subr.mxu0 0.0
        %697 = vmatpush1.msra.mxu0 0.0
        %698 = vmatprep.subr.mxu0 0.0
        %699 = vmatpush1.msra.mxu0 0.0
        %700 = vmatprep.subr.mxu0 0.0
        %701 = vmatpush1.msra.mxu0 0.0
        %702 = vmatprep.subr.mxu0 0.0
        %703 = vmatpush1.msra.mxu0 0.0
        %704 = vmatprep.subr.mxu0 0.0
        %705 = vmatpush1.msra.mxu0 0.0
        %706 = vmatprep.subr.mxu0 0.0
        %707 = vmatpush1.msra.mxu0 0.0
        %708 = vmatprep.subr.mxu0 0.0
        %709 = vmatpush1.msra.mxu0 0.0
        %710 = vmatprep.subr.mxu0 0.0
        %711 = vmatpush1.msra.mxu0 0.0
        %712 = vmatprep.subr.mxu0 0.0
        %713 = vmatpush1.msra.mxu0 0.0
        %714 = vmatprep.mubr.f32.mxu0 0.0
        %715 = vmatmul.mubr.f32.gmra.mrb[0].mxu0 %v648
        %v716 = vpop.f32.mrb[0].mxu0
        %v717 = vadd.f32 0.0, %v716
        %v718 = vpop.f32.mrb[0].mxu0
        %v719 = vadd.f32 0.0, %v718
        %720 = vdwg.mxu0
        %v721 = vadd.f32 %v632, %v717
        %v722 = vadd.f32 %v634, %v719
        %v723 = vld [vmem:[#allocation11] sm:$0xff]
        %725 = vset.pattern.permute.xlu0 0
        %726 = vperm.xlu0 %725, %v723
        %v727 = vpop.permute.xlu0 %726
        %v729 = vadd.f32 %v721, %v727
        %v730 = vadd.f32 %v722, %v727
        %v731 = vmax.f32 %v729, 0.0
        %v732 = vmax.f32 %v730, 0.0
        %s733 = scalar_lea.vmem [#allocation13], 8
        %v734 = vld [vmem:[%s733] sm:$0xff]
        %vm735 = vcmp.ge.s32.totalorder %v452, 2
        %738 = vrot.lane.b32.xlu0 %v731, 2
        %v739 = vpop.permute.xlu0 %738
        %740 = vrot.lane.b32.xlu0 %v732, 2
        %v741 = vpop.permute.xlu0 %740
        %vm742 = vcmask 15360
        %v743 = vsel %vm742, %v739, %v741
        %v746 = vsel %vm742, 0.0, %v739
        %v747 = vsel %vm735, 1, 0
        %v748 = vlaneseq
        %v749 = vshrl.u32 %v748, 7
        %v750 = vsub.s32 0, %v749
        %v751 = vrot.slane %v747, %v750
        %v752 = vlaneseq
        %v753 = vshrl.u32 %v752, 7
        %v754 = vsub.s32 1, %v753
        %v755 = vrot.slane %v747, %v754
        %vm756 = vcmp.eq.s32.totalorder %v751, 1
        %vm757 = vcmp.eq.s32.totalorder %v755, 1
        %v758 = vsel %vm756, %v746, 0.0
        %v759 = vsel %vm757, %v743, 0.0
        %v760 = vld [vmem:[#allocation13] sm:$0xff]
        %v762 = vsel %vm487, %v760, 0
        %764 = vmatprep.subr.mxu0 %v759
        %765 = vmatpush1.msra.mxu0 %v758
        %766 = vmatprep.subr.mxu0 0.0
        %767 = vmatpush1.msra.mxu0 0.0
        %768 = vmatprep.subr.mxu0 0.0
        %769 = vmatpush1.msra.mxu0 0.0
        %770 = vmatprep.subr.mxu0 0.0
        %771 = vmatpush1.msra.mxu0 0.0
        %772 = vmatprep.subr.mxu0 0.0
        %773 = vmatpush1.msra.mxu0 0.0
        %774 = vmatprep.subr.mxu0 0.0
        %775 = vmatpush1.msra.mxu0 0.0
        %776 = vmatprep.subr.mxu0 0.0
        %777 = vmatpush1.msra.mxu0 0.0
        %778 = vmatprep.subr.mxu0 0.0
        %779 = vmatpush1.msra.mxu0 0.0
        %780 = vmatprep.subr.mxu0 0.0
        %781 = vmatpush1.msra.mxu0 0.0
        %782 = vmatprep.subr.mxu0 0.0
        %783 = vmatpush1.msra.mxu0 0.0
        %784 = vmatprep.subr.mxu0 0.0
        %785 = vmatpush1.msra.mxu0 0.0
        %786 = vmatprep.subr.mxu0 0.0
        %787 = vmatpush1.msra.mxu0 0.0
        %788 = vmatprep.subr.mxu0 0.0
        %789 = vmatpush1.msra.mxu0 0.0
        %790 = vmatprep.subr.mxu0 0.0
        %791 = vmatpush1.msra.mxu0 0.0
        %792 = vmatprep.subr.mxu0 0.0
        %793 = vmatpush1.msra.mxu0 0.0
        %794 = vmatprep.subr.mxu0 0.0
        %795 = vmatpush1.msra.mxu0 0.0
        %796 = vmatprep.subr.mxu0 0.0
        %797 = vmatpush1.msra.mxu0 0.0
        %798 = vmatprep.subr.mxu0 0.0
        %799 = vmatpush1.msra.mxu0 0.0
        %800 = vmatprep.subr.mxu0 0.0
        %801 = vmatpush1.msra.mxu0 0.0
        %802 = vmatprep.subr.mxu0 0.0
        %803 = vmatpush1.msra.mxu0 0.0
        %804 = vmatprep.subr.mxu0 0.0
        %805 = vmatpush1.msra.mxu0 0.0
        %806 = vmatprep.subr.mxu0 0.0
        %807 = vmatpush1.msra.mxu0 0.0
        %808 = vmatprep.subr.mxu0 0.0
        %809 = vmatpush1.msra.mxu0 0.0
        %810 = vmatprep.subr.mxu0 0.0
        %811 = vmatpush1.msra.mxu0 0.0
        %812 = vmatprep.subr.mxu0 0.0
        %813 = vmatpush1.msra.mxu0 0.0
        %814 = vmatprep.subr.mxu0 0.0
        %815 = vmatpush1.msra.mxu0 0.0
        %816 = vmatprep.subr.mxu0 0.0
        %817 = vmatpush1.msra.mxu0 0.0
        %818 = vmatprep.subr.mxu0 0.0
        %819 = vmatpush1.msra.mxu0 0.0
        %820 = vmatprep.subr.mxu0 0.0
        %821 = vmatpush1.msra.mxu0 0.0
        %822 = vmatprep.subr.mxu0 0.0
        %823 = vmatpush1.msra.mxu0 0.0
        %824 = vmatprep.subr.mxu0 0.0
        %825 = vmatpush1.msra.mxu0 0.0
        %826 = vmatprep.subr.mxu0 0.0
        %827 = vmatpush1.msra.mxu0 0.0
        %828 = vmatprep.mubr.f32.mxu0 0.0
        %829 = vmatmul.mubr.f32.gmra.mrb[0].mxu0 %v762
        %v830 = vpop.f32.mrb[0].mxu0
        %v831 = vadd.f32 0.0, %v830
        %v832 = vpop.f32.mrb[0].mxu0
        %v833 = vadd.f32 0.0, %v832
        %834 = vdwg.mxu0
        %v836 = vsel %vm487, %v734, 0
        %838 = vmatprep.subr.mxu0 %v732
        %839 = vmatpush1.msra.mxu0 %v731
        %840 = vmatprep.subr.mxu0 0.0
        %841 = vmatpush1.msra.mxu0 0.0
        %842 = vmatprep.subr.mxu0 0.0
        %843 = vmatpush1.msra.mxu0 0.0
        %844 = vmatprep.subr.mxu0 0.0
        %845 = vmatpush1.msra.mxu0 0.0
        %846 = vmatprep.subr.mxu0 0.0
        %847 = vmatpush1.msra.mxu0 0.0
        %848 = vmatprep.subr.mxu0 0.0
        %849 = vmatpush1.msra.mxu0 0.0
        %850 = vmatprep.subr.mxu0 0.0
        %851 = vmatpush1.msra.mxu0 0.0
        %852 = vmatprep.subr.mxu0 0.0
        %853 = vmatpush1.msra.mxu0 0.0
        %854 = vmatprep.subr.mxu0 0.0
        %855 = vmatpush1.msra.mxu0 0.0
        %856 = vmatprep.subr.mxu0 0.0
        %857 = vmatpush1.msra.mxu0 0.0
        %858 = vmatprep.subr.mxu0 0.0
        %859 = vmatpush1.msra.mxu0 0.0
        %860 = vmatprep.subr.mxu0 0.0
        %861 = vmatpush1.msra.mxu0 0.0
        %862 = vmatprep.subr.mxu0 0.0
        %863 = vmatpush1.msra.mxu0 0.0
        %864 = vmatprep.subr.mxu0 0.0
        %865 = vmatpush1.msra.mxu0 0.0
        %866 = vmatprep.subr.mxu0 0.0
        %867 = vmatpush1.msra.mxu0 0.0
        %868 = vmatprep.subr.mxu0 0.0
        %869 = vmatpush1.msra.mxu0 0.0
        %870 = vmatprep.subr.mxu0 0.0
        %871 = vmatpush1.msra.mxu0 0.0
        %872 = vmatprep.subr.mxu0 0.0
        %873 = vmatpush1.msra.mxu0 0.0
        %874 = vmatprep.subr.mxu0 0.0
        %875 = vmatpush1.msra.mxu0 0.0
        %876 = vmatprep.subr.mxu0 0.0
        %877 = vmatpush1.msra.mxu0 0.0
        %878 = vmatprep.subr.mxu0 0.0
        %879 = vmatpush1.msra.mxu0 0.0
        %880 = vmatprep.subr.mxu0 0.0
        %881 = vmatpush1.msra.mxu0 0.0
        %882 = vmatprep.subr.mxu0 0.0
        %883 = vmatpush1.msra.mxu0 0.0
        %884 = vmatprep.subr.mxu0 0.0
        %885 = vmatpush1.msra.mxu0 0.0
        %886 = vmatprep.subr.mxu0 0.0
        %887 = vmatpush1.msra.mxu0 0.0
        %888 = vmatprep.subr.mxu0 0.0
        %889 = vmatpush1.msra.mxu0 0.0
        %890 = vmatprep.subr.mxu0 0.0
        %891 = vmatpush1.msra.mxu0 0.0
        %892 = vmatprep.subr.mxu0 0.0
        %893 = vmatpush1.msra.mxu0 0.0
        %894 = vmatprep.subr.mxu0 0.0
        %895 = vmatpush1.msra.mxu0 0.0
        %896 = vmatprep.subr.mxu0 0.0
        %897 = vmatpush1.msra.mxu0 0.0
        %898 = vmatprep.subr.mxu0 0.0
        %899 = vmatpush1.msra.mxu0 0.0
        %900 = vmatprep.subr.mxu0 0.0
        %901 = vmatpush1.msra.mxu0 0.0
        %902 = vmatprep.mubr.f32.mxu0 0.0
        %903 = vmatmul.mubr.f32.gmra.mrb[0].mxu0 %v836
        %v904 = vpop.f32.mrb[0].mxu0
        %v905 = vadd.f32 %v831, %v904
        %v906 = vpop.f32.mrb[0].mxu0
        %v907 = vadd.f32 %v833, %v906
        %908 = vdwg.mxu0
        %vm909 = vcmp.lt.s32.totalorder %v452, 14
        %910 = vrot.lane.b32.xlu0 %v731, 126
        %v911 = vpop.permute.xlu0 %910
        %912 = vrot.lane.b32.xlu0 %v732, 126
        %v913 = vpop.permute.xlu0 %912
        %vm914 = vcmask 1031168
        %v915 = vsel %vm914, %v911, %v913
        %v918 = vsel %vm914, %v913, 0.0
        %v919 = vsel %vm909, 1, 0
        %v920 = vlaneseq
        %v921 = vshrl.u32 %v920, 7
        %v922 = vsub.s32 0, %v921
        %v923 = vrot.slane %v919, %v922
        %v924 = vlaneseq
        %v925 = vshrl.u32 %v924, 7
        %v926 = vsub.s32 1, %v925
        %v927 = vrot.slane %v919, %v926
        %vm928 = vcmp.eq.s32.totalorder %v923, 1
        %vm929 = vcmp.eq.s32.totalorder %v927, 1
        %v930 = vsel %vm928, %v915, 0.0
        %v931 = vsel %vm929, %v918, 0.0
        %s932 = scalar_lea.vmem [#allocation13], 16
        %v933 = vld [vmem:[%s932] sm:$0xff]
        %v935 = vsel %vm487, %v933, 0
        %937 = vmatprep.subr.mxu0 %v931
        %938 = vmatpush1.msra.mxu0 %v930
        %939 = vmatprep.subr.mxu0 0.0
        %940 = vmatpush1.msra.mxu0 0.0
        %941 = vmatprep.subr.mxu0 0.0
        %942 = vmatpush1.msra.mxu0 0.0
        %943 = vmatprep.subr.mxu0 0.0
        %944 = vmatpush1.msra.mxu0 0.0
        %945 = vmatprep.subr.mxu0 0.0
        %946 = vmatpush1.msra.mxu0 0.0
        %947 = vmatprep.subr.mxu0 0.0
        %948 = vmatpush1.msra.mxu0 0.0
        %949 = vmatprep.subr.mxu0 0.0
        %950 = vmatpush1.msra.mxu0 0.0
        %951 = vmatprep.subr.mxu0 0.0
        %952 = vmatpush1.msra.mxu0 0.0
        %953 = vmatprep.subr.mxu0 0.0
        %954 = vmatpush1.msra.mxu0 0.0
        %955 = vmatprep.subr.mxu0 0.0
        %956 = vmatpush1.msra.mxu0 0.0
        %957 = vmatprep.subr.mxu0 0.0
        %958 = vmatpush1.msra.mxu0 0.0
        %959 = vmatprep.subr.mxu0 0.0
        %960 = vmatpush1.msra.mxu0 0.0
        %961 = vmatprep.subr.mxu0 0.0
        %962 = vmatpush1.msra.mxu0 0.0
        %963 = vmatprep.subr.mxu0 0.0
        %964 = vmatpush1.msra.mxu0 0.0
        %965 = vmatprep.subr.mxu0 0.0
        %966 = vmatpush1.msra.mxu0 0.0
        %967 = vmatprep.subr.mxu0 0.0
        %968 = vmatpush1.msra.mxu0 0.0
        %969 = vmatprep.subr.mxu0 0.0
        %970 = vmatpush1.msra.mxu0 0.0
        %971 = vmatprep.subr.mxu0 0.0
        %972 = vmatpush1.msra.mxu0 0.0
        %973 = vmatprep.subr.mxu0 0.0
        %974 = vmatpush1.msra.mxu0 0.0
        %975 = vmatprep.subr.mxu0 0.0
        %976 = vmatpush1.msra.mxu0 0.0
        %977 = vmatprep.subr.mxu0 0.0
        %978 = vmatpush1.msra.mxu0 0.0
        %979 = vmatprep.subr.mxu0 0.0
        %980 = vmatpush1.msra.mxu0 0.0
        %981 = vmatprep.subr.mxu0 0.0
        %982 = vmatpush1.msra.mxu0 0.0
        %983 = vmatprep.subr.mxu0 0.0
        %984 = vmatpush1.msra.mxu0 0.0
        %985 = vmatprep.subr.mxu0 0.0
        %986 = vmatpush1.msra.mxu0 0.0
        %987 = vmatprep.subr.mxu0 0.0
        %988 = vmatpush1.msra.mxu0 0.0
        %989 = vmatprep.subr.mxu0 0.0
        %990 = vmatpush1.msra.mxu0 0.0
        %991 = vmatprep.subr.mxu0 0.0
        %992 = vmatpush1.msra.mxu0 0.0
        %993 = vmatprep.subr.mxu0 0.0
        %994 = vmatpush1.msra.mxu0 0.0
        %995 = vmatprep.subr.mxu0 0.0
        %996 = vmatpush1.msra.mxu0 0.0
        %997 = vmatprep.subr.mxu0 0.0
        %998 = vmatpush1.msra.mxu0 0.0
        %999 = vmatprep.subr.mxu0 0.0
        %1000 = vmatpush1.msra.mxu0 0.0
        %1001 = vmatprep.mubr.f32.mxu0 0.0
        %1002 = vmatmul.mubr.f32.gmra.mrb[0].mxu0 %v935
        %v1003 = vpop.f32.mrb[0].mxu0
        %v1004 = vadd.f32 0.0, %v1003
        %v1005 = vpop.f32.mrb[0].mxu0
        %v1006 = vadd.f32 0.0, %v1005
        %1007 = vdwg.mxu0
        %v1008 = vadd.f32 %v905, %v1004
        %v1009 = vadd.f32 %v907, %v1006
        %v1010 = vld [vmem:[#allocation14] sm:$0xff]
        %1012 = vset.pattern.permute.xlu0 0
        %1013 = vperm.xlu0 %1012, %v1010
        %v1014 = vpop.permute.xlu0 %1013
        %v1016 = vadd.f32 %v1008, %v1014
        %v1017 = vadd.f32 %v1009, %v1014
        %1018 = vst [vmem:[%s444] sm:$0xff] %v1016
        %1019 = vst [vmem:[%s444 + $0x8] sm:$0xff] %v1017
        %v1020 = vadd.f32 %v1016, %v1017
        %1021 = vadd.xlane.f32.xlu0 %v1020
        %v1022 = vpop.xlane.xlu0 %1021
        %vm1023 = vcmask 7168
        %1024 = vst.msk [vmem:[%s451] sm:$0xff] %vm1023, %v1022
        %v1025 = vmul.f32 %v1016, %v1016
        %v1026 = vmul.f32 %v1017, %v1017
        %v1027 = vadd.f32 %v1025, %v1026
        %1028 = vadd.xlane.f32.xlu0 %v1027
        %v1029 = vpop.xlane.xlu0 %1028
        %vm1030 = vcmask 15368
        %1031 = vst.msk [vmem:[%s451] sm:$0xff] %vm1030, %v1029
        %s1032 = sand.u32 %s215, 1
        %s1033 = scalar_lea.sflag [#allocation4], %s1032
        %s1034 = sand.u32 %s215, 1
        %s1035 = smul.addr %s1034, 16
        %s1036 = scalar_lea.vmem [#allocation16], %s1035
        %s1037 = sand.u32 %s241, 1
        %s1038 = scalar_lea.sflag [#allocation18], %s1037
        %s1039 = sand.u32 %s241, 1
        %s1040 = smul.addr %s1039, 8
        %s1041 = scalar_lea.vmem [#allocation17], %s1040
        // Predicated region
        $region85: #{non_bottleneck_1d_forward.4} parent=51 // pred_check
          %p1042 = pneg %p225
        $region86: #{non_bottleneck_1d_forward.4} parent=51 // pred_check_branch
          %1044 = sbr.rel (%p1042) target = $region88
        $region87: #{non_bottleneck_1d_forward.4} parent=51 // pred_region
          %s1046 = ssub.s32 256, 256
          %1047 = vsyncadd %s1033, %s1046
          %s1048 = smul.addr %s34, 2
          %s1049 = smul.addr %s1048, 128
          %s1050 = scalar_lea.hbm %s8, %s1049
          %s1052 = sshll.u32 %s1036, 4
          %s1053 = int_to_ptr.vmem [resolvable:$true] %s1052
          %1055 = dma.vmem_to_hbm [thread:$0]  %s1053, 256, %s1050, %s1033
        $region88: #{non_bottleneck_1d_forward.4} parent=51 // pred_fallthru
          _
        // Predicated region
        $region89: #{non_bottleneck_1d_forward.4} parent=51 // pred_check
          %p1056 = pneg %p251
        $region90: #{non_bottleneck_1d_forward.4} parent=51 // pred_check_branch
          %1058 = sbr.rel (%p1056) target = $region92
        $region91: #{non_bottleneck_1d_forward.4} parent=51 // pred_region
          %s1060 = ssub.s32 128, 128
          %1061 = vsyncadd %s1038, %s1060
          %s1062 = smul.addr %s34, 128
          %s1063 = scalar_lea.hbm %s9, %s1062
          %s1065 = sshll.u32 %s1041, 4
          %s1066 = int_to_ptr.vmem [resolvable:$true] %s1065
          %1068 = dma.vmem_to_hbm [thread:$0]  %s1066, 128, %s1063, %s1038
        $region92: #{non_bottleneck_1d_forward.4} parent=51 // pred_fallthru
          _
      $region52: #{non_bottleneck_1d_forward.4} parent=5 // pred_fallthru
        _
      %p1069 = scmp.le.s32.totalorder 2, %s29
      // Predicated region
      $region93: #{non_bottleneck_1d_forward.4} parent=5 // pred_check
        %p1070 = pneg %p1069
      $region94: #{non_bottleneck_1d_forward.4} parent=5 // pred_check_branch
        %1072 = sbr.rel (%p1070) target = $region96
      $region95: #{non_bottleneck_1d_forward.4} parent=5 // pred_region
        %s1073 = ssub.s32 %s29, 2
        // Predicated region
        $region97: #{non_bottleneck_1d_forward.4} parent=95 // pred_check
          %p1074 = pneg %p231
        $region98: #{non_bottleneck_1d_forward.4} parent=95 // pred_check_branch
          %1076 = sbr.rel (%p1074) target = $region100
        $region99: #{non_bottleneck_1d_forward.4} parent=95 // pred_region
          %s1077 = sand.u32 %s216, 1
          %s1078 = scalar_lea.sflag [#allocation4], %s1077
          %s1079 = sand.u32 %s216, 1
          %s1080 = smul.addr %s1079, 16
          %s1081 = scalar_lea.vmem [#allocation16], %s1080
          %1082 = dma.done %s1078, 256
        $region100: #{non_bottleneck_1d_forward.4} parent=95 // pred_fallthru
          _
        // Predicated region
        $region101: #{non_bottleneck_1d_forward.4} parent=95 // pred_check
          %p1083 = pneg %p257
        $region102: #{non_bottleneck_1d_forward.4} parent=95 // pred_check_branch
          %1085 = sbr.rel (%p1083) target = $region104
        $region103: #{non_bottleneck_1d_forward.4} parent=95 // pred_region
          %s1086 = sand.u32 %s242, 1
          %s1087 = scalar_lea.sflag [#allocation18], %s1086
          %s1088 = sand.u32 %s242, 1
          %s1089 = smul.addr %s1088, 8
          %s1090 = scalar_lea.vmem [#allocation17], %s1089
          %1091 = dma.done %s1087, 128
        $region104: #{non_bottleneck_1d_forward.4} parent=95 // pred_fallthru
          _
      $region96: #{non_bottleneck_1d_forward.4} parent=5 // pred_fallthru
        _
    $region6: #{non_bottleneck_1d_forward.4} parent=1 // loop_footer
      %s33 = sadd.s32 1, %s29
    $region7: #{non_bottleneck_1d_forward.4} parent=1 // loop_footer_branch
      %28 = sbr.rel target = $region3
    $region8: #{non_bottleneck_1d_forward.4} parent=1 // loop_exit
      _
    %1092 = vsyncpa [#allocation3], 1
    %s1093 = scalar_lea.sflag [#allocation3], 1
    %1094 = vsyncpa %s1093, 1
    %1095 = vsyncpa [#allocation6], 1
    %1096 = vsyncpa [#allocation9], 1
    %1097 = vsyncpa [#allocation12], 1
    %1098 = vsyncpa [#allocation15], 1
    %1099 = vsyncpa [#allocation4], 1
    %s1100 = scalar_lea.sflag [#allocation4], 1
    %1101 = vsyncpa %s1100, 1
    %1102 = vsyncpa [#allocation18], 1
    %s1103 = scalar_lea.sflag [#allocation18], 1
    %1104 = vsyncpa %s1103, 1

</llo_original>
